<compile_context>
chip_gen: v5e
topology: v5e:2x2
jax: 0.10.0
libtpu: 0.0.40
codegen_flags: <defaults>
</compile_context>

<pallas_src>
import functools
import numpy as np
import jax
import jax.numpy as jnp
from jax.experimental import pallas as pl
from jax.experimental.pallas import tpu as pltpu

# ------------------------- configuration (small) -------------------------
B = 2            # batch
H = W = 8        # input resolution
C = 32           # dim
NUM_HEADS = 4
HEAD_DIM = C // NUM_HEADS
WS = 4           # window size
SHIFT = 2        # shift size (SW-MSA)
MLP_RATIO = 4.0
HIDDEN = int(C * MLP_RATIO)          # 128
L = H * W                            # 64 tokens per image
N = WS * WS                          # tokens per window = 16
NW = (H // WS) * (W // WS)           # windows per image = 4
SCALE = HEAD_DIM ** (-0.5)
LN_EPS = 1e-5
NEG_INF = -1e9


# ------------------------- window partition / reverse (reference + mask build only) --
def window_partition(x, ws):
    b, h, w, c = x.shape
    x = x.reshape(b, h // ws, ws, w // ws, ws, c)
    return x.transpose(0, 1, 3, 2, 4, 5).reshape(-1, ws, ws, c)


def window_reverse(windows, ws, h, w):
    b = windows.shape[0] // (h * w // ws // ws)
    x = windows.reshape(b, h // ws, w // ws, ws, ws, -1)
    return x.transpose(0, 1, 3, 2, 4, 5).reshape(b, h, w, -1)


# ------------------------- shift mask & relative position bias (precomputed) --------
def make_attn_mask():
    img_mask = np.zeros((1, H, W, 1), dtype=np.float32)
    slices = (slice(0, -WS), slice(-WS, -SHIFT), slice(-SHIFT, None))
    cnt = 0
    for hs in slices:
        for ws_ in slices:
            img_mask[:, hs, ws_, :] = cnt
            cnt += 1
    mask_windows = np.asarray(
        window_partition(jnp.asarray(img_mask), WS)).reshape(-1, N)
    attn_mask = mask_windows[:, None, :] - mask_windows[:, :, None]
    attn_mask = np.where(attn_mask != 0, -100.0, 0.0).astype(np.float32)
    return jnp.asarray(attn_mask)                       # (NW, N, N)


def make_relative_position_bias(table):
    # table: ((2*WS-1)**2, NUM_HEADS)
    coords = np.stack(np.meshgrid(np.arange(WS), np.arange(WS), indexing="ij"))
    coords_flat = coords.reshape(2, -1)
    rel = coords_flat[:, :, None] - coords_flat[:, None, :]
    rel = rel.transpose(1, 2, 0).copy()
    rel[:, :, 0] += WS - 1
    rel[:, :, 1] += WS - 1
    rel[:, :, 0] *= 2 * WS - 1
    rel_index = rel.sum(-1).reshape(-1)                 # (N*N,)
    bias = table[jnp.asarray(rel_index)].reshape(N, N, NUM_HEADS)
    return jnp.transpose(bias, (2, 0, 1))               # (NUM_HEADS, N, N)


def make_full_bias_mask(rel_bias, attn_mask):
    """(NUM_HEADS, L, L) additive mask over original (un-shifted) token order.

    full[h, i, j] = rel_bias[h, n(i), n(j)] + shift_mask[win(i), n(i), n(j)]
    if tokens i, j fall in the same shifted window, else -1e9 (-> softmax 0).
    This is exactly equivalent to roll + window_partition + per-window
    attention + window_reverse + un-roll of the PyTorch module.
    """
    rr, cc = np.meshgrid(np.arange(H), np.arange(W), indexing="ij")
    sr = (rr - SHIFT) % H                      # shifted row of original token
    sc = (cc - SHIFT) % W                      # shifted col of original token
    win = ((sr // WS) * (W // WS) + (sc // WS)).reshape(-1)   # (L,) window id
    nin = ((sr % WS) * WS + (sc % WS)).reshape(-1)            # (L,) idx in window
    same = win[:, None] == win[None, :]                        # (L, L)
    rb = np.asarray(rel_bias)                                  # (HEADS, N, N)
    am = np.asarray(attn_mask)                                 # (NW, N, N)
    rb_full = rb[:, nin[:, None], nin[None, :]]                # (HEADS, L, L)
    am_full = am[win[:, None], nin[:, None], nin[None, :]]     # (L, L)
    full = np.where(same[None, :, :], rb_full + am_full[None], NEG_INF)
    return jnp.asarray(full.astype(np.float32))                # (HEADS, L, L)


# ------------------------- the fused Pallas kernel -------------------------
def swin_block_kernel(x_ref, mask_ref,
                      g1_ref, be1_ref, wqkv_ref, bqkv_ref,
                      wprojh_ref, bproj_ref, g2_ref, be2_ref,
                      w1_ref, bm1_ref, w2_ref, bm2_ref,
                      out_ref, *, imgs):
    f32, bf16 = jnp.float32, jnp.bfloat16
    rows = imgs * L
    x = x_ref[...]                                       # (rows, C) f32

    # --- norm1 (f32 VPU) ---
    mu = jnp.mean(x, axis=-1, keepdims=True)
    var = jnp.mean((x - mu) ** 2, axis=-1, keepdims=True)
    hn = (x - mu) * jax.lax.rsqrt(var + LN_EPS) * g1_ref[0] + be1_ref[0]

    # --- fused QKV projection: (rows, C) x (C, 3C) on the MXU (bf16 in, f32 acc) ---
    qkv = jnp.dot(hn.astype(bf16), wqkv_ref[...],
                  preferred_element_type=f32) + bqkv_ref[0]       # (rows, 3C) f32
    q = qkv[:, 0:C] * SCALE
    k = qkv[:, C:2 * C]
    v = qkv[:, 2 * C:3 * C]

    # --- masked full-image multi-head attention; head concat folded into proj ---
    ao = None
    for hd in range(NUM_HEADS):
        sl = slice(hd * HEAD_DIM, (hd + 1) * HEAD_DIM)
        qh = q[:, sl].reshape(imgs, L, HEAD_DIM).astype(bf16)
        kh = k[:, sl].reshape(imgs, L, HEAD_DIM).astype(bf16)
        vh = v[:, sl].reshape(imgs, L, HEAD_DIM).astype(bf16)
        s = jnp.einsum("iqd,ikd->iqk", qh, kh,
                       preferred_element_type=f32)                # (imgs, L, L)
        s = s + mask_ref[hd]              # rel-pos bias + shift mask + window mask
        s = s - jnp.max(s, axis=-1, keepdims=True)
        p = jnp.exp(s)
        p = p / jnp.sum(p, axis=-1, keepdims=True)                # exact softmax
        o = jnp.einsum("iqk,ikd->iqd", p.astype(bf16), vh,
                       preferred_element_type=f32)                # (imgs, L, HEAD_DIM)
        part = jnp.dot(o.reshape(rows, HEAD_DIM).astype(bf16),
                       wprojh_ref[hd],                            # (HEAD_DIM, C) bf16
                       preferred_element_type=f32)                # (rows, C)
        ao = part if ao is None else ao + part
    ao = ao + bproj_ref[0]

    # --- residual 1 ---
    x1 = x + ao

    # --- norm2 + MLP + residual 2 ---
    mu2 = jnp.mean(x1, axis=-1, keepdims=True)
    var2 = jnp.mean((x1 - mu2) ** 2, axis=-1, keepdims=True)
    h2 = (x1 - mu2) * jax.lax.rsqrt(var2 + LN_EPS) * g2_ref[0] + be2_ref[0]
    m = jnp.dot(h2.astype(bf16), w1_ref[...],
                preferred_element_type=f32) + bm1_ref[0]          # (rows, HIDDEN)
    m = jax.nn.gelu(m, approximate=True)          # tanh GELU -> EUP slot
    m = jnp.dot(m.astype(bf16), w2_ref[...],
                preferred_element_type=f32) + bm2_ref[0]          # (rows, C)

    out_ref[...] = x1 + m


def images_per_grid_step():
    """All B images in one step on single-TC chips (v5e / v6e); 1 image per
    step (grid=(B,), "parallel") on multi-TC chips (v7x, v4/v5p megacore)."""
    try:
        kind = jax.devices()[0].device_kind.lower()
    except Exception:
        return 1
    if any(t in kind for t in ("v5 lite", "v5e", "v5litepod", "v6 lite", "v6e")):
        return B
    return 1


def _cost_estimate():
    mm_flops = (2 * B * L * (C * 3 * C + C * C + 2 * C * HIDDEN)
                + 2 * B * NUM_HEADS * 2 * L * L * HEAD_DIM)
    transcendentals = B * (NUM_HEADS * L * L + L * HIDDEN + 4 * L)
    bytes_accessed = (4 * (2 * B * L * C + NUM_HEADS * L * L)
                      + 2 * (C * 3 * C + C * C + C * HIDDEN + HIDDEN * C)
                      + 4 * (3 * C + 4 * C + HIDDEN))
    return pl.CostEstimate(flops=mm_flops, transcendentals=transcendentals,
                           bytes_accessed=bytes_accessed)


def swin_block_pallas(x2, full_mask, params, imgs_per_step):
    """x2: (B*L, C) tokens in original order; returns (B*L, C) f32."""
    steps = B // imgs_per_step
    rows = imgs_per_step * L
    bf16 = jnp.bfloat16
    wproj_heads = params["wproj"].reshape(NUM_HEADS, HEAD_DIM, C).astype(bf16)

    in_specs = [
        pl.BlockSpec((rows, C), lambda i: (i, 0)),                     # x slab
        pl.BlockSpec((NUM_HEADS, L, L), lambda i: (0, 0, 0)),          # bias+mask (resident)
        pl.BlockSpec((1, C), lambda i: (0, 0)),                        # norm1 gamma
        pl.BlockSpec((1, C), lambda i: (0, 0)),                        # norm1 beta
        pl.BlockSpec((C, 3 * C), lambda i: (0, 0)),                    # qkv W (bf16)
        pl.BlockSpec((1, 3 * C), lambda i: (0, 0)),                    # qkv b
        pl.BlockSpec((NUM_HEADS, HEAD_DIM, C), lambda i: (0, 0, 0)),   # proj W head-major (bf16)
        pl.BlockSpec((1, C), lambda i: (0, 0)),                        # proj b
        pl.BlockSpec((1, C), lambda i: (0, 0)),                        # norm2 gamma
        pl.BlockSpec((1, C), lambda i: (0, 0)),                        # norm2 beta
        pl.BlockSpec((C, HIDDEN), lambda i: (0, 0)),                   # fc1 W (bf16)
        pl.BlockSpec((1, HIDDEN), lambda i: (0, 0)),                   # fc1 b
        pl.BlockSpec((HIDDEN, C), lambda i: (0, 0)),                   # fc2 W (bf16)
        pl.BlockSpec((1, C), lambda i: (0, 0)),                        # fc2 b
    ]
    kernel = functools.partial(swin_block_kernel, imgs=imgs_per_step)
    return pl.pallas_call(
        kernel,
        out_shape=jax.ShapeDtypeStruct((B * L, C), jnp.float32),
        grid_spec=pltpu.PrefetchScalarGridSpec(
            num_scalar_prefetch=0,
            grid=(steps,),
            in_specs=in_specs,
            out_specs=pl.BlockSpec((rows, C), lambda i: (i, 0)),
        ),
        compiler_params=pltpu.CompilerParams(
            dimension_semantics=("parallel",)),
        cost_estimate=_cost_estimate(),
    )(x2, full_mask,
      params["g1"], params["b1"],
      params["wqkv"].astype(bf16), params["bqkv"],
      wproj_heads, params["bproj"],
      params["g2"], params["b2"],
      params["w1"].astype(bf16), params["bm1"],
      params["w2"].astype(bf16), params["bm2"])


# ------------------------- full forward (single pallas_call, no glue) ----------------
def swin_transformer_block_forward(x, params, full_mask, imgs_per_step):
    # x: (B, L, C).  The shifted-window structure lives entirely in full_mask,
    # so the only "glue" is a free contiguous reshape.
    x2 = x.reshape(B * L, C)
    y = swin_block_pallas(x2, full_mask, params, imgs_per_step)
    return y.reshape(B, L, C)


# ------------------------- pure-JAX reference (PyTorch op order, f32, exact GELU) ----
def reference_forward(x, params, attn_mask, rel_bias):
    def ln(v, g, b):
        mu = jnp.mean(v, axis=-1, keepdims=True)
        var = jnp.mean((v - mu) ** 2, axis=-1, keepdims=True)
        return (v - mu) * jax.lax.rsqrt(var + LN_EPS) * g + b

    shortcut = x
    xn = ln(x, params["g1"][0], params["b1"][0])
    x4 = xn.reshape(B, H, W, C)
    shifted = jnp.roll(x4, shift=(-SHIFT, -SHIFT), axis=(1, 2))
    xw = window_partition(shifted, WS).reshape(-1, N, C)          # (B*NW, N, C)

    qkv = xw @ params["wqkv"] + params["bqkv"][0]
    qkv = qkv.reshape(B * NW, N, 3, NUM_HEADS, HEAD_DIM).transpose(2, 0, 3, 1, 4)
    q, k, v = qkv[0] * SCALE, qkv[1], qkv[2]
    attn = jnp.einsum("bhnd,bhmd->bhnm", q, k)
    attn = attn + rel_bias[None]
    attn = attn.reshape(B, NW, NUM_HEADS, N, N) + attn_mask[None, :, None]
    attn = attn.reshape(B * NW, NUM_HEADS, N, N)
    attn = jax.nn.softmax(attn, axis=-1)
    ao = jnp.einsum("bhnm,bhmd->bhnd", attn, v).transpose(0, 2, 1, 3).reshape(B * NW, N, C)
    ao = ao @ params["wproj"] + params["bproj"][0]

    yw = ao.reshape(-1, WS, WS, C)
    y = jnp.roll(window_reverse(yw, WS, H, W),
                 shift=(SHIFT, SHIFT), axis=(1, 2)).reshape(B, L, C)
    x1 = shortcut + y
    m = ln(x1, params["g2"][0], params["b2"][0]) @ params["w1"] + params["bm1"][0]
    m = jax.nn.gelu(m, approximate=False) @ params["w2"] + params["bm2"][0]
    return x1 + m


# ------------------------- params & main -------------------------
def init_params(key):
    ks = jax.random.split(key, 10)
    s = 0.02
    params = {
        "g1": jnp.ones((1, C), jnp.float32),
        "b1": jnp.zeros((1, C), jnp.float32),
        "wqkv": jax.random.normal(ks[0], (C, 3 * C), jnp.float32) * s,
        "bqkv": jax.random.normal(ks[1], (1, 3 * C), jnp.float32) * s,
        "wproj": jax.random.normal(ks[2], (C, C), jnp.float32) * s,
        "bproj": jax.random.normal(ks[3], (1, C), jnp.float32) * s,
        "g2": jnp.ones((1, C), jnp.float32),
        "b2": jnp.zeros((1, C), jnp.float32),
        "w1": jax.random.normal(ks[4], (C, HIDDEN), jnp.float32) * s,
        "bm1": jax.random.normal(ks[5], (1, HIDDEN), jnp.float32) * s,
        "w2": jax.random.normal(ks[6], (HIDDEN, C), jnp.float32) * s,
        "bm2": jax.random.normal(ks[7], (1, C), jnp.float32) * s,
    }
    rel_table = jax.random.normal(
        ks[8], ((2 * WS - 1) * (2 * WS - 1), NUM_HEADS), jnp.float32) * s
    return params, rel_table, ks[9]


if __name__ == "__main__":
    key = jax.random.PRNGKey(0)
    params, rel_table, xkey = init_params(key)
    rel_bias = make_relative_position_bias(rel_table)       # (NUM_HEADS, N, N)
    attn_mask = make_attn_mask()                             # (NW, N, N)
    full_mask = make_full_bias_mask(rel_bias, attn_mask)     # (NUM_HEADS, L, L)

    x = jax.random.normal(xkey, (B, L, C), jnp.float32)      # (2, 64, 32)

    imgs_per_step = images_per_grid_step()
    fwd = jax.jit(functools.partial(
        swin_transformer_block_forward, params=params, full_mask=full_mask,
        imgs_per_step=imgs_per_step))
    out = jax.block_until_ready(fwd(x))

    ref = reference_forward(x, params, attn_mask, rel_bias)
    np.testing.assert_allclose(np.asarray(out), np.asarray(ref), rtol=2e-2, atol=2e-2)

    print("KERNEL_OK")
</pallas_src>

<mosaic_0001>
module attributes {stable_mosaic.version = 11 : i64} {
  func.func @swin_block_kernel(%arg0: i32, %arg1: memref<64x32xf32, #tpu.memory_space<vmem>>, %arg2: memref<4x64x64xf32, #tpu.memory_space<vmem>>, %arg3: memref<1x32xf32, #tpu.memory_space<vmem>>, %arg4: memref<1x32xf32, #tpu.memory_space<vmem>>, %arg5: memref<32x96xbf16, #tpu.memory_space<vmem>>, %arg6: memref<1x96xf32, #tpu.memory_space<vmem>>, %arg7: memref<4x8x32xbf16, #tpu.memory_space<vmem>>, %arg8: memref<1x32xf32, #tpu.memory_space<vmem>>, %arg9: memref<1x32xf32, #tpu.memory_space<vmem>>, %arg10: memref<1x32xf32, #tpu.memory_space<vmem>>, %arg11: memref<32x128xbf16, #tpu.memory_space<vmem>>, %arg12: memref<1x128xf32, #tpu.memory_space<vmem>>, %arg13: memref<128x32xbf16, #tpu.memory_space<vmem>>, %arg14: memref<1x32xf32, #tpu.memory_space<vmem>>, %arg15: memref<64x32xf32, #tpu.memory_space<vmem>>) attributes {dimension_semantics = [#tpu.dimension_semantics<parallel>], iteration_bounds = array<i64: 2>, scalar_prefetch = 0 : i64, scratch_operands = 0 : i64, tpu.core_type = #tpu.core_type<tc>, window_params = [{transform_indices = @transform_0, window_bounds = array<i64: 64, 32>}, {pipeline_mode = #tpu.pipeline_mode<synchronous>, transform_indices = @transform_1, window_bounds = array<i64: 4, 64, 64>}, {pipeline_mode = #tpu.pipeline_mode<synchronous>, transform_indices = @transform_2, window_bounds = array<i64: 1, 32>}, {pipeline_mode = #tpu.pipeline_mode<synchronous>, transform_indices = @transform_3, window_bounds = array<i64: 1, 32>}, {pipeline_mode = #tpu.pipeline_mode<synchronous>, transform_indices = @transform_4, window_bounds = array<i64: 32, 96>}, {pipeline_mode = #tpu.pipeline_mode<synchronous>, transform_indices = @transform_5, window_bounds = array<i64: 1, 96>}, {pipeline_mode = #tpu.pipeline_mode<synchronous>, transform_indices = @transform_6, window_bounds = array<i64: 4, 8, 32>}, {pipeline_mode = #tpu.pipeline_mode<synchronous>, transform_indices = @transform_7, window_bounds = array<i64: 1, 32>}, {pipeline_mode = #tpu.pipeline_mode<synchronous>, transform_indices = @transform_8, window_bounds = array<i64: 1, 32>}, {pipeline_mode = #tpu.pipeline_mode<synchronous>, transform_indices = @transform_9, window_bounds = array<i64: 1, 32>}, {pipeline_mode = #tpu.pipeline_mode<synchronous>, transform_indices = @transform_10, window_bounds = array<i64: 32, 128>}, {pipeline_mode = #tpu.pipeline_mode<synchronous>, transform_indices = @transform_11, window_bounds = array<i64: 1, 128>}, {pipeline_mode = #tpu.pipeline_mode<synchronous>, transform_indices = @transform_12, window_bounds = array<i64: 128, 32>}, {pipeline_mode = #tpu.pipeline_mode<synchronous>, transform_indices = @transform_13, window_bounds = array<i64: 1, 32>}, {transform_indices = @transform_14, window_bounds = array<i64: 64, 32>}]} {
    %c0 = arith.constant 0 : index
    %c0_0 = arith.constant 0 : index
    %0 = vector.load %arg1[%c0, %c0_0] : memref<64x32xf32, #tpu.memory_space<vmem>>, vector<64x32xf32>
    %cst = arith.constant dense<0.000000e+00> : vector<64xf32>
    %1 = vector.multi_reduction <add>, %0, %cst [1] : vector<64x32xf32> to vector<64xf32>
    %2 = vector.shape_cast %1 : vector<64xf32> to vector<64x1xf32>
    %cst_1 = arith.constant 3.200000e+01 : f32
    %3 = vector.broadcast %cst_1 : f32 to vector<64x1xf32>
    %4 = arith.divf %2, %3 : vector<64x1xf32>
    %5 = vector.broadcast %4 : vector<64x1xf32> to vector<64x32xf32>
    %6 = arith.subf %0, %5 : vector<64x32xf32>
    %7 = arith.mulf %6, %6 : vector<64x32xf32>
    %cst_2 = arith.constant dense<0.000000e+00> : vector<64xf32>
    %8 = vector.multi_reduction <add>, %7, %cst_2 [1] : vector<64x32xf32> to vector<64xf32>
    %9 = vector.shape_cast %8 : vector<64xf32> to vector<64x1xf32>
    %cst_3 = arith.constant 3.200000e+01 : f32
    %10 = vector.broadcast %cst_3 : f32 to vector<64x1xf32>
    %11 = arith.divf %9, %10 : vector<64x1xf32>
    %12 = vector.broadcast %4 : vector<64x1xf32> to vector<64x32xf32>
    %13 = arith.subf %0, %12 : vector<64x32xf32>
    %cst_4 = arith.constant 9.99999974E-6 : f32
    %14 = vector.broadcast %cst_4 : f32 to vector<64x1xf32>
    %15 = arith.addf %11, %14 : vector<64x1xf32>
    %16 = math.rsqrt %15 : vector<64x1xf32>
    %17 = vector.broadcast %16 : vector<64x1xf32> to vector<64x32xf32>
    %18 = arith.mulf %13, %17 : vector<64x32xf32>
    %c0_5 = arith.constant 0 : index
    %c0_6 = arith.constant 0 : index
    %19 = vector.load %arg3[%c0_5, %c0_6] : memref<1x32xf32, #tpu.memory_space<vmem>>, vector<1x32xf32>
    %20 = vector.shape_cast %19 : vector<1x32xf32> to vector<32xf32>
    %21 = vector.shape_cast %20 : vector<32xf32> to vector<1x32xf32>
    %22 = vector.broadcast %21 : vector<1x32xf32> to vector<64x32xf32>
    %23 = arith.mulf %18, %22 : vector<64x32xf32>
    %c0_7 = arith.constant 0 : index
    %c0_8 = arith.constant 0 : index
    %24 = vector.load %arg4[%c0_7, %c0_8] : memref<1x32xf32, #tpu.memory_space<vmem>>, vector<1x32xf32>
    %25 = vector.shape_cast %24 : vector<1x32xf32> to vector<32xf32>
    %26 = vector.shape_cast %25 : vector<32xf32> to vector<1x32xf32>
    %27 = vector.broadcast %26 : vector<1x32xf32> to vector<64x32xf32>
    %28 = arith.addf %23, %27 : vector<64x32xf32>
    %29 = arith.truncf %28 : vector<64x32xf32> to vector<64x32xbf16>
    %c0_9 = arith.constant 0 : index
    %c0_10 = arith.constant 0 : index
    %30 = vector.load %arg5[%c0_9, %c0_10] : memref<32x96xbf16, #tpu.memory_space<vmem>>, vector<32x96xbf16>
    %cst_11 = arith.constant dense<0.000000e+00> : vector<64x96xf32>
    %31 = tpu.matmul %29, %30, %cst_11 {dimension_numbers = #tpu.dot_dimension_numbers<[1], [0], [0], [1], [0, 0, 1, 1], [], []>} : vector<64x32xbf16>, vector<32x96xbf16>, vector<64x96xf32> -> vector<64x96xf32>
    %c0_12 = arith.constant 0 : index
    %c0_13 = arith.constant 0 : index
    %32 = vector.load %arg6[%c0_12, %c0_13] : memref<1x96xf32, #tpu.memory_space<vmem>>, vector<1x96xf32>
    %33 = vector.shape_cast %32 : vector<1x96xf32> to vector<96xf32>
    %34 = vector.shape_cast %33 : vector<96xf32> to vector<1x96xf32>
    %35 = vector.broadcast %34 : vector<1x96xf32> to vector<64x96xf32>
    %36 = arith.addf %31, %35 : vector<64x96xf32>
    %37 = vector.extract_strided_slice %36 {offsets = [0, 0], sizes = [64, 32], strides = [1, 1]} : vector<64x96xf32> to vector<64x32xf32>
    %cst_14 = arith.constant 0.353553385 : f32
    %38 = vector.broadcast %cst_14 : f32 to vector<64x32xf32>
    %39 = arith.mulf %37, %38 : vector<64x32xf32>
    %40 = vector.extract_strided_slice %36 {offsets = [0, 32], sizes = [64, 32], strides = [1, 1]} : vector<64x96xf32> to vector<64x32xf32>
    %41 = vector.extract_strided_slice %36 {offsets = [0, 64], sizes = [64, 32], strides = [1, 1]} : vector<64x96xf32> to vector<64x32xf32>
    %42 = vector.extract_strided_slice %39 {offsets = [0, 0], sizes = [64, 8], strides = [1, 1]} : vector<64x32xf32> to vector<64x8xf32>
    %43 = vector.shape_cast %42 : vector<64x8xf32> to vector<1x64x8xf32>
    %44 = arith.truncf %43 : vector<1x64x8xf32> to vector<1x64x8xbf16>
    %45 = vector.extract_strided_slice %40 {offsets = [0, 0], sizes = [64, 8], strides = [1, 1]} : vector<64x32xf32> to vector<64x8xf32>
    %46 = vector.shape_cast %45 : vector<64x8xf32> to vector<1x64x8xf32>
    %47 = arith.truncf %46 : vector<1x64x8xf32> to vector<1x64x8xbf16>
    %48 = vector.extract_strided_slice %41 {offsets = [0, 0], sizes = [64, 8], strides = [1, 1]} : vector<64x32xf32> to vector<64x8xf32>
    %49 = vector.shape_cast %48 : vector<64x8xf32> to vector<1x64x8xf32>
    %50 = arith.truncf %49 : vector<1x64x8xf32> to vector<1x64x8xbf16>
    "tpu.trace_start"() <{level = 10 : i32, message = "iqd,ikd->iqk"}> : () -> ()
    %cst_15 = arith.constant dense<0.000000e+00> : vector<1x64x64xf32>
    %51 = tpu.matmul %44, %47, %cst_15 {dimension_numbers = #tpu.dot_dimension_numbers<[2], [2], [1], [1], [0, 0, 0, 1, 1, 1], [0], [0]>} : vector<1x64x8xbf16>, vector<1x64x8xbf16>, vector<1x64x64xf32> -> vector<1x64x64xf32>
    "tpu.trace_stop"() : () -> ()
    %c0_16 = arith.constant 0 : index
    %c0_17 = arith.constant 0 : index
    %c0_18 = arith.constant 0 : index
    %52 = vector.load %arg2[%c0_16, %c0_17, %c0_18] : memref<4x64x64xf32, #tpu.memory_space<vmem>>, vector<1x64x64xf32>
    %53 = vector.shape_cast %52 : vector<1x64x64xf32> to vector<64x64xf32>
    %54 = vector.shape_cast %53 : vector<64x64xf32> to vector<1x64x64xf32>
    %55 = arith.addf %51, %54 : vector<1x64x64xf32>
    %cst_19 = arith.constant dense<0xFF800000> : vector<1x64xf32>
    %56 = vector.multi_reduction <maximumf>, %55, %cst_19 [2] : vector<1x64x64xf32> to vector<1x64xf32>
    %57 = vector.shape_cast %56 : vector<1x64xf32> to vector<1x64x1xf32>
    %58 = vector.broadcast %57 : vector<1x64x1xf32> to vector<1x64x64xf32>
    %59 = arith.subf %55, %58 : vector<1x64x64xf32>
    %60 = math.exp %59 : vector<1x64x64xf32>
    %cst_20 = arith.constant dense<0.000000e+00> : vector<1x64xf32>
    %61 = vector.multi_reduction <add>, %60, %cst_20 [2] : vector<1x64x64xf32> to vector<1x64xf32>
    %62 = vector.shape_cast %61 : vector<1x64xf32> to vector<1x64x1xf32>
    %63 = vector.broadcast %62 : vector<1x64x1xf32> to vector<1x64x64xf32>
    %64 = arith.divf %60, %63 : vector<1x64x64xf32>
    %65 = arith.truncf %64 : vector<1x64x64xf32> to vector<1x64x64xbf16>
    "tpu.trace_start"() <{level = 10 : i32, message = "iqk,ikd->iqd"}> : () -> ()
    %cst_21 = arith.constant dense<0.000000e+00> : vector<1x64x8xf32>
    %66 = tpu.matmul %65, %50, %cst_21 {dimension_numbers = #tpu.dot_dimension_numbers<[2], [1], [1], [2], [0, 0, 0, 1, 1, 2], [0], [0]>} : vector<1x64x64xbf16>, vector<1x64x8xbf16>, vector<1x64x8xf32> -> vector<1x64x8xf32>
    "tpu.trace_stop"() : () -> ()
    %67 = vector.shape_cast %66 : vector<1x64x8xf32> to vector<64x8xf32>
    %68 = arith.truncf %67 : vector<64x8xf32> to vector<64x8xbf16>
    %c0_22 = arith.constant 0 : index
    %c0_23 = arith.constant 0 : index
    %c0_24 = arith.constant 0 : index
    %69 = vector.load %arg7[%c0_22, %c0_23, %c0_24] : memref<4x8x32xbf16, #tpu.memory_space<vmem>>, vector<1x8x32xbf16>
    %70 = vector.shape_cast %69 : vector<1x8x32xbf16> to vector<8x32xbf16>
    %cst_25 = arith.constant dense<0.000000e+00> : vector<64x32xf32>
    %71 = tpu.matmul %68, %70, %cst_25 {dimension_numbers = #tpu.dot_dimension_numbers<[1], [0], [0], [1], [0, 0, 1, 1], [], []>} : vector<64x8xbf16>, vector<8x32xbf16>, vector<64x32xf32> -> vector<64x32xf32>
    %72 = vector.extract_strided_slice %39 {offsets = [0, 8], sizes = [64, 8], strides = [1, 1]} : vector<64x32xf32> to vector<64x8xf32>
    %73 = vector.shape_cast %72 : vector<64x8xf32> to vector<1x64x8xf32>
    %74 = arith.truncf %73 : vector<1x64x8xf32> to vector<1x64x8xbf16>
    %75 = vector.extract_strided_slice %40 {offsets = [0, 8], sizes = [64, 8], strides = [1, 1]} : vector<64x32xf32> to vector<64x8xf32>
    %76 = vector.shape_cast %75 : vector<64x8xf32> to vector<1x64x8xf32>
    %77 = arith.truncf %76 : vector<1x64x8xf32> to vector<1x64x8xbf16>
    %78 = vector.extract_strided_slice %41 {offsets = [0, 8], sizes = [64, 8], strides = [1, 1]} : vector<64x32xf32> to vector<64x8xf32>
    %79 = vector.shape_cast %78 : vector<64x8xf32> to vector<1x64x8xf32>
    %80 = arith.truncf %79 : vector<1x64x8xf32> to vector<1x64x8xbf16>
    "tpu.trace_start"() <{level = 10 : i32, message = "iqd,ikd->iqk"}> : () -> ()
    %cst_26 = arith.constant dense<0.000000e+00> : vector<1x64x64xf32>
    %81 = tpu.matmul %74, %77, %cst_26 {dimension_numbers = #tpu.dot_dimension_numbers<[2], [2], [1], [1], [0, 0, 0, 1, 1, 1], [0], [0]>} : vector<1x64x8xbf16>, vector<1x64x8xbf16>, vector<1x64x64xf32> -> vector<1x64x64xf32>
    "tpu.trace_stop"() : () -> ()
    %c1 = arith.constant 1 : index
    %c0_27 = arith.constant 0 : index
    %c0_28 = arith.constant 0 : index
    %82 = vector.load %arg2[%c1, %c0_27, %c0_28] : memref<4x64x64xf32, #tpu.memory_space<vmem>>, vector<1x64x64xf32>
    %83 = vector.shape_cast %82 : vector<1x64x64xf32> to vector<64x64xf32>
    %84 = vector.shape_cast %83 : vector<64x64xf32> to vector<1x64x64xf32>
    %85 = arith.addf %81, %84 : vector<1x64x64xf32>
    %cst_29 = arith.constant dense<0xFF800000> : vector<1x64xf32>
    %86 = vector.multi_reduction <maximumf>, %85, %cst_29 [2] : vector<1x64x64xf32> to vector<1x64xf32>
    %87 = vector.shape_cast %86 : vector<1x64xf32> to vector<1x64x1xf32>
    %88 = vector.broadcast %87 : vector<1x64x1xf32> to vector<1x64x64xf32>
    %89 = arith.subf %85, %88 : vector<1x64x64xf32>
    %90 = math.exp %89 : vector<1x64x64xf32>
    %cst_30 = arith.constant dense<0.000000e+00> : vector<1x64xf32>
    %91 = vector.multi_reduction <add>, %90, %cst_30 [2] : vector<1x64x64xf32> to vector<1x64xf32>
    %92 = vector.shape_cast %91 : vector<1x64xf32> to vector<1x64x1xf32>
    %93 = vector.broadcast %92 : vector<1x64x1xf32> to vector<1x64x64xf32>
    %94 = arith.divf %90, %93 : vector<1x64x64xf32>
    %95 = arith.truncf %94 : vector<1x64x64xf32> to vector<1x64x64xbf16>
    "tpu.trace_start"() <{level = 10 : i32, message = "iqk,ikd->iqd"}> : () -> ()
    %cst_31 = arith.constant dense<0.000000e+00> : vector<1x64x8xf32>
    %96 = tpu.matmul %95, %80, %cst_31 {dimension_numbers = #tpu.dot_dimension_numbers<[2], [1], [1], [2], [0, 0, 0, 1, 1, 2], [0], [0]>} : vector<1x64x64xbf16>, vector<1x64x8xbf16>, vector<1x64x8xf32> -> vector<1x64x8xf32>
    "tpu.trace_stop"() : () -> ()
    %97 = vector.shape_cast %96 : vector<1x64x8xf32> to vector<64x8xf32>
    %98 = arith.truncf %97 : vector<64x8xf32> to vector<64x8xbf16>
    %c1_32 = arith.constant 1 : index
    %c0_33 = arith.constant 0 : index
    %c0_34 = arith.constant 0 : index
    %99 = vector.load %arg7[%c1_32, %c0_33, %c0_34] : memref<4x8x32xbf16, #tpu.memory_space<vmem>>, vector<1x8x32xbf16>
    %100 = vector.shape_cast %99 : vector<1x8x32xbf16> to vector<8x32xbf16>
    %cst_35 = arith.constant dense<0.000000e+00> : vector<64x32xf32>
    %101 = tpu.matmul %98, %100, %cst_35 {dimension_numbers = #tpu.dot_dimension_numbers<[1], [0], [0], [1], [0, 0, 1, 1], [], []>} : vector<64x8xbf16>, vector<8x32xbf16>, vector<64x32xf32> -> vector<64x32xf32>
    %102 = arith.addf %71, %101 : vector<64x32xf32>
    %103 = vector.extract_strided_slice %39 {offsets = [0, 16], sizes = [64, 8], strides = [1, 1]} : vector<64x32xf32> to vector<64x8xf32>
    %104 = vector.shape_cast %103 : vector<64x8xf32> to vector<1x64x8xf32>
    %105 = arith.truncf %104 : vector<1x64x8xf32> to vector<1x64x8xbf16>
    %106 = vector.extract_strided_slice %40 {offsets = [0, 16], sizes = [64, 8], strides = [1, 1]} : vector<64x32xf32> to vector<64x8xf32>
    %107 = vector.shape_cast %106 : vector<64x8xf32> to vector<1x64x8xf32>
    %108 = arith.truncf %107 : vector<1x64x8xf32> to vector<1x64x8xbf16>
    %109 = vector.extract_strided_slice %41 {offsets = [0, 16], sizes = [64, 8], strides = [1, 1]} : vector<64x32xf32> to vector<64x8xf32>
    %110 = vector.shape_cast %109 : vector<64x8xf32> to vector<1x64x8xf32>
    %111 = arith.truncf %110 : vector<1x64x8xf32> to vector<1x64x8xbf16>
    "tpu.trace_start"() <{level = 10 : i32, message = "iqd,ikd->iqk"}> : () -> ()
    %cst_36 = arith.constant dense<0.000000e+00> : vector<1x64x64xf32>
    %112 = tpu.matmul %105, %108, %cst_36 {dimension_numbers = #tpu.dot_dimension_numbers<[2], [2], [1], [1], [0, 0, 0, 1, 1, 1], [0], [0]>} : vector<1x64x8xbf16>, vector<1x64x8xbf16>, vector<1x64x64xf32> -> vector<1x64x64xf32>
    "tpu.trace_stop"() : () -> ()
    %c2 = arith.constant 2 : index
    %c0_37 = arith.constant 0 : index
    %c0_38 = arith.constant 0 : index
    %113 = vector.load %arg2[%c2, %c0_37, %c0_38] : memref<4x64x64xf32, #tpu.memory_space<vmem>>, vector<1x64x64xf32>
    %114 = vector.shape_cast %113 : vector<1x64x64xf32> to vector<64x64xf32>
    %115 = vector.shape_cast %114 : vector<64x64xf32> to vector<1x64x64xf32>
    %116 = arith.addf %112, %115 : vector<1x64x64xf32>
    %cst_39 = arith.constant dense<0xFF800000> : vector<1x64xf32>
    %117 = vector.multi_reduction <maximumf>, %116, %cst_39 [2] : vector<1x64x64xf32> to vector<1x64xf32>
    %118 = vector.shape_cast %117 : vector<1x64xf32> to vector<1x64x1xf32>
    %119 = vector.broadcast %118 : vector<1x64x1xf32> to vector<1x64x64xf32>
    %120 = arith.subf %116, %119 : vector<1x64x64xf32>
    %121 = math.exp %120 : vector<1x64x64xf32>
    %cst_40 = arith.constant dense<0.000000e+00> : vector<1x64xf32>
    %122 = vector.multi_reduction <add>, %121, %cst_40 [2] : vector<1x64x64xf32> to vector<1x64xf32>
    %123 = vector.shape_cast %122 : vector<1x64xf32> to vector<1x64x1xf32>
    %124 = vector.broadcast %123 : vector<1x64x1xf32> to vector<1x64x64xf32>
    %125 = arith.divf %121, %124 : vector<1x64x64xf32>
    %126 = arith.truncf %125 : vector<1x64x64xf32> to vector<1x64x64xbf16>
    "tpu.trace_start"() <{level = 10 : i32, message = "iqk,ikd->iqd"}> : () -> ()
    %cst_41 = arith.constant dense<0.000000e+00> : vector<1x64x8xf32>
    %127 = tpu.matmul %126, %111, %cst_41 {dimension_numbers = #tpu.dot_dimension_numbers<[2], [1], [1], [2], [0, 0, 0, 1, 1, 2], [0], [0]>} : vector<1x64x64xbf16>, vector<1x64x8xbf16>, vector<1x64x8xf32> -> vector<1x64x8xf32>
    "tpu.trace_stop"() : () -> ()
    %128 = vector.shape_cast %127 : vector<1x64x8xf32> to vector<64x8xf32>
    %129 = arith.truncf %128 : vector<64x8xf32> to vector<64x8xbf16>
    %c2_42 = arith.constant 2 : index
    %c0_43 = arith.constant 0 : index
    %c0_44 = arith.constant 0 : index
    %130 = vector.load %arg7[%c2_42, %c0_43, %c0_44] : memref<4x8x32xbf16, #tpu.memory_space<vmem>>, vector<1x8x32xbf16>
    %131 = vector.shape_cast %130 : vector<1x8x32xbf16> to vector<8x32xbf16>
    %cst_45 = arith.constant dense<0.000000e+00> : vector<64x32xf32>
    %132 = tpu.matmul %129, %131, %cst_45 {dimension_numbers = #tpu.dot_dimension_numbers<[1], [0], [0], [1], [0, 0, 1, 1], [], []>} : vector<64x8xbf16>, vector<8x32xbf16>, vector<64x32xf32> -> vector<64x32xf32>
    %133 = arith.addf %102, %132 : vector<64x32xf32>
    %134 = vector.extract_strided_slice %39 {offsets = [0, 24], sizes = [64, 8], strides = [1, 1]} : vector<64x32xf32> to vector<64x8xf32>
    %135 = vector.shape_cast %134 : vector<64x8xf32> to vector<1x64x8xf32>
    %136 = arith.truncf %135 : vector<1x64x8xf32> to vector<1x64x8xbf16>
    %137 = vector.extract_strided_slice %40 {offsets = [0, 24], sizes = [64, 8], strides = [1, 1]} : vector<64x32xf32> to vector<64x8xf32>
    %138 = vector.shape_cast %137 : vector<64x8xf32> to vector<1x64x8xf32>
    %139 = arith.truncf %138 : vector<1x64x8xf32> to vector<1x64x8xbf16>
    %140 = vector.extract_strided_slice %41 {offsets = [0, 24], sizes = [64, 8], strides = [1, 1]} : vector<64x32xf32> to vector<64x8xf32>
    %141 = vector.shape_cast %140 : vector<64x8xf32> to vector<1x64x8xf32>
    %142 = arith.truncf %141 : vector<1x64x8xf32> to vector<1x64x8xbf16>
    "tpu.trace_start"() <{level = 10 : i32, message = "iqd,ikd->iqk"}> : () -> ()
    %cst_46 = arith.constant dense<0.000000e+00> : vector<1x64x64xf32>
    %143 = tpu.matmul %136, %139, %cst_46 {dimension_numbers = #tpu.dot_dimension_numbers<[2], [2], [1], [1], [0, 0, 0, 1, 1, 1], [0], [0]>} : vector<1x64x8xbf16>, vector<1x64x8xbf16>, vector<1x64x64xf32> -> vector<1x64x64xf32>
    "tpu.trace_stop"() : () -> ()
    %c3 = arith.constant 3 : index
    %c0_47 = arith.constant 0 : index
    %c0_48 = arith.constant 0 : index
    %144 = vector.load %arg2[%c3, %c0_47, %c0_48] : memref<4x64x64xf32, #tpu.memory_space<vmem>>, vector<1x64x64xf32>
    %145 = vector.shape_cast %144 : vector<1x64x64xf32> to vector<64x64xf32>
    %146 = vector.shape_cast %145 : vector<64x64xf32> to vector<1x64x64xf32>
    %147 = arith.addf %143, %146 : vector<1x64x64xf32>
    %cst_49 = arith.constant dense<0xFF800000> : vector<1x64xf32>
    %148 = vector.multi_reduction <maximumf>, %147, %cst_49 [2] : vector<1x64x64xf32> to vector<1x64xf32>
    %149 = vector.shape_cast %148 : vector<1x64xf32> to vector<1x64x1xf32>
    %150 = vector.broadcast %149 : vector<1x64x1xf32> to vector<1x64x64xf32>
    %151 = arith.subf %147, %150 : vector<1x64x64xf32>
    %152 = math.exp %151 : vector<1x64x64xf32>
    %cst_50 = arith.constant dense<0.000000e+00> : vector<1x64xf32>
    %153 = vector.multi_reduction <add>, %152, %cst_50 [2] : vector<1x64x64xf32> to vector<1x64xf32>
    %154 = vector.shape_cast %153 : vector<1x64xf32> to vector<1x64x1xf32>
    %155 = vector.broadcast %154 : vector<1x64x1xf32> to vector<1x64x64xf32>
    %156 = arith.divf %152, %155 : vector<1x64x64xf32>
    %157 = arith.truncf %156 : vector<1x64x64xf32> to vector<1x64x64xbf16>
    "tpu.trace_start"() <{level = 10 : i32, message = "iqk,ikd->iqd"}> : () -> ()
    %cst_51 = arith.constant dense<0.000000e+00> : vector<1x64x8xf32>
    %158 = tpu.matmul %157, %142, %cst_51 {dimension_numbers = #tpu.dot_dimension_numbers<[2], [1], [1], [2], [0, 0, 0, 1, 1, 2], [0], [0]>} : vector<1x64x64xbf16>, vector<1x64x8xbf16>, vector<1x64x8xf32> -> vector<1x64x8xf32>
    "tpu.trace_stop"() : () -> ()
    %159 = vector.shape_cast %158 : vector<1x64x8xf32> to vector<64x8xf32>
    %160 = arith.truncf %159 : vector<64x8xf32> to vector<64x8xbf16>
    %c3_52 = arith.constant 3 : index
    %c0_53 = arith.constant 0 : index
    %c0_54 = arith.constant 0 : index
    %161 = vector.load %arg7[%c3_52, %c0_53, %c0_54] : memref<4x8x32xbf16, #tpu.memory_space<vmem>>, vector<1x8x32xbf16>
    %162 = vector.shape_cast %161 : vector<1x8x32xbf16> to vector<8x32xbf16>
    %cst_55 = arith.constant dense<0.000000e+00> : vector<64x32xf32>
    %163 = tpu.matmul %160, %162, %cst_55 {dimension_numbers = #tpu.dot_dimension_numbers<[1], [0], [0], [1], [0, 0, 1, 1], [], []>} : vector<64x8xbf16>, vector<8x32xbf16>, vector<64x32xf32> -> vector<64x32xf32>
    %164 = arith.addf %133, %163 : vector<64x32xf32>
    %c0_56 = arith.constant 0 : index
    %c0_57 = arith.constant 0 : index
    %165 = vector.load %arg8[%c0_56, %c0_57] : memref<1x32xf32, #tpu.memory_space<vmem>>, vector<1x32xf32>
    %166 = vector.shape_cast %165 : vector<1x32xf32> to vector<32xf32>
    %167 = vector.shape_cast %166 : vector<32xf32> to vector<1x32xf32>
    %168 = vector.broadcast %167 : vector<1x32xf32> to vector<64x32xf32>
    %169 = arith.addf %164, %168 : vector<64x32xf32>
    %170 = arith.addf %0, %169 : vector<64x32xf32>
    %cst_58 = arith.constant dense<0.000000e+00> : vector<64xf32>
    %171 = vector.multi_reduction <add>, %170, %cst_58 [1] : vector<64x32xf32> to vector<64xf32>
    %172 = vector.shape_cast %171 : vector<64xf32> to vector<64x1xf32>
    %cst_59 = arith.constant 3.200000e+01 : f32
    %173 = vector.broadcast %cst_59 : f32 to vector<64x1xf32>
    %174 = arith.divf %172, %173 : vector<64x1xf32>
    %175 = vector.broadcast %174 : vector<64x1xf32> to vector<64x32xf32>
    %176 = arith.subf %170, %175 : vector<64x32xf32>
    %177 = arith.mulf %176, %176 : vector<64x32xf32>
    %cst_60 = arith.constant dense<0.000000e+00> : vector<64xf32>
    %178 = vector.multi_reduction <add>, %177, %cst_60 [1] : vector<64x32xf32> to vector<64xf32>
    %179 = vector.shape_cast %178 : vector<64xf32> to vector<64x1xf32>
    %cst_61 = arith.constant 3.200000e+01 : f32
    %180 = vector.broadcast %cst_61 : f32 to vector<64x1xf32>
    %181 = arith.divf %179, %180 : vector<64x1xf32>
    %182 = vector.broadcast %174 : vector<64x1xf32> to vector<64x32xf32>
    %183 = arith.subf %170, %182 : vector<64x32xf32>
    %cst_62 = arith.constant 9.99999974E-6 : f32
    %184 = vector.broadcast %cst_62 : f32 to vector<64x1xf32>
    %185 = arith.addf %181, %184 : vector<64x1xf32>
    %186 = math.rsqrt %185 : vector<64x1xf32>
    %187 = vector.broadcast %186 : vector<64x1xf32> to vector<64x32xf32>
    %188 = arith.mulf %183, %187 : vector<64x32xf32>
    %c0_63 = arith.constant 0 : index
    %c0_64 = arith.constant 0 : index
    %189 = vector.load %arg9[%c0_63, %c0_64] : memref<1x32xf32, #tpu.memory_space<vmem>>, vector<1x32xf32>
    %190 = vector.shape_cast %189 : vector<1x32xf32> to vector<32xf32>
    %191 = vector.shape_cast %190 : vector<32xf32> to vector<1x32xf32>
    %192 = vector.broadcast %191 : vector<1x32xf32> to vector<64x32xf32>
    %193 = arith.mulf %188, %192 : vector<64x32xf32>
    %c0_65 = arith.constant 0 : index
    %c0_66 = arith.constant 0 : index
    %194 = vector.load %arg10[%c0_65, %c0_66] : memref<1x32xf32, #tpu.memory_space<vmem>>, vector<1x32xf32>
    %195 = vector.shape_cast %194 : vector<1x32xf32> to vector<32xf32>
    %196 = vector.shape_cast %195 : vector<32xf32> to vector<1x32xf32>
    %197 = vector.broadcast %196 : vector<1x32xf32> to vector<64x32xf32>
    %198 = arith.addf %193, %197 : vector<64x32xf32>
    %199 = arith.truncf %198 : vector<64x32xf32> to vector<64x32xbf16>
    %c0_67 = arith.constant 0 : index
    %c0_68 = arith.constant 0 : index
    %200 = vector.load %arg11[%c0_67, %c0_68] : memref<32x128xbf16, #tpu.memory_space<vmem>>, vector<32x128xbf16>
    %cst_69 = arith.constant dense<0.000000e+00> : vector<64x128xf32>
    %201 = tpu.matmul %199, %200, %cst_69 {dimension_numbers = #tpu.dot_dimension_numbers<[1], [0], [0], [1], [0, 0, 1, 1], [], []>} : vector<64x32xbf16>, vector<32x128xbf16>, vector<64x128xf32> -> vector<64x128xf32>
    %c0_70 = arith.constant 0 : index
    %c0_71 = arith.constant 0 : index
    %202 = vector.load %arg12[%c0_70, %c0_71] : memref<1x128xf32, #tpu.memory_space<vmem>>, vector<1x128xf32>
    %203 = vector.shape_cast %202 : vector<1x128xf32> to vector<128xf32>
    %204 = vector.shape_cast %203 : vector<128xf32> to vector<1x128xf32>
    %205 = vector.broadcast %204 : vector<1x128xf32> to vector<64x128xf32>
    %206 = arith.addf %201, %205 : vector<64x128xf32>
    %207 = arith.mulf %206, %206 : vector<64x128xf32>
    %208 = arith.mulf %206, %207 : vector<64x128xf32>
    %cst_72 = arith.constant 4.471500e-02 : f32
    %209 = vector.broadcast %cst_72 : f32 to vector<64x128xf32>
    %210 = arith.mulf %209, %208 : vector<64x128xf32>
    %211 = arith.addf %206, %210 : vector<64x128xf32>
    %cst_73 = arith.constant 0.797884583 : f32
    %212 = vector.broadcast %cst_73 : f32 to vector<64x128xf32>
    %213 = arith.mulf %212, %211 : vector<64x128xf32>
    %214 = math.tanh %213 : vector<64x128xf32>
    %cst_74 = arith.constant 1.000000e+00 : f32
    %215 = vector.broadcast %cst_74 : f32 to vector<64x128xf32>
    %216 = arith.addf %215, %214 : vector<64x128xf32>
    %cst_75 = arith.constant 5.000000e-01 : f32
    %217 = vector.broadcast %cst_75 : f32 to vector<64x128xf32>
    %218 = arith.mulf %217, %216 : vector<64x128xf32>
    %219 = arith.mulf %206, %218 : vector<64x128xf32>
    %220 = arith.truncf %219 : vector<64x128xf32> to vector<64x128xbf16>
    %c0_76 = arith.constant 0 : index
    %c0_77 = arith.constant 0 : index
    %221 = vector.load %arg13[%c0_76, %c0_77] : memref<128x32xbf16, #tpu.memory_space<vmem>>, vector<128x32xbf16>
    %cst_78 = arith.constant dense<0.000000e+00> : vector<64x32xf32>
    %222 = tpu.matmul %220, %221, %cst_78 {dimension_numbers = #tpu.dot_dimension_numbers<[1], [0], [0], [1], [0, 0, 1, 1], [], []>} : vector<64x128xbf16>, vector<128x32xbf16>, vector<64x32xf32> -> vector<64x32xf32>
    %c0_79 = arith.constant 0 : index
    %c0_80 = arith.constant 0 : index
    %223 = vector.load %arg14[%c0_79, %c0_80] : memref<1x32xf32, #tpu.memory_space<vmem>>, vector<1x32xf32>
    %224 = vector.shape_cast %223 : vector<1x32xf32> to vector<32xf32>
    %225 = vector.shape_cast %224 : vector<32xf32> to vector<1x32xf32>
    %226 = vector.broadcast %225 : vector<1x32xf32> to vector<64x32xf32>
    %227 = arith.addf %222, %226 : vector<64x32xf32>
    %228 = arith.addf %170, %227 : vector<64x32xf32>
    %c0_81 = arith.constant 0 : index
    %c0_82 = arith.constant 0 : index
    %229 = vector.load %arg15[%c0_81, %c0_82] : memref<64x32xf32, #tpu.memory_space<vmem>>, vector<64x32xf32>
    tpu.vector_store %arg15[%c0_81, %c0_82], %228 {strides = array<i32>} : memref<64x32xf32, #tpu.memory_space<vmem>>, vector<64x32xf32>,
    return
  }
  func.func @transform_0(%arg0: i32) -> (i32, i32) {
    %c0_i32 = arith.constant 0 : i32
    %c0_i32_0 = arith.constant 0 : i32
    return %arg0, %c0_i32 : i32, i32
  }
  func.func @transform_1(%arg0: i32) -> (i32, i32, i32) {
    %c0_i32 = arith.constant 0 : i32
    %c0_i32_0 = arith.constant 0 : i32
    %c0_i32_1 = arith.constant 0 : i32
    %c0_i32_2 = arith.constant 0 : i32
    return %c0_i32, %c0_i32_0, %c0_i32_1 : i32, i32, i32
  }
  func.func @transform_2(%arg0: i32) -> (i32, i32) {
    %c0_i32 = arith.constant 0 : i32
    %c0_i32_0 = arith.constant 0 : i32
    %c0_i32_1 = arith.constant 0 : i32
    return %c0_i32, %c0_i32_0 : i32, i32
  }
  func.func @transform_3(%arg0: i32) -> (i32, i32) {
    %c0_i32 = arith.constant 0 : i32
    %c0_i32_0 = arith.constant 0 : i32
    %c0_i32_1 = arith.constant 0 : i32
    return %c0_i32, %c0_i32_0 : i32, i32
  }
  func.func @transform_4(%arg0: i32) -> (i32, i32) {
    %c0_i32 = arith.constant 0 : i32
    %c0_i32_0 = arith.constant 0 : i32
    %c0_i32_1 = arith.constant 0 : i32
    return %c0_i32, %c0_i32_0 : i32, i32
  }
  func.func @transform_5(%arg0: i32) -> (i32, i32) {
    %c0_i32 = arith.constant 0 : i32
    %c0_i32_0 = arith.constant 0 : i32
    %c0_i32_1 = arith.constant 0 : i32
    return %c0_i32, %c0_i32_0 : i32, i32
  }
  func.func @transform_6(%arg0: i32) -> (i32, i32, i32) {
    %c0_i32 = arith.constant 0 : i32
    %c0_i32_0 = arith.constant 0 : i32
    %c0_i32_1 = arith.constant 0 : i32
    %c0_i32_2 = arith.constant 0 : i32
    return %c0_i32, %c0_i32_0, %c0_i32_1 : i32, i32, i32
  }
  func.func @transform_7(%arg0: i32) -> (i32, i32) {
    %c0_i32 = arith.constant 0 : i32
    %c0_i32_0 = arith.constant 0 : i32
    %c0_i32_1 = arith.constant 0 : i32
    return %c0_i32, %c0_i32_0 : i32, i32
  }
  func.func @transform_8(%arg0: i32) -> (i32, i32) {
    %c0_i32 = arith.constant 0 : i32
    %c0_i32_0 = arith.constant 0 : i32
    %c0_i32_1 = arith.constant 0 : i32
    return %c0_i32, %c0_i32_0 : i32, i32
  }
  func.func @transform_9(%arg0: i32) -> (i32, i32) {
    %c0_i32 = arith.constant 0 : i32
    %c0_i32_0 = arith.constant 0 : i32
    %c0_i32_1 = arith.constant 0 : i32
    return %c0_i32, %c0_i32_0 : i32, i32
  }
  func.func @transform_10(%arg0: i32) -> (i32, i32) {
    %c0_i32 = arith.constant 0 : i32
    %c0_i32_0 = arith.constant 0 : i32
    %c0_i32_1 = arith.constant 0 : i32
    return %c0_i32, %c0_i32_0 : i32, i32
  }
  func.func @transform_11(%arg0: i32) -> (i32, i32) {
    %c0_i32 = arith.constant 0 : i32
    %c0_i32_0 = arith.constant 0 : i32
    %c0_i32_1 = arith.constant 0 : i32
    return %c0_i32, %c0_i32_0 : i32, i32
  }
  func.func @transform_12(%arg0: i32) -> (i32, i32) {
    %c0_i32 = arith.constant 0 : i32
    %c0_i32_0 = arith.constant 0 : i32
    %c0_i32_1 = arith.constant 0 : i32
    return %c0_i32, %c0_i32_0 : i32, i32
  }
  func.func @transform_13(%arg0: i32) -> (i32, i32) {
    %c0_i32 = arith.constant 0 : i32
    %c0_i32_0 = arith.constant 0 : i32
    %c0_i32_1 = arith.constant 0 : i32
    return %c0_i32, %c0_i32_0 : i32, i32
  }
  func.func @transform_14(%arg0: i32) -> (i32, i32) {
    %c0_i32 = arith.constant 0 : i32
    %c0_i32_0 = arith.constant 0 : i32
    return %arg0, %c0_i32 : i32, i32
  }
}

</mosaic_0001>

<llo_original>
// kernel: swin_transformer_block_forward.1
$region0: #{swin_transformer_block_forward.1}
  #allocation0 [shape = 'u32[]', space=smem, size = 0x4, offset = 0x4, fixed_abs, tag = 'smem constant byte address 0x4 - core index']
  #allocation1 [shape = 'u32[72,128]{1,0:T(1,128)}', space=vmem, size = 0x9000, scoped, tag = 'internal scratch']
  %s0 = inlined_call_operand.vmem [shape: f32[128,32], index: 0, kind: input, shape index: {}]
  %s1 = inlined_call_operand.hbm [shape: f32[4,64,64], index: 1, kind: input, shape index: {}]
  %s2 = inlined_call_operand.vmem [shape: f32[1,32], index: 2, kind: input, shape index: {}, may-alias: {2,8}]
  %s3 = inlined_call_operand.vmem [shape: f32[1,32], index: 3, kind: input, shape index: {}, may-alias: {3,9}]
  %s4 = inlined_call_operand.vmem [shape: bf16[32,96], index: 4, kind: input, shape index: {}]
  %s5 = inlined_call_operand.vmem [shape: f32[1,96], index: 5, kind: input, shape index: {}]
  %s6 = inlined_call_operand.vmem [shape: bf16[4,8,32], index: 6, kind: input, shape index: {}]
  %s7 = inlined_call_operand.vmem [shape: f32[1,32], index: 7, kind: input, shape index: {}]
  %s8 = inlined_call_operand.vmem [shape: f32[1,32], index: 8, kind: input, shape index: {}, may-alias: {2,8}]
  %s9 = inlined_call_operand.vmem [shape: f32[1,32], index: 9, kind: input, shape index: {}, may-alias: {3,9}]
  %s10 = inlined_call_operand.vmem [shape: bf16[32,128], index: 10, kind: input, shape index: {}]
  %s11 = inlined_call_operand.vmem [shape: f32[1,128], index: 11, kind: input, shape index: {}]
  %s12 = inlined_call_operand.vmem [shape: bf16[128,32], index: 12, kind: input, shape index: {}]
  %s13 = inlined_call_operand.vmem [shape: f32[1,32], index: 13, kind: input, shape index: {}]
  %s14 = inlined_call_operand.vmem [shape: f32[128,32], index: 14, kind: output, shape index: {}]
  %s15 = sld [smem:[#allocation0]]
  $region93: #{swin_transformer_block_forward.1} parent=0
    _
  %s17 = ssub.s32 1, %s15
  %s18 = scalar_select 0, %s17, %s15
  $region1: #{swin_transformer_block_forward.1} parent=0
    #allocation2 [shape = 'u8[131072]{0}', space=vmem, size = 0x20000, scoped, tag = 'input window, operand 1, single buffered']
    #allocation3 [shape = 's32[2]{0}', space=sflag, size = 0x8, scoped, tag = 'scoped memory for swin_transformer_block_forward.1']
    %19 = vsyncpa [#allocation3], 0
    loop: start=0, step=1, limit=4
    $region2: #{swin_transformer_block_forward.1} parent=1 // loop_pre_header
      _
    $region3: #{swin_transformer_block_forward.1} parent=1 // loop_header
      %s21 = sphi 0, %s25
      %p22 = scmp.ge.s32.totalorder %s21, 4
      %s31 = sphi 0, %s33
      %s34 = sphi 0, %s31
      %s35 = sphi 0, %s34
      %s51 = sphi 0, %s35
      %s55 = sphi 0, %s55
      %s57 = sphi 0, %s55
      %s58 = sphi 0, %s57
      %s72 = sphi 0, %s58
      %s76 = sphi 0, %s76
      %s78 = sphi 0, %s76
      %s79 = sphi 0, %s78
      %s93 = sphi 0, %s79
      %s97 = sphi 0, %s97
      %s99 = sphi 0, %s97
      %s100 = sphi 0, %s99
      %s114 = sphi 0, %s100
      %s118 = sphi 0, %s118
      %s120 = sphi 0, %s118
      %s121 = sphi 0, %s120
      %s135 = sphi 0, %s121
      %s139 = sphi 0, %s139
      %s141 = sphi 0, %s139
      %s142 = sphi 0, %s141
      %s156 = sphi 0, %s142
      %s160 = sphi 0, %s160
      %s162 = sphi 0, %s160
      %s163 = sphi 0, %s162
      %s177 = sphi 0, %s163
      %s181 = sphi 0, %s181
      %s183 = sphi 0, %s181
      %s184 = sphi 0, %s183
      %s198 = sphi 0, %s184
      %s202 = sphi 0, %s202
      %s204 = sphi 0, %s202
      %s205 = sphi 0, %s204
      %s219 = sphi 0, %s205
      %s223 = sphi 0, %s223
      %s225 = sphi 0, %s223
      %s226 = sphi 0, %s225
      %s240 = sphi 0, %s226
      %s244 = sphi 0, %s244
      %s246 = sphi 0, %s244
      %s247 = sphi 0, %s246
      %s261 = sphi 0, %s247
      %s265 = sphi 0, %s265
      %s267 = sphi 0, %s265
      %s268 = sphi 0, %s267
      %s282 = sphi 0, %s268
      %s286 = sphi 0, %s286
      %s288 = sphi 0, %s286
      %s289 = sphi 0, %s288
      %s303 = sphi 0, %s289
      %s307 = sphi 0, %s307
      %s309 = sphi 0, %s307
      %s310 = sphi 0, %s309
      %s324 = sphi 0, %s310
      %s330 = sphi 0, %s332
      %s333 = sphi 0, %s330
      %s334 = sphi 0, %s333
      %s350 = sphi 0, %s334
    $region4: #{swin_transformer_block_forward.1} parent=1 // loop_header_branch
      %24 = sbr.rel (%p22) target = $region8
    $region5: #{swin_transformer_block_forward.1} parent=1 // loop_body
      %s26 = ssub.s32 %s21, 1
      %s27 = ssub.s32 %s21, 2
      %s28 = sadd.s32 %s21, 1
      %s29 = ssub.s32 %s21, %s28
      %p30 = scmp.eq.s32.totalorder %s29, 0
      %s32 = sadd.s32 %s31, 1
      %s33 = scalar_select %p30, %s31, %s32
      %p36 = pneg %p30
      %p37 = scmp.eq.s32.totalorder %s21, 1
      %p38 = por %p36, %p37
      %p39 = scmp.ne.s32.totalorder %s31, %s34
      %p40 = scmp.eq.s32.totalorder %s21, 0
      %p41 = por %p39, %p40
      %p42 = scmp.ne.s32.totalorder %s31, %s34
      %p43 = scmp.eq.s32.totalorder %s26, 1
      %p44 = por %p42, %p43
      %p45 = scmp.ne.s32.totalorder %s34, %s35
      %p46 = scmp.eq.s32.totalorder %s26, 0
      %p47 = por %p45, %p46
      %p48 = scmp.ne.s32.totalorder %s34, %s35
      %p49 = scmp.eq.s32.totalorder %s27, 1
      %p50 = por %p48, %p49
      %p52 = scmp.ne.s32.totalorder %s35, %s51
      %p53 = scmp.eq.s32.totalorder %s27, 0
      %p54 = por %p52, %p53
      %s56 = sadd.s32 %s55, 1
      %p59 = scmp.eq.s32.totalorder %s21, 1
      %p60 = scmp.ne.s32.totalorder %s55, %s57
      %p61 = scmp.eq.s32.totalorder %s21, 0
      %p62 = por %p60, %p61
      %p63 = scmp.ne.s32.totalorder %s55, %s57
      %p64 = scmp.eq.s32.totalorder %s26, 1
      %p65 = por %p63, %p64
      %p66 = scmp.ne.s32.totalorder %s57, %s58
      %p67 = scmp.eq.s32.totalorder %s26, 0
      %p68 = por %p66, %p67
      %p69 = scmp.ne.s32.totalorder %s57, %s58
      %p70 = scmp.eq.s32.totalorder %s27, 1
      %p71 = por %p69, %p70
      %p73 = scmp.ne.s32.totalorder %s58, %s72
      %p74 = scmp.eq.s32.totalorder %s27, 0
      %p75 = por %p73, %p74
      %s77 = sadd.s32 %s76, 1
      %p80 = scmp.eq.s32.totalorder %s21, 1
      %p81 = scmp.ne.s32.totalorder %s76, %s78
      %p82 = scmp.eq.s32.totalorder %s21, 0
      %p83 = por %p81, %p82
      %p84 = scmp.ne.s32.totalorder %s76, %s78
      %p85 = scmp.eq.s32.totalorder %s26, 1
      %p86 = por %p84, %p85
      %p87 = scmp.ne.s32.totalorder %s78, %s79
      %p88 = scmp.eq.s32.totalorder %s26, 0
      %p89 = por %p87, %p88
      %p90 = scmp.ne.s32.totalorder %s78, %s79
      %p91 = scmp.eq.s32.totalorder %s27, 1
      %p92 = por %p90, %p91
      %p94 = scmp.ne.s32.totalorder %s79, %s93
      %p95 = scmp.eq.s32.totalorder %s27, 0
      %p96 = por %p94, %p95
      %s98 = sadd.s32 %s97, 1
      %p101 = scmp.eq.s32.totalorder %s21, 1
      %p102 = scmp.ne.s32.totalorder %s97, %s99
      %p103 = scmp.eq.s32.totalorder %s21, 0
      %p104 = por %p102, %p103
      %p105 = scmp.ne.s32.totalorder %s97, %s99
      %p106 = scmp.eq.s32.totalorder %s26, 1
      %p107 = por %p105, %p106
      %p108 = scmp.ne.s32.totalorder %s99, %s100
      %p109 = scmp.eq.s32.totalorder %s26, 0
      %p110 = por %p108, %p109
      %p111 = scmp.ne.s32.totalorder %s99, %s100
      %p112 = scmp.eq.s32.totalorder %s27, 1
      %p113 = por %p111, %p112
      %p115 = scmp.ne.s32.totalorder %s100, %s114
      %p116 = scmp.eq.s32.totalorder %s27, 0
      %p117 = por %p115, %p116
      %s119 = sadd.s32 %s118, 1
      %p122 = scmp.eq.s32.totalorder %s21, 1
      %p123 = scmp.ne.s32.totalorder %s118, %s120
      %p124 = scmp.eq.s32.totalorder %s21, 0
      %p125 = por %p123, %p124
      %p126 = scmp.ne.s32.totalorder %s118, %s120
      %p127 = scmp.eq.s32.totalorder %s26, 1
      %p128 = por %p126, %p127
      %p129 = scmp.ne.s32.totalorder %s120, %s121
      %p130 = scmp.eq.s32.totalorder %s26, 0
      %p131 = por %p129, %p130
      %p132 = scmp.ne.s32.totalorder %s120, %s121
      %p133 = scmp.eq.s32.totalorder %s27, 1
      %p134 = por %p132, %p133
      %p136 = scmp.ne.s32.totalorder %s121, %s135
      %p137 = scmp.eq.s32.totalorder %s27, 0
      %p138 = por %p136, %p137
      %s140 = sadd.s32 %s139, 1
      %p143 = scmp.eq.s32.totalorder %s21, 1
      %p144 = scmp.ne.s32.totalorder %s139, %s141
      %p145 = scmp.eq.s32.totalorder %s21, 0
      %p146 = por %p144, %p145
      %p147 = scmp.ne.s32.totalorder %s139, %s141
      %p148 = scmp.eq.s32.totalorder %s26, 1
      %p149 = por %p147, %p148
      %p150 = scmp.ne.s32.totalorder %s141, %s142
      %p151 = scmp.eq.s32.totalorder %s26, 0
      %p152 = por %p150, %p151
      %p153 = scmp.ne.s32.totalorder %s141, %s142
      %p154 = scmp.eq.s32.totalorder %s27, 1
      %p155 = por %p153, %p154
      %p157 = scmp.ne.s32.totalorder %s142, %s156
      %p158 = scmp.eq.s32.totalorder %s27, 0
      %p159 = por %p157, %p158
      %s161 = sadd.s32 %s160, 1
      %p164 = scmp.eq.s32.totalorder %s21, 1
      %p165 = scmp.ne.s32.totalorder %s160, %s162
      %p166 = scmp.eq.s32.totalorder %s21, 0
      %p167 = por %p165, %p166
      %p168 = scmp.ne.s32.totalorder %s160, %s162
      %p169 = scmp.eq.s32.totalorder %s26, 1
      %p170 = por %p168, %p169
      %p171 = scmp.ne.s32.totalorder %s162, %s163
      %p172 = scmp.eq.s32.totalorder %s26, 0
      %p173 = por %p171, %p172
      %p174 = scmp.ne.s32.totalorder %s162, %s163
      %p175 = scmp.eq.s32.totalorder %s27, 1
      %p176 = por %p174, %p175
      %p178 = scmp.ne.s32.totalorder %s163, %s177
      %p179 = scmp.eq.s32.totalorder %s27, 0
      %p180 = por %p178, %p179
      %s182 = sadd.s32 %s181, 1
      %p185 = scmp.eq.s32.totalorder %s21, 1
      %p186 = scmp.ne.s32.totalorder %s181, %s183
      %p187 = scmp.eq.s32.totalorder %s21, 0
      %p188 = por %p186, %p187
      %p189 = scmp.ne.s32.totalorder %s181, %s183
      %p190 = scmp.eq.s32.totalorder %s26, 1
      %p191 = por %p189, %p190
      %p192 = scmp.ne.s32.totalorder %s183, %s184
      %p193 = scmp.eq.s32.totalorder %s26, 0
      %p194 = por %p192, %p193
      %p195 = scmp.ne.s32.totalorder %s183, %s184
      %p196 = scmp.eq.s32.totalorder %s27, 1
      %p197 = por %p195, %p196
      %p199 = scmp.ne.s32.totalorder %s184, %s198
      %p200 = scmp.eq.s32.totalorder %s27, 0
      %p201 = por %p199, %p200
      %s203 = sadd.s32 %s202, 1
      %p206 = scmp.eq.s32.totalorder %s21, 1
      %p207 = scmp.ne.s32.totalorder %s202, %s204
      %p208 = scmp.eq.s32.totalorder %s21, 0
      %p209 = por %p207, %p208
      %p210 = scmp.ne.s32.totalorder %s202, %s204
      %p211 = scmp.eq.s32.totalorder %s26, 1
      %p212 = por %p210, %p211
      %p213 = scmp.ne.s32.totalorder %s204, %s205
      %p214 = scmp.eq.s32.totalorder %s26, 0
      %p215 = por %p213, %p214
      %p216 = scmp.ne.s32.totalorder %s204, %s205
      %p217 = scmp.eq.s32.totalorder %s27, 1
      %p218 = por %p216, %p217
      %p220 = scmp.ne.s32.totalorder %s205, %s219
      %p221 = scmp.eq.s32.totalorder %s27, 0
      %p222 = por %p220, %p221
      %s224 = sadd.s32 %s223, 1
      %p227 = scmp.eq.s32.totalorder %s21, 1
      %p228 = scmp.ne.s32.totalorder %s223, %s225
      %p229 = scmp.eq.s32.totalorder %s21, 0
      %p230 = por %p228, %p229
      %p231 = scmp.ne.s32.totalorder %s223, %s225
      %p232 = scmp.eq.s32.totalorder %s26, 1
      %p233 = por %p231, %p232
      %p234 = scmp.ne.s32.totalorder %s225, %s226
      %p235 = scmp.eq.s32.totalorder %s26, 0
      %p236 = por %p234, %p235
      %p237 = scmp.ne.s32.totalorder %s225, %s226
      %p238 = scmp.eq.s32.totalorder %s27, 1
      %p239 = por %p237, %p238
      %p241 = scmp.ne.s32.totalorder %s226, %s240
      %p242 = scmp.eq.s32.totalorder %s27, 0
      %p243 = por %p241, %p242
      %s245 = sadd.s32 %s244, 1
      %p248 = scmp.eq.s32.totalorder %s21, 1
      %p249 = scmp.ne.s32.totalorder %s244, %s246
      %p250 = scmp.eq.s32.totalorder %s21, 0
      %p251 = por %p249, %p250
      %p252 = scmp.ne.s32.totalorder %s244, %s246
      %p253 = scmp.eq.s32.totalorder %s26, 1
      %p254 = por %p252, %p253
      %p255 = scmp.ne.s32.totalorder %s246, %s247
      %p256 = scmp.eq.s32.totalorder %s26, 0
      %p257 = por %p255, %p256
      %p258 = scmp.ne.s32.totalorder %s246, %s247
      %p259 = scmp.eq.s32.totalorder %s27, 1
      %p260 = por %p258, %p259
      %p262 = scmp.ne.s32.totalorder %s247, %s261
      %p263 = scmp.eq.s32.totalorder %s27, 0
      %p264 = por %p262, %p263
      %s266 = sadd.s32 %s265, 1
      %p269 = scmp.eq.s32.totalorder %s21, 1
      %p270 = scmp.ne.s32.totalorder %s265, %s267
      %p271 = scmp.eq.s32.totalorder %s21, 0
      %p272 = por %p270, %p271
      %p273 = scmp.ne.s32.totalorder %s265, %s267
      %p274 = scmp.eq.s32.totalorder %s26, 1
      %p275 = por %p273, %p274
      %p276 = scmp.ne.s32.totalorder %s267, %s268
      %p277 = scmp.eq.s32.totalorder %s26, 0
      %p278 = por %p276, %p277
      %p279 = scmp.ne.s32.totalorder %s267, %s268
      %p280 = scmp.eq.s32.totalorder %s27, 1
      %p281 = por %p279, %p280
      %p283 = scmp.ne.s32.totalorder %s268, %s282
      %p284 = scmp.eq.s32.totalorder %s27, 0
      %p285 = por %p283, %p284
      %s287 = sadd.s32 %s286, 1
      %p290 = scmp.eq.s32.totalorder %s21, 1
      %p291 = scmp.ne.s32.totalorder %s286, %s288
      %p292 = scmp.eq.s32.totalorder %s21, 0
      %p293 = por %p291, %p292
      %p294 = scmp.ne.s32.totalorder %s286, %s288
      %p295 = scmp.eq.s32.totalorder %s26, 1
      %p296 = por %p294, %p295
      %p297 = scmp.ne.s32.totalorder %s288, %s289
      %p298 = scmp.eq.s32.totalorder %s26, 0
      %p299 = por %p297, %p298
      %p300 = scmp.ne.s32.totalorder %s288, %s289
      %p301 = scmp.eq.s32.totalorder %s27, 1
      %p302 = por %p300, %p301
      %p304 = scmp.ne.s32.totalorder %s289, %s303
      %p305 = scmp.eq.s32.totalorder %s27, 0
      %p306 = por %p304, %p305
      %s308 = sadd.s32 %s307, 1
      %p311 = scmp.eq.s32.totalorder %s21, 1
      %p312 = scmp.ne.s32.totalorder %s307, %s309
      %p313 = scmp.eq.s32.totalorder %s21, 0
      %p314 = por %p312, %p313
      %p315 = scmp.ne.s32.totalorder %s307, %s309
      %p316 = scmp.eq.s32.totalorder %s26, 1
      %p317 = por %p315, %p316
      %p318 = scmp.ne.s32.totalorder %s309, %s310
      %p319 = scmp.eq.s32.totalorder %s26, 0
      %p320 = por %p318, %p319
      %p321 = scmp.ne.s32.totalorder %s309, %s310
      %p322 = scmp.eq.s32.totalorder %s27, 1
      %p323 = por %p321, %p322
      %p325 = scmp.ne.s32.totalorder %s310, %s324
      %p326 = scmp.eq.s32.totalorder %s27, 0
      %p327 = por %p325, %p326
      %s328 = ssub.s32 %s21, %s28
      %p329 = scmp.eq.s32.totalorder %s328, 0
      %s331 = sadd.s32 %s330, 1
      %s332 = scalar_select %p329, %s330, %s331
      %p335 = pneg %p329
      %p336 = scmp.eq.s32.totalorder %s21, 1
      %p337 = por %p335, %p336
      %p338 = scmp.ne.s32.totalorder %s330, %s333
      %p339 = scmp.eq.s32.totalorder %s21, 0
      %p340 = por %p338, %p339
      %p341 = scmp.ne.s32.totalorder %s330, %s333
      %p342 = scmp.eq.s32.totalorder %s26, 1
      %p343 = por %p341, %p342
      %p344 = scmp.ne.s32.totalorder %s333, %s334
      %p345 = scmp.eq.s32.totalorder %s26, 0
      %p346 = por %p344, %p345
      %p347 = scmp.ne.s32.totalorder %s333, %s334
      %p348 = scmp.eq.s32.totalorder %s27, 1
      %p349 = por %p347, %p348
      %p351 = scmp.ne.s32.totalorder %s334, %s350
      %p352 = scmp.eq.s32.totalorder %s27, 0
      %p353 = por %p351, %p352
      %p354 = scmp.le.s32.totalorder 1, %s21
      %p355 = scmp.lt.s32.totalorder %s21, 3
      %p356 = pnand %p354, %p355
      %p357 = pneg %p356
      // Predicated region
      $region9: #{swin_transformer_block_forward.1} parent=5 // pred_check
        _
      $region10: #{swin_transformer_block_forward.1} parent=5 // pred_check_branch
        %359 = sbr.rel (%p356) target = $region12
      $region11: #{swin_transformer_block_forward.1} parent=5 // pred_region
        %s360 = ssub.s32 %s21, 1
        // Predicated region
        $region13: #{swin_transformer_block_forward.1} parent=11 // pred_check
          %p361 = pneg %p68
        $region14: #{swin_transformer_block_forward.1} parent=11 // pred_check_branch
          %363 = sbr.rel (%p361) target = $region16
        $region15: #{swin_transformer_block_forward.1} parent=11 // pred_region
          %365 = vsyncadd [#allocation3], 0
          %s366 = sshll.u32 %s1, 4
          %s367 = int_to_ptr.hbm [resolvable:$true] %s366
          %s368 = sshll.u32 [#allocation2], 4
          %s369 = int_to_ptr.vmem [resolvable:$true] %s368
          %374 = dma.hbm_to_vmem [thread:$0]  %s367, 4096, %s369, [#allocation3], 128, 128, 8
        $region16: #{swin_transformer_block_forward.1} parent=11 // pred_fallthru
          _
        // Predicated region
        $region17: #{swin_transformer_block_forward.1} parent=11 // pred_check
          %p375 = pneg %p89
        $region18: #{swin_transformer_block_forward.1} parent=11 // pred_check_branch
          %377 = sbr.rel (%p375) target = $region20
        $region19: #{swin_transformer_block_forward.1} parent=11 // pred_region
          _
        $region20: #{swin_transformer_block_forward.1} parent=11 // pred_fallthru
          _
        // Predicated region
        $region21: #{swin_transformer_block_forward.1} parent=11 // pred_check
          %p378 = pneg %p110
        $region22: #{swin_transformer_block_forward.1} parent=11 // pred_check_branch
          %380 = sbr.rel (%p378) target = $region24
        $region23: #{swin_transformer_block_forward.1} parent=11 // pred_region
          _
        $region24: #{swin_transformer_block_forward.1} parent=11 // pred_fallthru
          _
        // Predicated region
        $region25: #{swin_transformer_block_forward.1} parent=11 // pred_check
          %p381 = pneg %p131
        $region26: #{swin_transformer_block_forward.1} parent=11 // pred_check_branch
          %383 = sbr.rel (%p381) target = $region28
        $region27: #{swin_transformer_block_forward.1} parent=11 // pred_region
          _
        $region28: #{swin_transformer_block_forward.1} parent=11 // pred_fallthru
          _
        // Predicated region
        $region29: #{swin_transformer_block_forward.1} parent=11 // pred_check
          %p384 = pneg %p152
        $region30: #{swin_transformer_block_forward.1} parent=11 // pred_check_branch
          %386 = sbr.rel (%p384) target = $region32
        $region31: #{swin_transformer_block_forward.1} parent=11 // pred_region
          _
        $region32: #{swin_transformer_block_forward.1} parent=11 // pred_fallthru
          _
        // Predicated region
        $region33: #{swin_transformer_block_forward.1} parent=11 // pred_check
          %p387 = pneg %p173
        $region34: #{swin_transformer_block_forward.1} parent=11 // pred_check_branch
          %389 = sbr.rel (%p387) target = $region36
        $region35: #{swin_transformer_block_forward.1} parent=11 // pred_region
          _
        $region36: #{swin_transformer_block_forward.1} parent=11 // pred_fallthru
          _
        // Predicated region
        $region37: #{swin_transformer_block_forward.1} parent=11 // pred_check
          %p390 = pneg %p194
        $region38: #{swin_transformer_block_forward.1} parent=11 // pred_check_branch
          %392 = sbr.rel (%p390) target = $region40
        $region39: #{swin_transformer_block_forward.1} parent=11 // pred_region
          _
        $region40: #{swin_transformer_block_forward.1} parent=11 // pred_fallthru
          _
        // Predicated region
        $region41: #{swin_transformer_block_forward.1} parent=11 // pred_check
          %p393 = pneg %p215
        $region42: #{swin_transformer_block_forward.1} parent=11 // pred_check_branch
          %395 = sbr.rel (%p393) target = $region44
        $region43: #{swin_transformer_block_forward.1} parent=11 // pred_region
          _
        $region44: #{swin_transformer_block_forward.1} parent=11 // pred_fallthru
          _
        // Predicated region
        $region45: #{swin_transformer_block_forward.1} parent=11 // pred_check
          %p396 = pneg %p236
        $region46: #{swin_transformer_block_forward.1} parent=11 // pred_check_branch
          %398 = sbr.rel (%p396) target = $region48
        $region47: #{swin_transformer_block_forward.1} parent=11 // pred_region
          _
        $region48: #{swin_transformer_block_forward.1} parent=11 // pred_fallthru
          _
        // Predicated region
        $region49: #{swin_transformer_block_forward.1} parent=11 // pred_check
          %p399 = pneg %p257
        $region50: #{swin_transformer_block_forward.1} parent=11 // pred_check_branch
          %401 = sbr.rel (%p399) target = $region52
        $region51: #{swin_transformer_block_forward.1} parent=11 // pred_region
          _
        $region52: #{swin_transformer_block_forward.1} parent=11 // pred_fallthru
          _
        // Predicated region
        $region53: #{swin_transformer_block_forward.1} parent=11 // pred_check
          %p402 = pneg %p278
        $region54: #{swin_transformer_block_forward.1} parent=11 // pred_check_branch
          %404 = sbr.rel (%p402) target = $region56
        $region55: #{swin_transformer_block_forward.1} parent=11 // pred_region
          _
        $region56: #{swin_transformer_block_forward.1} parent=11 // pred_fallthru
          _
        // Predicated region
        $region57: #{swin_transformer_block_forward.1} parent=11 // pred_check
          %p405 = pneg %p299
        $region58: #{swin_transformer_block_forward.1} parent=11 // pred_check_branch
          %407 = sbr.rel (%p405) target = $region60
        $region59: #{swin_transformer_block_forward.1} parent=11 // pred_region
          _
        $region60: #{swin_transformer_block_forward.1} parent=11 // pred_fallthru
          _
        // Predicated region
        $region61: #{swin_transformer_block_forward.1} parent=11 // pred_check
          %p408 = pneg %p320
        $region62: #{swin_transformer_block_forward.1} parent=11 // pred_check_branch
          %410 = sbr.rel (%p408) target = $region64
        $region63: #{swin_transformer_block_forward.1} parent=11 // pred_region
          _
        $region64: #{swin_transformer_block_forward.1} parent=11 // pred_fallthru
          _
      $region12: #{swin_transformer_block_forward.1} parent=5 // pred_fallthru
        _
      %p411 = scmp.lt.s32.totalorder %s21, 2
      // Predicated region
      $region65: #{swin_transformer_block_forward.1} parent=5 // pred_check
        %p412 = pneg %p411
      $region66: #{swin_transformer_block_forward.1} parent=5 // pred_check_branch
        %414 = sbr.rel (%p412) target = $region68
      $region67: #{swin_transformer_block_forward.1} parent=5 // pred_region
        // Predicated region
        $region69: #{swin_transformer_block_forward.1} parent=67 // pred_check
          %p415 = pneg %p41
        $region70: #{swin_transformer_block_forward.1} parent=67 // pred_check_branch
          %417 = sbr.rel (%p415) target = $region72
        $region71: #{swin_transformer_block_forward.1} parent=67 // pred_region
          %s418 = smul.u32 8, %s21
          %p419 = scmp.lt.s32.totalorder %s418, 15
          %s420 = scalar_select %p419, %s418, 15
          %s421 = smul.addr %s420, 8
          %s422 = scalar_lea.vmem %s0, %s421
          %s423 = smul.u32 8, %s21
        $region72: #{swin_transformer_block_forward.1} parent=67 // pred_fallthru
          _
      $region68: #{swin_transformer_block_forward.1} parent=5 // pred_fallthru
        _
      %p424 = scmp.le.s32.totalorder 1, %s21
      %p425 = scmp.lt.s32.totalorder %s21, 3
      %p426 = pnand %p424, %p425
      %p427 = pneg %p426
      // Predicated region
      $region73: #{swin_transformer_block_forward.1} parent=5 // pred_check
        _
      $region74: #{swin_transformer_block_forward.1} parent=5 // pred_check_branch
        %429 = sbr.rel (%p426) target = $region76
      $region75: #{swin_transformer_block_forward.1} parent=5 // pred_region
        %s430 = ssub.s32 %s21, 1
        // Predicated region
        $region77: #{swin_transformer_block_forward.1} parent=75 // pred_check
          %p431 = pneg %p68
        $region78: #{swin_transformer_block_forward.1} parent=75 // pred_check_branch
          %433 = sbr.rel (%p431) target = $region80
        $region79: #{swin_transformer_block_forward.1} parent=75 // pred_region
          %435 = dma.done [#allocation3], 4096
        $region80: #{swin_transformer_block_forward.1} parent=75 // pred_fallthru
          _
        %s436 = smul.u32 8, %s26
        %p437 = scmp.lt.s32.totalorder %s436, 15
        %s438 = scalar_select %p437, %s436, 15
        %s439 = smul.addr %s438, 8
        %s440 = scalar_lea.vmem %s0, %s439
        %p441 = pneg %p47
        %p442 = pneg %p44
        %p443 = pneg %p68
        %p444 = pneg %p65
        %p445 = pneg %p89
        %p446 = pneg %p86
        %p447 = pneg %p110
        %p448 = pneg %p107
        %p449 = pneg %p131
        %p450 = pneg %p128
        %p451 = pneg %p152
        %p452 = pneg %p149
        %p453 = pneg %p173
        %p454 = pneg %p170
        %p455 = pneg %p194
        %p456 = pneg %p191
        %p457 = pneg %p215
        %p458 = pneg %p212
        %p459 = pneg %p236
        %p460 = pneg %p233
        %p461 = pneg %p257
        %p462 = pneg %p254
        %p463 = pneg %p278
        %p464 = pneg %p275
        %p465 = pneg %p299
        %p466 = pneg %p296
        %p467 = pneg %p320
        %p468 = pneg %p317
        %p469 = pneg %p346
        %p470 = pneg %p343
        %s471 = smul.u32 8, %s26
        %p472 = scmp.lt.s32.totalorder %s471, 15
        %s473 = scalar_select %p472, %s471, 15
        %s474 = smul.addr %s473, 8
        %s475 = scalar_lea.vmem %s14, %s474
        %s476 = smul.u32 8, %s26
        %p477 = scmp.lt.s32.totalorder %s476, 15
        %s478 = scalar_select %p477, %s476, 15
        %s479 = smul.addr %s478, 8
        %s480 = scalar_lea.vmem %s0, %s479
        %s481 = smul.u32 8, %s26
        %s482 = smul.u32 8, %s26
        %p483 = scmp.lt.s32.totalorder %s482, 15
        %s484 = scalar_select %p483, %s482, 15
        %s485 = smul.addr %s484, 8
        %s486 = scalar_lea.vmem %s14, %s485
        %s487 = smul.u32 8, %s26
        %v489 = vld [vmem:[%s480] sm:$0xff]
        %v490 = vld [vmem:[%s480 + $0x8] sm:$0xff]
        %v491 = vld [vmem:[%s480 + $0x10] sm:$0xff]
        %v492 = vld [vmem:[%s480 + $0x18] sm:$0xff]
        %v493 = vld [vmem:[%s480 + $0x20] sm:$0xff]
        %v494 = vld [vmem:[%s480 + $0x28] sm:$0xff]
        %v495 = vld [vmem:[%s480 + $0x30] sm:$0xff]
        %v496 = vld [vmem:[%s480 + $0x38] sm:$0xff]
        %vm497 = vcmask 261120
        %v498 = vsel %vm497, %v489, 0.0
        %499 = vadd.xlane.f32.xlu0 %v498
        %v500 = vpop.xlane.xlu0 %499
        %v501 = vsel %vm497, %v490, 0.0
        %502 = vadd.xlane.f32.xlu0 %v501
        %v503 = vpop.xlane.xlu0 %502
        %v504 = vsel %vm497, %v491, 0.0
        %505 = vadd.xlane.f32.xlu0 %v504
        %v506 = vpop.xlane.xlu0 %505
        %v507 = vsel %vm497, %v492, 0.0
        %508 = vadd.xlane.f32.xlu0 %v507
        %v509 = vpop.xlane.xlu0 %508
        %v510 = vsel %vm497, %v493, 0.0
        %511 = vadd.xlane.f32.xlu0 %v510
        %v512 = vpop.xlane.xlu0 %511
        %v513 = vsel %vm497, %v494, 0.0
        %514 = vadd.xlane.f32.xlu0 %v513
        %v515 = vpop.xlane.xlu0 %514
        %v516 = vsel %vm497, %v495, 0.0
        %517 = vadd.xlane.f32.xlu0 %v516
        %v518 = vpop.xlane.xlu0 %517
        %v519 = vsel %vm497, %v496, 0.0
        %520 = vadd.xlane.f32.xlu0 %v519
        %v521 = vpop.xlane.xlu0 %520
        %v522 = vrcp.pop 32.0
        %v523 = vmul.f32 32.0, %v522
        %v524 = vsub.f32 1.0, %v523
        %v525 = vmul.f32 %v522, %v524
        %v526 = vadd.f32 %v522, %v525
        %vm527 = vweird.f32 %v522
        %v528 = vsel %vm527, %v522, %v526
        %v529 = vmul.f32 %v500, %v528
        %v530 = vmul.f32 %v503, %v528
        %v531 = vmul.f32 %v506, %v528
        %v532 = vmul.f32 %v509, %v528
        %v533 = vmul.f32 %v512, %v528
        %v534 = vmul.f32 %v515, %v528
        %v535 = vmul.f32 %v518, %v528
        %v536 = vmul.f32 %v521, %v528
        %v537 = vsub.f32 %v489, %v529
        %v538 = vsub.f32 %v490, %v530
        %v539 = vsub.f32 %v491, %v531
        %v540 = vsub.f32 %v492, %v532
        %v541 = vsub.f32 %v493, %v533
        %v542 = vsub.f32 %v494, %v534
        %v543 = vsub.f32 %v495, %v535
        %v544 = vsub.f32 %v496, %v536
        %v545 = vmul.f32 %v537, %v537
        %v546 = vmul.f32 %v538, %v538
        %v547 = vmul.f32 %v539, %v539
        %v548 = vmul.f32 %v540, %v540
        %v549 = vmul.f32 %v541, %v541
        %v550 = vmul.f32 %v542, %v542
        %v551 = vmul.f32 %v543, %v543
        %v552 = vmul.f32 %v544, %v544
        %v553 = vsel %vm497, %v545, 0.0
        %554 = vadd.xlane.f32.xlu0 %v553
        %v555 = vpop.xlane.xlu0 %554
        %v556 = vsel %vm497, %v546, 0.0
        %557 = vadd.xlane.f32.xlu0 %v556
        %v558 = vpop.xlane.xlu0 %557
        %v559 = vsel %vm497, %v547, 0.0
        %560 = vadd.xlane.f32.xlu0 %v559
        %v561 = vpop.xlane.xlu0 %560
        %v562 = vsel %vm497, %v548, 0.0
        %563 = vadd.xlane.f32.xlu0 %v562
        %v564 = vpop.xlane.xlu0 %563
        %v565 = vsel %vm497, %v549, 0.0
        %566 = vadd.xlane.f32.xlu0 %v565
        %v567 = vpop.xlane.xlu0 %566
        %v568 = vsel %vm497, %v550, 0.0
        %569 = vadd.xlane.f32.xlu0 %v568
        %v570 = vpop.xlane.xlu0 %569
        %v571 = vsel %vm497, %v551, 0.0
        %572 = vadd.xlane.f32.xlu0 %v571
        %v573 = vpop.xlane.xlu0 %572
        %v574 = vsel %vm497, %v552, 0.0
        %575 = vadd.xlane.f32.xlu0 %v574
        %v576 = vpop.xlane.xlu0 %575
        %v577 = vmul.f32 %v555, %v528
        %v578 = vmul.f32 %v558, %v528
        %v579 = vmul.f32 %v561, %v528
        %v580 = vmul.f32 %v564, %v528
        %v581 = vmul.f32 %v567, %v528
        %v582 = vmul.f32 %v570, %v528
        %v583 = vmul.f32 %v573, %v528
        %v584 = vmul.f32 %v576, %v528
        %v585 = vadd.f32 %v577, 1e-05
        %v586 = vadd.f32 %v578, 1e-05
        %v587 = vadd.f32 %v579, 1e-05
        %v588 = vadd.f32 %v580, 1e-05
        %v589 = vadd.f32 %v581, 1e-05
        %v590 = vadd.f32 %v582, 1e-05
        %v591 = vadd.f32 %v583, 1e-05
        %v592 = vadd.f32 %v584, 1e-05
        %v593 = vrsqrt.pop %v585
        %v594 = vmul.f32 %v593, %v585
        %v595 = vmul.f32 %v594, %v593
        %v596 = vmul.f32 0.5, %v595
        %v597 = vsub.f32 1.5, %v596
        %v598 = vmul.f32 %v593, %v597
        %vm599 = vweird.f32 %v585
        %vm600 = vweird.f32 %v593
        %vm601 = vmor %vm599, %vm600
        %v602 = vsel %vm601, %v593, %v598
        %v603 = vrsqrt.pop %v586
        %v604 = vmul.f32 %v603, %v586
        %v605 = vmul.f32 %v604, %v603
        %v606 = vmul.f32 0.5, %v605
        %v607 = vsub.f32 1.5, %v606
        %v608 = vmul.f32 %v603, %v607
        %vm609 = vweird.f32 %v586
        %vm610 = vweird.f32 %v603
        %vm611 = vmor %vm609, %vm610
        %v612 = vsel %vm611, %v603, %v608
        %v613 = vrsqrt.pop %v587
        %v614 = vmul.f32 %v613, %v587
        %v615 = vmul.f32 %v614, %v613
        %v616 = vmul.f32 0.5, %v615
        %v617 = vsub.f32 1.5, %v616
        %v618 = vmul.f32 %v613, %v617
        %vm619 = vweird.f32 %v587
        %vm620 = vweird.f32 %v613
        %vm621 = vmor %vm619, %vm620
        %v622 = vsel %vm621, %v613, %v618
        %v623 = vrsqrt.pop %v588
        %v624 = vmul.f32 %v623, %v588
        %v625 = vmul.f32 %v624, %v623
        %v626 = vmul.f32 0.5, %v625
        %v627 = vsub.f32 1.5, %v626
        %v628 = vmul.f32 %v623, %v627
        %vm629 = vweird.f32 %v588
        %vm630 = vweird.f32 %v623
        %vm631 = vmor %vm629, %vm630
        %v632 = vsel %vm631, %v623, %v628
        %v633 = vrsqrt.pop %v589
        %v634 = vmul.f32 %v633, %v589
        %v635 = vmul.f32 %v634, %v633
        %v636 = vmul.f32 0.5, %v635
        %v637 = vsub.f32 1.5, %v636
        %v638 = vmul.f32 %v633, %v637
        %vm639 = vweird.f32 %v589
        %vm640 = vweird.f32 %v633
        %vm641 = vmor %vm639, %vm640
        %v642 = vsel %vm641, %v633, %v638
        %v643 = vrsqrt.pop %v590
        %v644 = vmul.f32 %v643, %v590
        %v645 = vmul.f32 %v644, %v643
        %v646 = vmul.f32 0.5, %v645
        %v647 = vsub.f32 1.5, %v646
        %v648 = vmul.f32 %v643, %v647
        %vm649 = vweird.f32 %v590
        %vm650 = vweird.f32 %v643
        %vm651 = vmor %vm649, %vm650
        %v652 = vsel %vm651, %v643, %v648
        %v653 = vrsqrt.pop %v591
        %v654 = vmul.f32 %v653, %v591
        %v655 = vmul.f32 %v654, %v653
        %v656 = vmul.f32 0.5, %v655
        %v657 = vsub.f32 1.5, %v656
        %v658 = vmul.f32 %v653, %v657
        %vm659 = vweird.f32 %v591
        %vm660 = vweird.f32 %v653
        %vm661 = vmor %vm659, %vm660
        %v662 = vsel %vm661, %v653, %v658
        %v663 = vrsqrt.pop %v592
        %v664 = vmul.f32 %v663, %v592
        %v665 = vmul.f32 %v664, %v663
        %v666 = vmul.f32 0.5, %v665
        %v667 = vsub.f32 1.5, %v666
        %v668 = vmul.f32 %v663, %v667
        %vm669 = vweird.f32 %v592
        %vm670 = vweird.f32 %v663
        %vm671 = vmor %vm669, %vm670
        %v672 = vsel %vm671, %v663, %v668
        %v673 = vmul.f32 %v537, %v602
        %v674 = vmul.f32 %v538, %v612
        %v675 = vmul.f32 %v539, %v622
        %v676 = vmul.f32 %v540, %v632
        %v677 = vmul.f32 %v541, %v642
        %v678 = vmul.f32 %v542, %v652
        %v679 = vmul.f32 %v543, %v662
        %v680 = vmul.f32 %v544, %v672
        %v681 = vld [vmem:[%s2] sm:$0x1]
        %v683 = vperm.slane %v681, 0
        %v685 = vmul.f32 %v673, %v683
        %v686 = vmul.f32 %v674, %v683
        %v687 = vmul.f32 %v675, %v683
        %v688 = vmul.f32 %v676, %v683
        %v689 = vmul.f32 %v677, %v683
        %v690 = vmul.f32 %v678, %v683
        %v691 = vmul.f32 %v679, %v683
        %v692 = vmul.f32 %v680, %v683
        %v693 = vld [vmem:[%s3] sm:$0x1]
        %v695 = vperm.slane %v693, 0
        %v697 = vadd.f32 %v685, %v695
        %v698 = vadd.f32 %v686, %v695
        %v699 = vadd.f32 %v687, %v695
        %v700 = vadd.f32 %v688, %v695
        %v701 = vadd.f32 %v689, %v695
        %v702 = vadd.f32 %v690, %v695
        %v703 = vadd.f32 %v691, %v695
        %v704 = vadd.f32 %v692, %v695
        %v705 = vpack.c.bf16 %v698, %v697
        %v706 = vpack.c.bf16 %v700, %v699
        %v707 = vpack.c.bf16 %v702, %v701
        %v708 = vpack.c.bf16 %v704, %v703
        %v709 = vld [vmem:[%s4] sm:$0xf]
        %v710 = vld [vmem:[%s4 + $0x4] sm:$0xf]
        %v711 = vld [vmem:[%s4 + $0x8] sm:$0xf]
        %v712 = vld [vmem:[%s4 + $0xc] sm:$0xf]
        %v713 = vld [vmem:[%s5] sm:$0x1]
        %v715 = vperm.slane %v713, 0
        %v721 = vunpack.c.l.b16 %v709
        %v722 = vunpack.c.l.b16 %v710
        %v723 = vunpack.c.l.b16 %v711
        %v724 = vunpack.c.l.b16 %v712
        %v725 = vpack.c.b16 %v722, %v721
        %v726 = vpack.c.b16 %v724, %v723
        %v730 = vsel %vm497, %v705, 0
        %v733 = vsel %vm497, %v706, 0
        %v736 = vsel %vm497, %v707, 0
        %v739 = vsel %vm497, %v708, 0
        %741 = vmatpush.bf16.msra.mxu0 0
        %742 = vmatpush.bf16.msra.mxu0 0
        %743 = vmatpush.bf16.msra.mxu0 0
        %744 = vmatpush.bf16.msra.mxu0 0
        %745 = vmatpush.bf16.msra.mxu0 0
        %746 = vmatpush.bf16.msra.mxu0 0
        %747 = vmatpush.bf16.msra.mxu0 %v726
        %748 = vmatpush.bf16.msra.mxu0 %v725
        %749 = vmatmul.bf16.gmra.mxu0 %v730
        %v750 = vpop.f32.mrf.mxu0
        %v751 = vadd.f32 %v715, %v750
        %v752 = vpop.f32.mrf.mxu0
        %v753 = vadd.f32 %v715, %v752
        %754 = vmatmul.bf16.gmra.mxu0 %v733
        %v755 = vpop.f32.mrf.mxu0
        %v756 = vadd.f32 %v715, %v755
        %v757 = vpop.f32.mrf.mxu0
        %v758 = vadd.f32 %v715, %v757
        %759 = vmatmul.bf16.gmra.mxu0 %v736
        %v760 = vpop.f32.mrf.mxu0
        %v761 = vadd.f32 %v715, %v760
        %v762 = vpop.f32.mrf.mxu0
        %v763 = vadd.f32 %v715, %v762
        %764 = vmatmul.bf16.gmra.mxu0 %v739
        %v765 = vpop.f32.mrf.mxu0
        %v766 = vadd.f32 %v715, %v765
        %v767 = vpop.f32.mrf.mxu0
        %v768 = vadd.f32 %v715, %v767
        %769 = vdwg.mxu0
        %v770 = vmul.f32 %v751, 0.35355338
        %v771 = vmul.f32 %v753, 0.35355338
        %v772 = vmul.f32 %v756, 0.35355338
        %v773 = vmul.f32 %v758, 0.35355338
        %v774 = vmul.f32 %v761, 0.35355338
        %v775 = vmul.f32 %v763, 0.35355338
        %v776 = vmul.f32 %v766, 0.35355338
        %v777 = vmul.f32 %v768, 0.35355338
        %v778 = vpack.c.bf16 %v770, %v770
        %v779 = vpack.c.bf16 %v771, %v771
        %v780 = vpack.c.bf16 %v772, %v772
        %v781 = vpack.c.bf16 %v773, %v773
        %v782 = vpack.c.bf16 %v774, %v774
        %v783 = vpack.c.bf16 %v775, %v775
        %v784 = vpack.c.bf16 %v776, %v776
        %v785 = vpack.c.bf16 %v777, %v777
        %v786 = vpack.c.bf16 %v751, %v751
        %v787 = vpack.c.bf16 %v753, %v753
        %v788 = vpack.c.bf16 %v756, %v756
        %v789 = vpack.c.bf16 %v758, %v758
        %v790 = vpack.c.bf16 %v761, %v761
        %v791 = vpack.c.bf16 %v763, %v763
        %v792 = vpack.c.bf16 %v766, %v766
        %v793 = vpack.c.bf16 %v768, %v768
        %v794 = vld [vmem:[#allocation2] sm:$0xff]
        %v795 = vld [vmem:[#allocation2 + $0x8] sm:$0xff]
        %v796 = vld [vmem:[#allocation2 + $0x10] sm:$0xff]
        %v797 = vld [vmem:[#allocation2 + $0x18] sm:$0xff]
        %v798 = vld [vmem:[#allocation2 + $0x20] sm:$0xff]
        %v799 = vld [vmem:[#allocation2 + $0x28] sm:$0xff]
        %v800 = vld [vmem:[#allocation2 + $0x30] sm:$0xff]
        %v801 = vld [vmem:[#allocation2 + $0x38] sm:$0xff]
        %v810 = vunpack.c.l.b16 %v778
        %v811 = vunpack.c.l.b16 %v779
        %v812 = vunpack.c.l.b16 %v780
        %v813 = vunpack.c.l.b16 %v781
        %v814 = vunpack.c.l.b16 %v782
        %v815 = vunpack.c.l.b16 %v783
        %v816 = vunpack.c.l.b16 %v784
        %v817 = vunpack.c.l.b16 %v785
        %v818 = vpack.c.b16 %v811, %v810
        %v819 = vpack.c.b16 %v813, %v812
        %v820 = vpack.c.b16 %v815, %v814
        %v821 = vpack.c.b16 %v817, %v816
        %v830 = vunpack.c.l.b16 %v786
        %v831 = vunpack.c.l.b16 %v787
        %v832 = vunpack.c.l.b16 %v788
        %v833 = vunpack.c.l.b16 %v789
        %v834 = vunpack.c.l.b16 %v790
        %v835 = vunpack.c.l.b16 %v791
        %v836 = vunpack.c.l.b16 %v792
        %v837 = vunpack.c.l.b16 %v793
        %v838 = vpack.c.b16 %v831, %v830
        %v839 = vpack.c.b16 %v833, %v832
        %v840 = vpack.c.b16 %v835, %v834
        %v841 = vpack.c.b16 %v837, %v836
        %842 = vrot.lane.b32.xlu0 %v838, 96
        %v843 = vpop.permute.xlu0 %842
        %844 = vrot.lane.b32.xlu0 %v839, 96
        %v845 = vpop.permute.xlu0 %844
        %846 = vrot.lane.b32.xlu0 %v840, 96
        %v847 = vpop.permute.xlu0 %846
        %848 = vrot.lane.b32.xlu0 %v841, 96
        %v849 = vpop.permute.xlu0 %848
        %vm850 = vcmask 64512
        %v852 = vsel %vm850, %v818, 0
        %v855 = vsel %vm850, %v819, 0
        %v858 = vsel %vm850, %v820, 0
        %v861 = vsel %vm850, %v821, 0
        %v864 = vsel %vm850, %v843, 0
        %v867 = vsel %vm850, %v845, 0
        %v870 = vsel %vm850, %v847, 0
        %v873 = vsel %vm850, %v849, 0
        %875 = vmatpush.bf16.xpose.msra.mxu0 0
        %876 = vmatpush.bf16.xpose.msra.mxu0 0
        %877 = vmatpush.bf16.xpose.msra.mxu0 0
        %878 = vmatpush.bf16.xpose.msra.mxu0 0
        %879 = vmatpush.bf16.xpose.msra.mxu0 %v873
        %880 = vmatpush.bf16.xpose.msra.mxu0 %v870
        %881 = vmatpush.bf16.xpose.msra.mxu0 %v867
        %882 = vmatpush.bf16.xpose.msra.mxu0 %v864
        %883 = vmatmul.bf16.gmra.mxu0 %v852
        %v884 = vpop.f32.mrf.mxu0
        %v885 = vadd.f32 %v794, %v884
        %v886 = vpop.f32.mrf.mxu0
        %v887 = vadd.f32 %v795, %v886
        %888 = vmatmul.bf16.gmra.mxu0 %v855
        %v889 = vpop.f32.mrf.mxu0
        %v890 = vadd.f32 %v796, %v889
        %v891 = vpop.f32.mrf.mxu0
        %v892 = vadd.f32 %v797, %v891
        %893 = vmatmul.bf16.gmra.mxu0 %v858
        %v894 = vpop.f32.mrf.mxu0
        %v895 = vadd.f32 %v798, %v894
        %v896 = vpop.f32.mrf.mxu0
        %v897 = vadd.f32 %v799, %v896
        %898 = vmatmul.bf16.gmra.mxu0 %v861
        %v899 = vpop.f32.mrf.mxu0
        %v900 = vadd.f32 %v800, %v899
        %v901 = vpop.f32.mrf.mxu0
        %v902 = vadd.f32 %v801, %v901
        %903 = vdwg.mxu0
        %vm904 = vcmask 523264
        %v905 = vsel %vm904, %v885, -inf
        %906 = vmax.xlane.f32.xlu0 %v905
        %v907 = vpop.xlane.xlu0 %906
        %v908 = vsel %vm904, %v887, -inf
        %909 = vmax.xlane.f32.xlu0 %v908
        %v910 = vpop.xlane.xlu0 %909
        %v911 = vsel %vm904, %v890, -inf
        %912 = vmax.xlane.f32.xlu0 %v911
        %v913 = vpop.xlane.xlu0 %912
        %v914 = vsel %vm904, %v892, -inf
        %915 = vmax.xlane.f32.xlu0 %v914
        %v916 = vpop.xlane.xlu0 %915
        %v917 = vsel %vm904, %v895, -inf
        %918 = vmax.xlane.f32.xlu0 %v917
        %v919 = vpop.xlane.xlu0 %918
        %v920 = vsel %vm904, %v897, -inf
        %921 = vmax.xlane.f32.xlu0 %v920
        %v922 = vpop.xlane.xlu0 %921
        %v923 = vsel %vm904, %v900, -inf
        %924 = vmax.xlane.f32.xlu0 %v923
        %v925 = vpop.xlane.xlu0 %924
        %v926 = vsel %vm904, %v902, -inf
        %927 = vmax.xlane.f32.xlu0 %v926
        %v928 = vpop.xlane.xlu0 %927
        %v929 = vsub.f32 %v885, %v907
        %v930 = vsub.f32 %v887, %v910
        %v931 = vsub.f32 %v890, %v913
        %v932 = vsub.f32 %v892, %v916
        %v933 = vsub.f32 %v895, %v919
        %v934 = vsub.f32 %v897, %v922
        %v935 = vsub.f32 %v900, %v925
        %v936 = vsub.f32 %v902, %v928
        %v937 = vmul.f32 %v929, 1.442695
        %v938 = vpow.pop %v937
        %v939 = vmul.f32 %v930, 1.442695
        %v940 = vpow.pop %v939
        %v941 = vmul.f32 %v931, 1.442695
        %v942 = vpow.pop %v941
        %v943 = vmul.f32 %v932, 1.442695
        %v944 = vpow.pop %v943
        %v945 = vmul.f32 %v933, 1.442695
        %v946 = vpow.pop %v945
        %v947 = vmul.f32 %v934, 1.442695
        %v948 = vpow.pop %v947
        %v949 = vmul.f32 %v935, 1.442695
        %v950 = vpow.pop %v949
        %v951 = vmul.f32 %v936, 1.442695
        %v952 = vpow.pop %v951
        %v953 = vsel %vm904, %v938, 0.0
        %954 = vadd.xlane.f32.xlu0 %v953
        %v955 = vpop.xlane.xlu0 %954
        %v956 = vsel %vm904, %v940, 0.0
        %957 = vadd.xlane.f32.xlu0 %v956
        %v958 = vpop.xlane.xlu0 %957
        %v959 = vsel %vm904, %v942, 0.0
        %960 = vadd.xlane.f32.xlu0 %v959
        %v961 = vpop.xlane.xlu0 %960
        %v962 = vsel %vm904, %v944, 0.0
        %963 = vadd.xlane.f32.xlu0 %v962
        %v964 = vpop.xlane.xlu0 %963
        %v965 = vsel %vm904, %v946, 0.0
        %966 = vadd.xlane.f32.xlu0 %v965
        %v967 = vpop.xlane.xlu0 %966
        %v968 = vsel %vm904, %v948, 0.0
        %969 = vadd.xlane.f32.xlu0 %v968
        %v970 = vpop.xlane.xlu0 %969
        %v971 = vsel %vm904, %v950, 0.0
        %972 = vadd.xlane.f32.xlu0 %v971
        %v973 = vpop.xlane.xlu0 %972
        %v974 = vsel %vm904, %v952, 0.0
        %975 = vadd.xlane.f32.xlu0 %v974
        %v976 = vpop.xlane.xlu0 %975
        %v977 = vrcp.pop %v955
        %v978 = vmul.f32 %v955, %v977
        %v979 = vsub.f32 1.0, %v978
        %v980 = vmul.f32 %v977, %v979
        %v981 = vadd.f32 %v977, %v980
        %vm982 = vweird.f32 %v955
        %vm983 = vweird.f32 %v977
        %vm984 = vmor %vm982, %vm983
        %v985 = vsel %vm984, %v977, %v981
        %v986 = vand.u32 2147483647, %v955
        %vm987 = vcmp.eq.f32.partialorder %v986, 8.507059e+37
        %v988 = vand.u32 %v955, 2147483648
        %v989 = vor.u32 1.1754944e-38, %v988
        %v990 = vsel %vm987, %v989, %v985
        %v991 = vmul.f32 %v938, %v990
        %v992 = vrcp.pop %v958
        %v993 = vmul.f32 %v958, %v992
        %v994 = vsub.f32 1.0, %v993
        %v995 = vmul.f32 %v992, %v994
        %v996 = vadd.f32 %v992, %v995
        %vm997 = vweird.f32 %v958
        %vm998 = vweird.f32 %v992
        %vm999 = vmor %vm997, %vm998
        %v1000 = vsel %vm999, %v992, %v996
        %v1001 = vand.u32 2147483647, %v958
        %vm1002 = vcmp.eq.f32.partialorder %v1001, 8.507059e+37
        %v1003 = vand.u32 %v958, 2147483648
        %v1004 = vor.u32 1.1754944e-38, %v1003
        %v1005 = vsel %vm1002, %v1004, %v1000
        %v1006 = vmul.f32 %v940, %v1005
        %v1007 = vrcp.pop %v961
        %v1008 = vmul.f32 %v961, %v1007
        %v1009 = vsub.f32 1.0, %v1008
        %v1010 = vmul.f32 %v1007, %v1009
        %v1011 = vadd.f32 %v1007, %v1010
        %vm1012 = vweird.f32 %v961
        %vm1013 = vweird.f32 %v1007
        %vm1014 = vmor %vm1012, %vm1013
        %v1015 = vsel %vm1014, %v1007, %v1011
        %v1016 = vand.u32 2147483647, %v961
        %vm1017 = vcmp.eq.f32.partialorder %v1016, 8.507059e+37
        %v1018 = vand.u32 %v961, 2147483648
        %v1019 = vor.u32 1.1754944e-38, %v1018
        %v1020 = vsel %vm1017, %v1019, %v1015
        %v1021 = vmul.f32 %v942, %v1020
        %v1022 = vrcp.pop %v964
        %v1023 = vmul.f32 %v964, %v1022
        %v1024 = vsub.f32 1.0, %v1023
        %v1025 = vmul.f32 %v1022, %v1024
        %v1026 = vadd.f32 %v1022, %v1025
        %vm1027 = vweird.f32 %v964
        %vm1028 = vweird.f32 %v1022
        %vm1029 = vmor %vm1027, %vm1028
        %v1030 = vsel %vm1029, %v1022, %v1026
        %v1031 = vand.u32 2147483647, %v964
        %vm1032 = vcmp.eq.f32.partialorder %v1031, 8.507059e+37
        %v1033 = vand.u32 %v964, 2147483648
        %v1034 = vor.u32 1.1754944e-38, %v1033
        %v1035 = vsel %vm1032, %v1034, %v1030
        %v1036 = vmul.f32 %v944, %v1035
        %v1037 = vrcp.pop %v967
        %v1038 = vmul.f32 %v967, %v1037
        %v1039 = vsub.f32 1.0, %v1038
        %v1040 = vmul.f32 %v1037, %v1039
        %v1041 = vadd.f32 %v1037, %v1040
        %vm1042 = vweird.f32 %v967
        %vm1043 = vweird.f32 %v1037
        %vm1044 = vmor %vm1042, %vm1043
        %v1045 = vsel %vm1044, %v1037, %v1041
        %v1046 = vand.u32 2147483647, %v967
        %vm1047 = vcmp.eq.f32.partialorder %v1046, 8.507059e+37
        %v1048 = vand.u32 %v967, 2147483648
        %v1049 = vor.u32 1.1754944e-38, %v1048
        %v1050 = vsel %vm1047, %v1049, %v1045
        %v1051 = vmul.f32 %v946, %v1050
        %v1052 = vrcp.pop %v970
        %v1053 = vmul.f32 %v970, %v1052
        %v1054 = vsub.f32 1.0, %v1053
        %v1055 = vmul.f32 %v1052, %v1054
        %v1056 = vadd.f32 %v1052, %v1055
        %vm1057 = vweird.f32 %v970
        %vm1058 = vweird.f32 %v1052
        %vm1059 = vmor %vm1057, %vm1058
        %v1060 = vsel %vm1059, %v1052, %v1056
        %v1061 = vand.u32 2147483647, %v970
        %vm1062 = vcmp.eq.f32.partialorder %v1061, 8.507059e+37
        %v1063 = vand.u32 %v970, 2147483648
        %v1064 = vor.u32 1.1754944e-38, %v1063
        %v1065 = vsel %vm1062, %v1064, %v1060
        %v1066 = vmul.f32 %v948, %v1065
        %v1067 = vrcp.pop %v973
        %v1068 = vmul.f32 %v973, %v1067
        %v1069 = vsub.f32 1.0, %v1068
        %v1070 = vmul.f32 %v1067, %v1069
        %v1071 = vadd.f32 %v1067, %v1070
        %vm1072 = vweird.f32 %v973
        %vm1073 = vweird.f32 %v1067
        %vm1074 = vmor %vm1072, %vm1073
        %v1075 = vsel %vm1074, %v1067, %v1071
        %v1076 = vand.u32 2147483647, %v973
        %vm1077 = vcmp.eq.f32.partialorder %v1076, 8.507059e+37
        %v1078 = vand.u32 %v973, 2147483648
        %v1079 = vor.u32 1.1754944e-38, %v1078
        %v1080 = vsel %vm1077, %v1079, %v1075
        %v1081 = vmul.f32 %v950, %v1080
        %v1082 = vrcp.pop %v976
        %v1083 = vmul.f32 %v976, %v1082
        %v1084 = vsub.f32 1.0, %v1083
        %v1085 = vmul.f32 %v1082, %v1084
        %v1086 = vadd.f32 %v1082, %v1085
        %vm1087 = vweird.f32 %v976
        %vm1088 = vweird.f32 %v1082
        %vm1089 = vmor %vm1087, %vm1088
        %v1090 = vsel %vm1089, %v1082, %v1086
        %v1091 = vand.u32 2147483647, %v976
        %vm1092 = vcmp.eq.f32.partialorder %v1091, 8.507059e+37
        %v1093 = vand.u32 %v976, 2147483648
        %v1094 = vor.u32 1.1754944e-38, %v1093
        %v1095 = vsel %vm1092, %v1094, %v1090
        %v1096 = vmul.f32 %v952, %v1095
        %v1097 = vpack.c.bf16 %v991, %v991
        %v1098 = vpack.c.bf16 %v1006, %v1006
        %v1099 = vpack.c.bf16 %v1021, %v1021
        %v1100 = vpack.c.bf16 %v1036, %v1036
        %v1101 = vpack.c.bf16 %v1051, %v1051
        %v1102 = vpack.c.bf16 %v1066, %v1066
        %v1103 = vpack.c.bf16 %v1081, %v1081
        %v1104 = vpack.c.bf16 %v1096, %v1096
        %v1113 = vunpack.c.l.b16 %v1097
        %v1114 = vunpack.c.l.b16 %v1098
        %v1115 = vunpack.c.l.b16 %v1099
        %v1116 = vunpack.c.l.b16 %v1100
        %v1117 = vunpack.c.l.b16 %v1101
        %v1118 = vunpack.c.l.b16 %v1102
        %v1119 = vunpack.c.l.b16 %v1103
        %v1120 = vunpack.c.l.b16 %v1104
        %v1121 = vpack.c.b16 %v1114, %v1113
        %v1122 = vpack.c.b16 %v1116, %v1115
        %v1123 = vpack.c.b16 %v1118, %v1117
        %v1124 = vpack.c.b16 %v1120, %v1119
        %1125 = vrot.lane.b32.xlu0 %v838, 64
        %v1126 = vpop.permute.xlu0 %1125
        %1127 = vrot.lane.b32.xlu0 %v839, 64
        %v1128 = vpop.permute.xlu0 %1127
        %1129 = vrot.lane.b32.xlu0 %v840, 64
        %v1130 = vpop.permute.xlu0 %1129
        %1131 = vrot.lane.b32.xlu0 %v841, 64
        %v1132 = vpop.permute.xlu0 %1131
        %v1138 = vsel %vm904, %v1121, 0
        %v1141 = vsel %vm904, %v1122, 0
        %v1144 = vsel %vm904, %v1123, 0
        %v1147 = vsel %vm904, %v1124, 0
        %1149 = vmatpush.bf16.msra.mxu0 0
        %1150 = vmatpush.bf16.msra.mxu0 0
        %1151 = vmatpush.bf16.msra.mxu0 0
        %1152 = vmatpush.bf16.msra.mxu0 0
        %1153 = vmatpush.bf16.msra.mxu0 %v1132
        %1154 = vmatpush.bf16.msra.mxu0 %v1130
        %1155 = vmatpush.bf16.msra.mxu0 %v1128
        %1156 = vmatpush.bf16.msra.mxu0 %v1126
        %1157 = vmatmul.bf16.gmra.mxu0 %v1138
        %v1158 = vpop.f32.mrf.mxu0
        %v1159 = vadd.f32 0.0, %v1158
        %v1160 = vpop.f32.mrf.mxu0
        %v1161 = vadd.f32 0.0, %v1160
        %1162 = vmatmul.bf16.gmra.mxu0 %v1141
        %v1163 = vpop.f32.mrf.mxu0
        %v1164 = vadd.f32 0.0, %v1163
        %v1165 = vpop.f32.mrf.mxu0
        %v1166 = vadd.f32 0.0, %v1165
        %1167 = vmatmul.bf16.gmra.mxu0 %v1144
        %v1168 = vpop.f32.mrf.mxu0
        %v1169 = vadd.f32 0.0, %v1168
        %v1170 = vpop.f32.mrf.mxu0
        %v1171 = vadd.f32 0.0, %v1170
        %1172 = vmatmul.bf16.gmra.mxu0 %v1147
        %v1173 = vpop.f32.mrf.mxu0
        %v1174 = vadd.f32 0.0, %v1173
        %v1175 = vpop.f32.mrf.mxu0
        %v1176 = vadd.f32 0.0, %v1175
        %1177 = vdwg.mxu0
        %v1178 = vpack.c.bf16 %v1161, %v1159
        %v1179 = vpack.c.bf16 %v1166, %v1164
        %v1180 = vpack.c.bf16 %v1171, %v1169
        %v1181 = vpack.c.bf16 %v1176, %v1174
        %v1182 = vld [vmem:[%s6] sm:$0xf]
        %s1183 = scalar_lea.vmem [#allocation2], 64
        %v1184 = vld [vmem:[%s1183] sm:$0xff]
        %v1185 = vld [vmem:[%s1183 + $0x8] sm:$0xff]
        %v1186 = vld [vmem:[%s1183 + $0x10] sm:$0xff]
        %v1187 = vld [vmem:[%s1183 + $0x18] sm:$0xff]
        %v1188 = vld [vmem:[%s1183 + $0x20] sm:$0xff]
        %v1189 = vld [vmem:[%s1183 + $0x28] sm:$0xff]
        %v1190 = vld [vmem:[%s1183 + $0x30] sm:$0xff]
        %v1191 = vld [vmem:[%s1183 + $0x38] sm:$0xff]
        %1192 = vrot.lane.b32.xlu0 %v818, 120
        %v1193 = vpop.permute.xlu0 %1192
        %1194 = vrot.lane.b32.xlu0 %v819, 120
        %v1195 = vpop.permute.xlu0 %1194
        %1196 = vrot.lane.b32.xlu0 %v820, 120
        %v1197 = vpop.permute.xlu0 %1196
        %1198 = vrot.lane.b32.xlu0 %v821, 120
        %v1199 = vpop.permute.xlu0 %1198
        %1200 = vrot.lane.b32.xlu0 %v838, 88
        %v1201 = vpop.permute.xlu0 %1200
        %1202 = vrot.lane.b32.xlu0 %v839, 88
        %v1203 = vpop.permute.xlu0 %1202
        %1204 = vrot.lane.b32.xlu0 %v840, 88
        %v1205 = vpop.permute.xlu0 %1204
        %1206 = vrot.lane.b32.xlu0 %v841, 88
        %v1207 = vpop.permute.xlu0 %1206
        %v1209 = vsel %vm850, %v1193, 0
        %v1212 = vsel %vm850, %v1195, 0
        %v1215 = vsel %vm850, %v1197, 0
        %v1218 = vsel %vm850, %v1199, 0
        %v1221 = vsel %vm850, %v1201, 0
        %v1224 = vsel %vm850, %v1203, 0
        %v1227 = vsel %vm850, %v1205, 0
        %v1230 = vsel %vm850, %v1207, 0
        %1232 = vmatpush.bf16.xpose.msra.mxu0 0
        %1233 = vmatpush.bf16.xpose.msra.mxu0 0
        %1234 = vmatpush.bf16.xpose.msra.mxu0 0
        %1235 = vmatpush.bf16.xpose.msra.mxu0 0
        %1236 = vmatpush.bf16.xpose.msra.mxu0 %v1230
        %1237 = vmatpush.bf16.xpose.msra.mxu0 %v1227
        %1238 = vmatpush.bf16.xpose.msra.mxu0 %v1224
        %1239 = vmatpush.bf16.xpose.msra.mxu0 %v1221
        %1240 = vmatmul.bf16.gmra.mxu0 %v1209
        %v1241 = vpop.f32.mrf.mxu0
        %v1242 = vadd.f32 %v1184, %v1241
        %v1243 = vpop.f32.mrf.mxu0
        %v1244 = vadd.f32 %v1185, %v1243
        %1245 = vmatmul.bf16.gmra.mxu0 %v1212
        %v1246 = vpop.f32.mrf.mxu0
        %v1247 = vadd.f32 %v1186, %v1246
        %v1248 = vpop.f32.mrf.mxu0
        %v1249 = vadd.f32 %v1187, %v1248
        %1250 = vmatmul.bf16.gmra.mxu0 %v1215
        %v1251 = vpop.f32.mrf.mxu0
        %v1252 = vadd.f32 %v1188, %v1251
        %v1253 = vpop.f32.mrf.mxu0
        %v1254 = vadd.f32 %v1189, %v1253
        %1255 = vmatmul.bf16.gmra.mxu0 %v1218
        %v1256 = vpop.f32.mrf.mxu0
        %v1257 = vadd.f32 %v1190, %v1256
        %v1258 = vpop.f32.mrf.mxu0
        %v1259 = vadd.f32 %v1191, %v1258
        %1260 = vdwg.mxu0
        %v1261 = vsel %vm904, %v1242, -inf
        %1262 = vmax.xlane.f32.xlu0 %v1261
        %v1263 = vpop.xlane.xlu0 %1262
        %v1264 = vsel %vm904, %v1244, -inf
        %1265 = vmax.xlane.f32.xlu0 %v1264
        %v1266 = vpop.xlane.xlu0 %1265
        %v1267 = vsel %vm904, %v1247, -inf
        %1268 = vmax.xlane.f32.xlu0 %v1267
        %v1269 = vpop.xlane.xlu0 %1268
        %v1270 = vsel %vm904, %v1249, -inf
        %1271 = vmax.xlane.f32.xlu0 %v1270
        %v1272 = vpop.xlane.xlu0 %1271
        %v1273 = vsel %vm904, %v1252, -inf
        %1274 = vmax.xlane.f32.xlu0 %v1273
        %v1275 = vpop.xlane.xlu0 %1274
        %v1276 = vsel %vm904, %v1254, -inf
        %1277 = vmax.xlane.f32.xlu0 %v1276
        %v1278 = vpop.xlane.xlu0 %1277
        %v1279 = vsel %vm904, %v1257, -inf
        %1280 = vmax.xlane.f32.xlu0 %v1279
        %v1281 = vpop.xlane.xlu0 %1280
        %v1282 = vsel %vm904, %v1259, -inf
        %1283 = vmax.xlane.f32.xlu0 %v1282
        %v1284 = vpop.xlane.xlu0 %1283
        %v1285 = vsub.f32 %v1242, %v1263
        %v1286 = vsub.f32 %v1244, %v1266
        %v1287 = vsub.f32 %v1247, %v1269
        %v1288 = vsub.f32 %v1249, %v1272
        %v1289 = vsub.f32 %v1252, %v1275
        %v1290 = vsub.f32 %v1254, %v1278
        %v1291 = vsub.f32 %v1257, %v1281
        %v1292 = vsub.f32 %v1259, %v1284
        %v1293 = vmul.f32 %v1285, 1.442695
        %v1294 = vpow.pop %v1293
        %v1295 = vmul.f32 %v1286, 1.442695
        %v1296 = vpow.pop %v1295
        %v1297 = vmul.f32 %v1287, 1.442695
        %v1298 = vpow.pop %v1297
        %v1299 = vmul.f32 %v1288, 1.442695
        %v1300 = vpow.pop %v1299
        %v1301 = vmul.f32 %v1289, 1.442695
        %v1302 = vpow.pop %v1301
        %v1303 = vmul.f32 %v1290, 1.442695
        %v1304 = vpow.pop %v1303
        %v1305 = vmul.f32 %v1291, 1.442695
        %v1306 = vpow.pop %v1305
        %v1307 = vmul.f32 %v1292, 1.442695
        %v1308 = vpow.pop %v1307
        %v1309 = vsel %vm904, %v1294, 0.0
        %1310 = vadd.xlane.f32.xlu0 %v1309
        %v1311 = vpop.xlane.xlu0 %1310
        %v1312 = vsel %vm904, %v1296, 0.0
        %1313 = vadd.xlane.f32.xlu0 %v1312
        %v1314 = vpop.xlane.xlu0 %1313
        %v1315 = vsel %vm904, %v1298, 0.0
        %1316 = vadd.xlane.f32.xlu0 %v1315
        %v1317 = vpop.xlane.xlu0 %1316
        %v1318 = vsel %vm904, %v1300, 0.0
        %1319 = vadd.xlane.f32.xlu0 %v1318
        %v1320 = vpop.xlane.xlu0 %1319
        %v1321 = vsel %vm904, %v1302, 0.0
        %1322 = vadd.xlane.f32.xlu0 %v1321
        %v1323 = vpop.xlane.xlu0 %1322
        %v1324 = vsel %vm904, %v1304, 0.0
        %1325 = vadd.xlane.f32.xlu0 %v1324
        %v1326 = vpop.xlane.xlu0 %1325
        %v1327 = vsel %vm904, %v1306, 0.0
        %1328 = vadd.xlane.f32.xlu0 %v1327
        %v1329 = vpop.xlane.xlu0 %1328
        %v1330 = vsel %vm904, %v1308, 0.0
        %1331 = vadd.xlane.f32.xlu0 %v1330
        %v1332 = vpop.xlane.xlu0 %1331
        %v1333 = vrcp.pop %v1311
        %v1334 = vmul.f32 %v1311, %v1333
        %v1335 = vsub.f32 1.0, %v1334
        %v1336 = vmul.f32 %v1333, %v1335
        %v1337 = vadd.f32 %v1333, %v1336
        %vm1338 = vweird.f32 %v1311
        %vm1339 = vweird.f32 %v1333
        %vm1340 = vmor %vm1338, %vm1339
        %v1341 = vsel %vm1340, %v1333, %v1337
        %v1342 = vand.u32 2147483647, %v1311
        %vm1343 = vcmp.eq.f32.partialorder %v1342, 8.507059e+37
        %v1344 = vand.u32 %v1311, 2147483648
        %v1345 = vor.u32 1.1754944e-38, %v1344
        %v1346 = vsel %vm1343, %v1345, %v1341
        %v1347 = vmul.f32 %v1294, %v1346
        %v1348 = vrcp.pop %v1314
        %v1349 = vmul.f32 %v1314, %v1348
        %v1350 = vsub.f32 1.0, %v1349
        %v1351 = vmul.f32 %v1348, %v1350
        %v1352 = vadd.f32 %v1348, %v1351
        %vm1353 = vweird.f32 %v1314
        %vm1354 = vweird.f32 %v1348
        %vm1355 = vmor %vm1353, %vm1354
        %v1356 = vsel %vm1355, %v1348, %v1352
        %v1357 = vand.u32 2147483647, %v1314
        %vm1358 = vcmp.eq.f32.partialorder %v1357, 8.507059e+37
        %v1359 = vand.u32 %v1314, 2147483648
        %v1360 = vor.u32 1.1754944e-38, %v1359
        %v1361 = vsel %vm1358, %v1360, %v1356
        %v1362 = vmul.f32 %v1296, %v1361
        %v1363 = vrcp.pop %v1317
        %v1364 = vmul.f32 %v1317, %v1363
        %v1365 = vsub.f32 1.0, %v1364
        %v1366 = vmul.f32 %v1363, %v1365
        %v1367 = vadd.f32 %v1363, %v1366
        %vm1368 = vweird.f32 %v1317
        %vm1369 = vweird.f32 %v1363
        %vm1370 = vmor %vm1368, %vm1369
        %v1371 = vsel %vm1370, %v1363, %v1367
        %v1372 = vand.u32 2147483647, %v1317
        %vm1373 = vcmp.eq.f32.partialorder %v1372, 8.507059e+37
        %v1374 = vand.u32 %v1317, 2147483648
        %v1375 = vor.u32 1.1754944e-38, %v1374
        %v1376 = vsel %vm1373, %v1375, %v1371
        %v1377 = vmul.f32 %v1298, %v1376
        %v1378 = vrcp.pop %v1320
        %v1379 = vmul.f32 %v1320, %v1378
        %v1380 = vsub.f32 1.0, %v1379
        %v1381 = vmul.f32 %v1378, %v1380
        %v1382 = vadd.f32 %v1378, %v1381
        %vm1383 = vweird.f32 %v1320
        %vm1384 = vweird.f32 %v1378
        %vm1385 = vmor %vm1383, %vm1384
        %v1386 = vsel %vm1385, %v1378, %v1382
        %v1387 = vand.u32 2147483647, %v1320
        %vm1388 = vcmp.eq.f32.partialorder %v1387, 8.507059e+37
        %v1389 = vand.u32 %v1320, 2147483648
        %v1390 = vor.u32 1.1754944e-38, %v1389
        %v1391 = vsel %vm1388, %v1390, %v1386
        %v1392 = vmul.f32 %v1300, %v1391
        %v1393 = vrcp.pop %v1323
        %v1394 = vmul.f32 %v1323, %v1393
        %v1395 = vsub.f32 1.0, %v1394
        %v1396 = vmul.f32 %v1393, %v1395
        %v1397 = vadd.f32 %v1393, %v1396
        %vm1398 = vweird.f32 %v1323
        %vm1399 = vweird.f32 %v1393
        %vm1400 = vmor %vm1398, %vm1399
        %v1401 = vsel %vm1400, %v1393, %v1397
        %v1402 = vand.u32 2147483647, %v1323
        %vm1403 = vcmp.eq.f32.partialorder %v1402, 8.507059e+37
        %v1404 = vand.u32 %v1323, 2147483648
        %v1405 = vor.u32 1.1754944e-38, %v1404
        %v1406 = vsel %vm1403, %v1405, %v1401
        %v1407 = vmul.f32 %v1302, %v1406
        %v1408 = vrcp.pop %v1326
        %v1409 = vmul.f32 %v1326, %v1408
        %v1410 = vsub.f32 1.0, %v1409
        %v1411 = vmul.f32 %v1408, %v1410
        %v1412 = vadd.f32 %v1408, %v1411
        %vm1413 = vweird.f32 %v1326
        %vm1414 = vweird.f32 %v1408
        %vm1415 = vmor %vm1413, %vm1414
        %v1416 = vsel %vm1415, %v1408, %v1412
        %v1417 = vand.u32 2147483647, %v1326
        %vm1418 = vcmp.eq.f32.partialorder %v1417, 8.507059e+37
        %v1419 = vand.u32 %v1326, 2147483648
        %v1420 = vor.u32 1.1754944e-38, %v1419
        %v1421 = vsel %vm1418, %v1420, %v1416
        %v1422 = vmul.f32 %v1304, %v1421
        %v1423 = vrcp.pop %v1329
        %v1424 = vmul.f32 %v1329, %v1423
        %v1425 = vsub.f32 1.0, %v1424
        %v1426 = vmul.f32 %v1423, %v1425
        %v1427 = vadd.f32 %v1423, %v1426
        %vm1428 = vweird.f32 %v1329
        %vm1429 = vweird.f32 %v1423
        %vm1430 = vmor %vm1428, %vm1429
        %v1431 = vsel %vm1430, %v1423, %v1427
        %v1432 = vand.u32 2147483647, %v1329
        %vm1433 = vcmp.eq.f32.partialorder %v1432, 8.507059e+37
        %v1434 = vand.u32 %v1329, 2147483648
        %v1435 = vor.u32 1.1754944e-38, %v1434
        %v1436 = vsel %vm1433, %v1435, %v1431
        %v1437 = vmul.f32 %v1306, %v1436
        %v1438 = vrcp.pop %v1332
        %v1439 = vmul.f32 %v1332, %v1438
        %v1440 = vsub.f32 1.0, %v1439
        %v1441 = vmul.f32 %v1438, %v1440
        %v1442 = vadd.f32 %v1438, %v1441
        %vm1443 = vweird.f32 %v1332
        %vm1444 = vweird.f32 %v1438
        %vm1445 = vmor %vm1443, %vm1444
        %v1446 = vsel %vm1445, %v1438, %v1442
        %v1447 = vand.u32 2147483647, %v1332
        %vm1448 = vcmp.eq.f32.partialorder %v1447, 8.507059e+37
        %v1449 = vand.u32 %v1332, 2147483648
        %v1450 = vor.u32 1.1754944e-38, %v1449
        %v1451 = vsel %vm1448, %v1450, %v1446
        %v1452 = vmul.f32 %v1308, %v1451
        %v1453 = vpack.c.bf16 %v1347, %v1347
        %v1454 = vpack.c.bf16 %v1362, %v1362
        %v1455 = vpack.c.bf16 %v1377, %v1377
        %v1456 = vpack.c.bf16 %v1392, %v1392
        %v1457 = vpack.c.bf16 %v1407, %v1407
        %v1458 = vpack.c.bf16 %v1422, %v1422
        %v1459 = vpack.c.bf16 %v1437, %v1437
        %v1460 = vpack.c.bf16 %v1452, %v1452
        %v1469 = vunpack.c.l.b16 %v1453
        %v1470 = vunpack.c.l.b16 %v1454
        %v1471 = vunpack.c.l.b16 %v1455
        %v1472 = vunpack.c.l.b16 %v1456
        %v1473 = vunpack.c.l.b16 %v1457
        %v1474 = vunpack.c.l.b16 %v1458
        %v1475 = vunpack.c.l.b16 %v1459
        %v1476 = vunpack.c.l.b16 %v1460
        %v1477 = vpack.c.b16 %v1470, %v1469
        %v1478 = vpack.c.b16 %v1472, %v1471
        %v1479 = vpack.c.b16 %v1474, %v1473
        %v1480 = vpack.c.b16 %v1476, %v1475
        %1481 = vrot.lane.b32.xlu0 %v838, 56
        %v1482 = vpop.permute.xlu0 %1481
        %1483 = vrot.lane.b32.xlu0 %v839, 56
        %v1484 = vpop.permute.xlu0 %1483
        %1485 = vrot.lane.b32.xlu0 %v840, 56
        %v1486 = vpop.permute.xlu0 %1485
        %1487 = vrot.lane.b32.xlu0 %v841, 56
        %v1488 = vpop.permute.xlu0 %1487
        %v1494 = vsel %vm904, %v1477, 0
        %v1497 = vsel %vm904, %v1478, 0
        %v1500 = vsel %vm904, %v1479, 0
        %v1503 = vsel %vm904, %v1480, 0
        %1505 = vmatpush.bf16.msra.mxu0 0
        %1506 = vmatpush.bf16.msra.mxu0 0
        %1507 = vmatpush.bf16.msra.mxu0 0
        %1508 = vmatpush.bf16.msra.mxu0 0
        %1509 = vmatpush.bf16.msra.mxu0 %v1488
        %1510 = vmatpush.bf16.msra.mxu0 %v1486
        %1511 = vmatpush.bf16.msra.mxu0 %v1484
        %1512 = vmatpush.bf16.msra.mxu0 %v1482
        %1513 = vmatmul.bf16.gmra.mxu0 %v1494
        %v1514 = vpop.f32.mrf.mxu0
        %v1515 = vadd.f32 0.0, %v1514
        %v1516 = vpop.f32.mrf.mxu0
        %v1517 = vadd.f32 0.0, %v1516
        %1518 = vmatmul.bf16.gmra.mxu0 %v1497
        %v1519 = vpop.f32.mrf.mxu0
        %v1520 = vadd.f32 0.0, %v1519
        %v1521 = vpop.f32.mrf.mxu0
        %v1522 = vadd.f32 0.0, %v1521
        %1523 = vmatmul.bf16.gmra.mxu0 %v1500
        %v1524 = vpop.f32.mrf.mxu0
        %v1525 = vadd.f32 0.0, %v1524
        %v1526 = vpop.f32.mrf.mxu0
        %v1527 = vadd.f32 0.0, %v1526
        %1528 = vmatmul.bf16.gmra.mxu0 %v1503
        %v1529 = vpop.f32.mrf.mxu0
        %v1530 = vadd.f32 0.0, %v1529
        %v1531 = vpop.f32.mrf.mxu0
        %v1532 = vadd.f32 0.0, %v1531
        %1533 = vdwg.mxu0
        %v1534 = vpack.c.bf16 %v1517, %v1515
        %v1535 = vpack.c.bf16 %v1522, %v1520
        %v1536 = vpack.c.bf16 %v1527, %v1525
        %v1537 = vpack.c.bf16 %v1532, %v1530
        %s1538 = scalar_lea.vmem %s6, 4
        %v1539 = vld [vmem:[%s1538] sm:$0xf]
        %v1541 = vsel %vm850, %v1534, 0
        %v1544 = vsel %vm850, %v1535, 0
        %v1547 = vsel %vm850, %v1536, 0
        %v1550 = vsel %vm850, %v1537, 0
        %vm1552 = vcmask 1043456
        %v1554 = vsel %vm1552, %v1539, 0
        %1556 = vmatpush.bf16.msra.mxu0 0
        %1557 = vmatpush.bf16.msra.mxu0 0
        %1558 = vmatpush.bf16.msra.mxu0 0
        %1559 = vmatpush.bf16.msra.mxu0 0
        %1560 = vmatpush.bf16.msra.mxu0 0
        %1561 = vmatpush.bf16.msra.mxu0 0
        %1562 = vmatpush.bf16.msra.mxu0 0
        %1563 = vmatpush.bf16.msra.mxu0 %v1554
        %1564 = vmatmul.bf16.gmra.mxu0 %v1541
        %v1565 = vpop.f32.mrf.mxu0
        %v1566 = vadd.f32 0.0, %v1565
        %v1567 = vpop.f32.mrf.mxu0
        %v1568 = vadd.f32 0.0, %v1567
        %1569 = vmatmul.bf16.gmra.mxu0 %v1544
        %v1570 = vpop.f32.mrf.mxu0
        %v1571 = vadd.f32 0.0, %v1570
        %v1572 = vpop.f32.mrf.mxu0
        %v1573 = vadd.f32 0.0, %v1572
        %1574 = vmatmul.bf16.gmra.mxu0 %v1547
        %v1575 = vpop.f32.mrf.mxu0
        %v1576 = vadd.f32 0.0, %v1575
        %v1577 = vpop.f32.mrf.mxu0
        %v1578 = vadd.f32 0.0, %v1577
        %1579 = vmatmul.bf16.gmra.mxu0 %v1550
        %v1580 = vpop.f32.mrf.mxu0
        %v1581 = vadd.f32 0.0, %v1580
        %v1582 = vpop.f32.mrf.mxu0
        %v1583 = vadd.f32 0.0, %v1582
        %1584 = vdwg.mxu0
        %v1586 = vsel %vm850, %v1178, 0
        %v1589 = vsel %vm850, %v1179, 0
        %v1592 = vsel %vm850, %v1180, 0
        %v1595 = vsel %vm850, %v1181, 0
        %v1598 = vsel %vm1552, %v1182, 0
        %1600 = vmatpush.bf16.msra.mxu0 0
        %1601 = vmatpush.bf16.msra.mxu0 0
        %1602 = vmatpush.bf16.msra.mxu0 0
        %1603 = vmatpush.bf16.msra.mxu0 0
        %1604 = vmatpush.bf16.msra.mxu0 0
        %1605 = vmatpush.bf16.msra.mxu0 0
        %1606 = vmatpush.bf16.msra.mxu0 0
        %1607 = vmatpush.bf16.msra.mxu0 %v1598
        %1608 = vmatmul.bf16.gmra.mxu0 %v1586
        %v1609 = vpop.f32.mrf.mxu0
        %v1610 = vadd.f32 %v1566, %v1609
        %v1611 = vpop.f32.mrf.mxu0
        %v1612 = vadd.f32 %v1568, %v1611
        %1613 = vmatmul.bf16.gmra.mxu0 %v1589
        %v1614 = vpop.f32.mrf.mxu0
        %v1615 = vadd.f32 %v1571, %v1614
        %v1616 = vpop.f32.mrf.mxu0
        %v1617 = vadd.f32 %v1573, %v1616
        %1618 = vmatmul.bf16.gmra.mxu0 %v1592
        %v1619 = vpop.f32.mrf.mxu0
        %v1620 = vadd.f32 %v1576, %v1619
        %v1621 = vpop.f32.mrf.mxu0
        %v1622 = vadd.f32 %v1578, %v1621
        %1623 = vmatmul.bf16.gmra.mxu0 %v1595
        %v1624 = vpop.f32.mrf.mxu0
        %v1625 = vadd.f32 %v1581, %v1624
        %v1626 = vpop.f32.mrf.mxu0
        %v1627 = vadd.f32 %v1583, %v1626
        %1628 = vdwg.mxu0
        %s1629 = scalar_lea.vmem [#allocation2], 128
        %v1630 = vld [vmem:[%s1629] sm:$0xff]
        %v1631 = vld [vmem:[%s1629 + $0x8] sm:$0xff]
        %v1632 = vld [vmem:[%s1629 + $0x10] sm:$0xff]
        %v1633 = vld [vmem:[%s1629 + $0x18] sm:$0xff]
        %v1634 = vld [vmem:[%s1629 + $0x20] sm:$0xff]
        %v1635 = vld [vmem:[%s1629 + $0x28] sm:$0xff]
        %v1636 = vld [vmem:[%s1629 + $0x30] sm:$0xff]
        %v1637 = vld [vmem:[%s1629 + $0x38] sm:$0xff]
        %1638 = vrot.lane.b32.xlu0 %v818, 112
        %v1639 = vpop.permute.xlu0 %1638
        %1640 = vrot.lane.b32.xlu0 %v819, 112
        %v1641 = vpop.permute.xlu0 %1640
        %1642 = vrot.lane.b32.xlu0 %v820, 112
        %v1643 = vpop.permute.xlu0 %1642
        %1644 = vrot.lane.b32.xlu0 %v821, 112
        %v1645 = vpop.permute.xlu0 %1644
        %1646 = vrot.lane.b32.xlu0 %v838, 80
        %v1647 = vpop.permute.xlu0 %1646
        %1648 = vrot.lane.b32.xlu0 %v839, 80
        %v1649 = vpop.permute.xlu0 %1648
        %1650 = vrot.lane.b32.xlu0 %v840, 80
        %v1651 = vpop.permute.xlu0 %1650
        %1652 = vrot.lane.b32.xlu0 %v841, 80
        %v1653 = vpop.permute.xlu0 %1652
        %v1655 = vsel %vm850, %v1639, 0
        %v1658 = vsel %vm850, %v1641, 0
        %v1661 = vsel %vm850, %v1643, 0
        %v1664 = vsel %vm850, %v1645, 0
        %v1667 = vsel %vm850, %v1647, 0
        %v1670 = vsel %vm850, %v1649, 0
        %v1673 = vsel %vm850, %v1651, 0
        %v1676 = vsel %vm850, %v1653, 0
        %1678 = vmatpush.bf16.xpose.msra.mxu0 0
        %1679 = vmatpush.bf16.xpose.msra.mxu0 0
        %1680 = vmatpush.bf16.xpose.msra.mxu0 0
        %1681 = vmatpush.bf16.xpose.msra.mxu0 0
        %1682 = vmatpush.bf16.xpose.msra.mxu0 %v1676
        %1683 = vmatpush.bf16.xpose.msra.mxu0 %v1673
        %1684 = vmatpush.bf16.xpose.msra.mxu0 %v1670
        %1685 = vmatpush.bf16.xpose.msra.mxu0 %v1667
        %1686 = vmatmul.bf16.gmra.mxu0 %v1655
        %v1687 = vpop.f32.mrf.mxu0
        %v1688 = vadd.f32 %v1630, %v1687
        %v1689 = vpop.f32.mrf.mxu0
        %v1690 = vadd.f32 %v1631, %v1689
        %1691 = vmatmul.bf16.gmra.mxu0 %v1658
        %v1692 = vpop.f32.mrf.mxu0
        %v1693 = vadd.f32 %v1632, %v1692
        %v1694 = vpop.f32.mrf.mxu0
        %v1695 = vadd.f32 %v1633, %v1694
        %1696 = vmatmul.bf16.gmra.mxu0 %v1661
        %v1697 = vpop.f32.mrf.mxu0
        %v1698 = vadd.f32 %v1634, %v1697
        %v1699 = vpop.f32.mrf.mxu0
        %v1700 = vadd.f32 %v1635, %v1699
        %1701 = vmatmul.bf16.gmra.mxu0 %v1664
        %v1702 = vpop.f32.mrf.mxu0
        %v1703 = vadd.f32 %v1636, %v1702
        %v1704 = vpop.f32.mrf.mxu0
        %v1705 = vadd.f32 %v1637, %v1704
        %1706 = vdwg.mxu0
        %v1707 = vsel %vm904, %v1688, -inf
        %1708 = vmax.xlane.f32.xlu0 %v1707
        %v1709 = vpop.xlane.xlu0 %1708
        %v1710 = vsel %vm904, %v1690, -inf
        %1711 = vmax.xlane.f32.xlu0 %v1710
        %v1712 = vpop.xlane.xlu0 %1711
        %v1713 = vsel %vm904, %v1693, -inf
        %1714 = vmax.xlane.f32.xlu0 %v1713
        %v1715 = vpop.xlane.xlu0 %1714
        %v1716 = vsel %vm904, %v1695, -inf
        %1717 = vmax.xlane.f32.xlu0 %v1716
        %v1718 = vpop.xlane.xlu0 %1717
        %v1719 = vsel %vm904, %v1698, -inf
        %1720 = vmax.xlane.f32.xlu0 %v1719
        %v1721 = vpop.xlane.xlu0 %1720
        %v1722 = vsel %vm904, %v1700, -inf
        %1723 = vmax.xlane.f32.xlu0 %v1722
        %v1724 = vpop.xlane.xlu0 %1723
        %v1725 = vsel %vm904, %v1703, -inf
        %1726 = vmax.xlane.f32.xlu0 %v1725
        %v1727 = vpop.xlane.xlu0 %1726
        %v1728 = vsel %vm904, %v1705, -inf
        %1729 = vmax.xlane.f32.xlu0 %v1728
        %v1730 = vpop.xlane.xlu0 %1729
        %v1731 = vsub.f32 %v1688, %v1709
        %v1732 = vsub.f32 %v1690, %v1712
        %v1733 = vsub.f32 %v1693, %v1715
        %v1734 = vsub.f32 %v1695, %v1718
        %v1735 = vsub.f32 %v1698, %v1721
        %v1736 = vsub.f32 %v1700, %v1724
        %v1737 = vsub.f32 %v1703, %v1727
        %v1738 = vsub.f32 %v1705, %v1730
        %v1739 = vmul.f32 %v1731, 1.442695
        %v1740 = vpow.pop %v1739
        %v1741 = vmul.f32 %v1732, 1.442695
        %v1742 = vpow.pop %v1741
        %v1743 = vmul.f32 %v1733, 1.442695
        %v1744 = vpow.pop %v1743
        %v1745 = vmul.f32 %v1734, 1.442695
        %v1746 = vpow.pop %v1745
        %v1747 = vmul.f32 %v1735, 1.442695
        %v1748 = vpow.pop %v1747
        %v1749 = vmul.f32 %v1736, 1.442695
        %v1750 = vpow.pop %v1749
        %v1751 = vmul.f32 %v1737, 1.442695
        %v1752 = vpow.pop %v1751
        %v1753 = vmul.f32 %v1738, 1.442695
        %v1754 = vpow.pop %v1753
        %v1755 = vsel %vm904, %v1740, 0.0
        %1756 = vadd.xlane.f32.xlu0 %v1755
        %v1757 = vpop.xlane.xlu0 %1756
        %v1758 = vsel %vm904, %v1742, 0.0
        %1759 = vadd.xlane.f32.xlu0 %v1758
        %v1760 = vpop.xlane.xlu0 %1759
        %v1761 = vsel %vm904, %v1744, 0.0
        %1762 = vadd.xlane.f32.xlu0 %v1761
        %v1763 = vpop.xlane.xlu0 %1762
        %v1764 = vsel %vm904, %v1746, 0.0
        %1765 = vadd.xlane.f32.xlu0 %v1764
        %v1766 = vpop.xlane.xlu0 %1765
        %v1767 = vsel %vm904, %v1748, 0.0
        %1768 = vadd.xlane.f32.xlu0 %v1767
        %v1769 = vpop.xlane.xlu0 %1768
        %v1770 = vsel %vm904, %v1750, 0.0
        %1771 = vadd.xlane.f32.xlu0 %v1770
        %v1772 = vpop.xlane.xlu0 %1771
        %v1773 = vsel %vm904, %v1752, 0.0
        %1774 = vadd.xlane.f32.xlu0 %v1773
        %v1775 = vpop.xlane.xlu0 %1774
        %v1776 = vsel %vm904, %v1754, 0.0
        %1777 = vadd.xlane.f32.xlu0 %v1776
        %v1778 = vpop.xlane.xlu0 %1777
        %v1779 = vrcp.pop %v1757
        %v1780 = vmul.f32 %v1757, %v1779
        %v1781 = vsub.f32 1.0, %v1780
        %v1782 = vmul.f32 %v1779, %v1781
        %v1783 = vadd.f32 %v1779, %v1782
        %vm1784 = vweird.f32 %v1757
        %vm1785 = vweird.f32 %v1779
        %vm1786 = vmor %vm1784, %vm1785
        %v1787 = vsel %vm1786, %v1779, %v1783
        %v1788 = vand.u32 2147483647, %v1757
        %vm1789 = vcmp.eq.f32.partialorder %v1788, 8.507059e+37
        %v1790 = vand.u32 %v1757, 2147483648
        %v1791 = vor.u32 1.1754944e-38, %v1790
        %v1792 = vsel %vm1789, %v1791, %v1787
        %v1793 = vmul.f32 %v1740, %v1792
        %v1794 = vrcp.pop %v1760
        %v1795 = vmul.f32 %v1760, %v1794
        %v1796 = vsub.f32 1.0, %v1795
        %v1797 = vmul.f32 %v1794, %v1796
        %v1798 = vadd.f32 %v1794, %v1797
        %vm1799 = vweird.f32 %v1760
        %vm1800 = vweird.f32 %v1794
        %vm1801 = vmor %vm1799, %vm1800
        %v1802 = vsel %vm1801, %v1794, %v1798
        %v1803 = vand.u32 2147483647, %v1760
        %vm1804 = vcmp.eq.f32.partialorder %v1803, 8.507059e+37
        %v1805 = vand.u32 %v1760, 2147483648
        %v1806 = vor.u32 1.1754944e-38, %v1805
        %v1807 = vsel %vm1804, %v1806, %v1802
        %v1808 = vmul.f32 %v1742, %v1807
        %v1809 = vrcp.pop %v1763
        %v1810 = vmul.f32 %v1763, %v1809
        %v1811 = vsub.f32 1.0, %v1810
        %v1812 = vmul.f32 %v1809, %v1811
        %v1813 = vadd.f32 %v1809, %v1812
        %vm1814 = vweird.f32 %v1763
        %vm1815 = vweird.f32 %v1809
        %vm1816 = vmor %vm1814, %vm1815
        %v1817 = vsel %vm1816, %v1809, %v1813
        %v1818 = vand.u32 2147483647, %v1763
        %vm1819 = vcmp.eq.f32.partialorder %v1818, 8.507059e+37
        %v1820 = vand.u32 %v1763, 2147483648
        %v1821 = vor.u32 1.1754944e-38, %v1820
        %v1822 = vsel %vm1819, %v1821, %v1817
        %v1823 = vmul.f32 %v1744, %v1822
        %v1824 = vrcp.pop %v1766
        %v1825 = vmul.f32 %v1766, %v1824
        %v1826 = vsub.f32 1.0, %v1825
        %v1827 = vmul.f32 %v1824, %v1826
        %v1828 = vadd.f32 %v1824, %v1827
        %vm1829 = vweird.f32 %v1766
        %vm1830 = vweird.f32 %v1824
        %vm1831 = vmor %vm1829, %vm1830
        %v1832 = vsel %vm1831, %v1824, %v1828
        %v1833 = vand.u32 2147483647, %v1766
        %vm1834 = vcmp.eq.f32.partialorder %v1833, 8.507059e+37
        %v1835 = vand.u32 %v1766, 2147483648
        %v1836 = vor.u32 1.1754944e-38, %v1835
        %v1837 = vsel %vm1834, %v1836, %v1832
        %v1838 = vmul.f32 %v1746, %v1837
        %v1839 = vrcp.pop %v1769
        %v1840 = vmul.f32 %v1769, %v1839
        %v1841 = vsub.f32 1.0, %v1840
        %v1842 = vmul.f32 %v1839, %v1841
        %v1843 = vadd.f32 %v1839, %v1842
        %vm1844 = vweird.f32 %v1769
        %vm1845 = vweird.f32 %v1839
        %vm1846 = vmor %vm1844, %vm1845
        %v1847 = vsel %vm1846, %v1839, %v1843
        %v1848 = vand.u32 2147483647, %v1769
        %vm1849 = vcmp.eq.f32.partialorder %v1848, 8.507059e+37
        %v1850 = vand.u32 %v1769, 2147483648
        %v1851 = vor.u32 1.1754944e-38, %v1850
        %v1852 = vsel %vm1849, %v1851, %v1847
        %v1853 = vmul.f32 %v1748, %v1852
        %v1854 = vrcp.pop %v1772
        %v1855 = vmul.f32 %v1772, %v1854
        %v1856 = vsub.f32 1.0, %v1855
        %v1857 = vmul.f32 %v1854, %v1856
        %v1858 = vadd.f32 %v1854, %v1857
        %vm1859 = vweird.f32 %v1772
        %vm1860 = vweird.f32 %v1854
        %vm1861 = vmor %vm1859, %vm1860
        %v1862 = vsel %vm1861, %v1854, %v1858
        %v1863 = vand.u32 2147483647, %v1772
        %vm1864 = vcmp.eq.f32.partialorder %v1863, 8.507059e+37
        %v1865 = vand.u32 %v1772, 2147483648
        %v1866 = vor.u32 1.1754944e-38, %v1865
        %v1867 = vsel %vm1864, %v1866, %v1862
        %v1868 = vmul.f32 %v1750, %v1867
        %v1869 = vrcp.pop %v1775
        %v1870 = vmul.f32 %v1775, %v1869
        %v1871 = vsub.f32 1.0, %v1870
        %v1872 = vmul.f32 %v1869, %v1871
        %v1873 = vadd.f32 %v1869, %v1872
        %vm1874 = vweird.f32 %v1775
        %vm1875 = vweird.f32 %v1869
        %vm1876 = vmor %vm1874, %vm1875
        %v1877 = vsel %vm1876, %v1869, %v1873
        %v1878 = vand.u32 2147483647, %v1775
        %vm1879 = vcmp.eq.f32.partialorder %v1878, 8.507059e+37
        %v1880 = vand.u32 %v1775, 2147483648
        %v1881 = vor.u32 1.1754944e-38, %v1880
        %v1882 = vsel %vm1879, %v1881, %v1877
        %v1883 = vmul.f32 %v1752, %v1882
        %v1884 = vrcp.pop %v1778
        %v1885 = vmul.f32 %v1778, %v1884
        %v1886 = vsub.f32 1.0, %v1885
        %v1887 = vmul.f32 %v1884, %v1886
        %v1888 = vadd.f32 %v1884, %v1887
        %vm1889 = vweird.f32 %v1778
        %vm1890 = vweird.f32 %v1884
        %vm1891 = vmor %vm1889, %vm1890
        %v1892 = vsel %vm1891, %v1884, %v1888
        %v1893 = vand.u32 2147483647, %v1778
        %vm1894 = vcmp.eq.f32.partialorder %v1893, 8.507059e+37
        %v1895 = vand.u32 %v1778, 2147483648
        %v1896 = vor.u32 1.1754944e-38, %v1895
        %v1897 = vsel %vm1894, %v1896, %v1892
        %v1898 = vmul.f32 %v1754, %v1897
        %v1899 = vpack.c.bf16 %v1793, %v1793
        %v1900 = vpack.c.bf16 %v1808, %v1808
        %v1901 = vpack.c.bf16 %v1823, %v1823
        %v1902 = vpack.c.bf16 %v1838, %v1838
        %v1903 = vpack.c.bf16 %v1853, %v1853
        %v1904 = vpack.c.bf16 %v1868, %v1868
        %v1905 = vpack.c.bf16 %v1883, %v1883
        %v1906 = vpack.c.bf16 %v1898, %v1898
        %v1915 = vunpack.c.l.b16 %v1899
        %v1916 = vunpack.c.l.b16 %v1900
        %v1917 = vunpack.c.l.b16 %v1901
        %v1918 = vunpack.c.l.b16 %v1902
        %v1919 = vunpack.c.l.b16 %v1903
        %v1920 = vunpack.c.l.b16 %v1904
        %v1921 = vunpack.c.l.b16 %v1905
        %v1922 = vunpack.c.l.b16 %v1906
        %v1923 = vpack.c.b16 %v1916, %v1915
        %v1924 = vpack.c.b16 %v1918, %v1917
        %v1925 = vpack.c.b16 %v1920, %v1919
        %v1926 = vpack.c.b16 %v1922, %v1921
        %1927 = vrot.lane.b32.xlu0 %v838, 48
        %v1928 = vpop.permute.xlu0 %1927
        %1929 = vrot.lane.b32.xlu0 %v839, 48
        %v1930 = vpop.permute.xlu0 %1929
        %1931 = vrot.lane.b32.xlu0 %v840, 48
        %v1932 = vpop.permute.xlu0 %1931
        %1933 = vrot.lane.b32.xlu0 %v841, 48
        %v1934 = vpop.permute.xlu0 %1933
        %v1940 = vsel %vm904, %v1923, 0
        %v1943 = vsel %vm904, %v1924, 0
        %v1946 = vsel %vm904, %v1925, 0
        %v1949 = vsel %vm904, %v1926, 0
        %1951 = vmatpush.bf16.msra.mxu0 0
        %1952 = vmatpush.bf16.msra.mxu0 0
        %1953 = vmatpush.bf16.msra.mxu0 0
        %1954 = vmatpush.bf16.msra.mxu0 0
        %1955 = vmatpush.bf16.msra.mxu0 %v1934
        %1956 = vmatpush.bf16.msra.mxu0 %v1932
        %1957 = vmatpush.bf16.msra.mxu0 %v1930
        %1958 = vmatpush.bf16.msra.mxu0 %v1928
        %1959 = vmatmul.bf16.gmra.mxu0 %v1940
        %v1960 = vpop.f32.mrf.mxu0
        %v1961 = vadd.f32 0.0, %v1960
        %v1962 = vpop.f32.mrf.mxu0
        %v1963 = vadd.f32 0.0, %v1962
        %1964 = vmatmul.bf16.gmra.mxu0 %v1943
        %v1965 = vpop.f32.mrf.mxu0
        %v1966 = vadd.f32 0.0, %v1965
        %v1967 = vpop.f32.mrf.mxu0
        %v1968 = vadd.f32 0.0, %v1967
        %1969 = vmatmul.bf16.gmra.mxu0 %v1946
        %v1970 = vpop.f32.mrf.mxu0
        %v1971 = vadd.f32 0.0, %v1970
        %v1972 = vpop.f32.mrf.mxu0
        %v1973 = vadd.f32 0.0, %v1972
        %1974 = vmatmul.bf16.gmra.mxu0 %v1949
        %v1975 = vpop.f32.mrf.mxu0
        %v1976 = vadd.f32 0.0, %v1975
        %v1977 = vpop.f32.mrf.mxu0
        %v1978 = vadd.f32 0.0, %v1977
        %1979 = vdwg.mxu0
        %v1980 = vpack.c.bf16 %v1963, %v1961
        %v1981 = vpack.c.bf16 %v1968, %v1966
        %v1982 = vpack.c.bf16 %v1973, %v1971
        %v1983 = vpack.c.bf16 %v1978, %v1976
        %s1984 = scalar_lea.vmem %s6, 8
        %v1985 = vld [vmem:[%s1984] sm:$0xf]
        %v1987 = vsel %vm850, %v1980, 0
        %v1990 = vsel %vm850, %v1981, 0
        %v1993 = vsel %vm850, %v1982, 0
        %v1996 = vsel %vm850, %v1983, 0
        %v1999 = vsel %vm1552, %v1985, 0
        %2001 = vmatpush.bf16.msra.mxu0 0
        %2002 = vmatpush.bf16.msra.mxu0 0
        %2003 = vmatpush.bf16.msra.mxu0 0
        %2004 = vmatpush.bf16.msra.mxu0 0
        %2005 = vmatpush.bf16.msra.mxu0 0
        %2006 = vmatpush.bf16.msra.mxu0 0
        %2007 = vmatpush.bf16.msra.mxu0 0
        %2008 = vmatpush.bf16.msra.mxu0 %v1999
        %2009 = vmatmul.bf16.gmra.mxu0 %v1987
        %v2010 = vpop.f32.mrf.mxu0
        %v2011 = vadd.f32 0.0, %v2010
        %v2012 = vpop.f32.mrf.mxu0
        %v2013 = vadd.f32 0.0, %v2012
        %2014 = vmatmul.bf16.gmra.mxu0 %v1990
        %v2015 = vpop.f32.mrf.mxu0
        %v2016 = vadd.f32 0.0, %v2015
        %v2017 = vpop.f32.mrf.mxu0
        %v2018 = vadd.f32 0.0, %v2017
        %2019 = vmatmul.bf16.gmra.mxu0 %v1993
        %v2020 = vpop.f32.mrf.mxu0
        %v2021 = vadd.f32 0.0, %v2020
        %v2022 = vpop.f32.mrf.mxu0
        %v2023 = vadd.f32 0.0, %v2022
        %2024 = vmatmul.bf16.gmra.mxu0 %v1996
        %v2025 = vpop.f32.mrf.mxu0
        %v2026 = vadd.f32 0.0, %v2025
        %v2027 = vpop.f32.mrf.mxu0
        %v2028 = vadd.f32 0.0, %v2027
        %2029 = vdwg.mxu0
        %v2030 = vadd.f32 %v1610, %v2011
        %v2031 = vadd.f32 %v1612, %v2013
        %v2032 = vadd.f32 %v1615, %v2016
        %v2033 = vadd.f32 %v1617, %v2018
        %v2034 = vadd.f32 %v1620, %v2021
        %v2035 = vadd.f32 %v1622, %v2023
        %v2036 = vadd.f32 %v1625, %v2026
        %v2037 = vadd.f32 %v1627, %v2028
        %s2038 = scalar_lea.vmem [#allocation2], 192
        %v2039 = vld [vmem:[%s2038] sm:$0xff]
        %v2040 = vld [vmem:[%s2038 + $0x8] sm:$0xff]
        %v2041 = vld [vmem:[%s2038 + $0x10] sm:$0xff]
        %v2042 = vld [vmem:[%s2038 + $0x18] sm:$0xff]
        %v2043 = vld [vmem:[%s2038 + $0x20] sm:$0xff]
        %v2044 = vld [vmem:[%s2038 + $0x28] sm:$0xff]
        %v2045 = vld [vmem:[%s2038 + $0x30] sm:$0xff]
        %v2046 = vld [vmem:[%s2038 + $0x38] sm:$0xff]
        %2047 = vrot.lane.b32.xlu0 %v818, 104
        %v2048 = vpop.permute.xlu0 %2047
        %2049 = vrot.lane.b32.xlu0 %v819, 104
        %v2050 = vpop.permute.xlu0 %2049
        %2051 = vrot.lane.b32.xlu0 %v820, 104
        %v2052 = vpop.permute.xlu0 %2051
        %2053 = vrot.lane.b32.xlu0 %v821, 104
        %v2054 = vpop.permute.xlu0 %2053
        %2055 = vrot.lane.b32.xlu0 %v838, 72
        %v2056 = vpop.permute.xlu0 %2055
        %2057 = vrot.lane.b32.xlu0 %v839, 72
        %v2058 = vpop.permute.xlu0 %2057
        %2059 = vrot.lane.b32.xlu0 %v840, 72
        %v2060 = vpop.permute.xlu0 %2059
        %2061 = vrot.lane.b32.xlu0 %v841, 72
        %v2062 = vpop.permute.xlu0 %2061
        %v2064 = vsel %vm850, %v2048, 0
        %v2067 = vsel %vm850, %v2050, 0
        %v2070 = vsel %vm850, %v2052, 0
        %v2073 = vsel %vm850, %v2054, 0
        %v2076 = vsel %vm850, %v2056, 0
        %v2079 = vsel %vm850, %v2058, 0
        %v2082 = vsel %vm850, %v2060, 0
        %v2085 = vsel %vm850, %v2062, 0
        %2087 = vmatpush.bf16.xpose.msra.mxu0 0
        %2088 = vmatpush.bf16.xpose.msra.mxu0 0
        %2089 = vmatpush.bf16.xpose.msra.mxu0 0
        %2090 = vmatpush.bf16.xpose.msra.mxu0 0
        %2091 = vmatpush.bf16.xpose.msra.mxu0 %v2085
        %2092 = vmatpush.bf16.xpose.msra.mxu0 %v2082
        %2093 = vmatpush.bf16.xpose.msra.mxu0 %v2079
        %2094 = vmatpush.bf16.xpose.msra.mxu0 %v2076
        %2095 = vmatmul.bf16.gmra.mxu0 %v2064
        %v2096 = vpop.f32.mrf.mxu0
        %v2097 = vadd.f32 %v2039, %v2096
        %v2098 = vpop.f32.mrf.mxu0
        %v2099 = vadd.f32 %v2040, %v2098
        %2100 = vmatmul.bf16.gmra.mxu0 %v2067
        %v2101 = vpop.f32.mrf.mxu0
        %v2102 = vadd.f32 %v2041, %v2101
        %v2103 = vpop.f32.mrf.mxu0
        %v2104 = vadd.f32 %v2042, %v2103
        %2105 = vmatmul.bf16.gmra.mxu0 %v2070
        %v2106 = vpop.f32.mrf.mxu0
        %v2107 = vadd.f32 %v2043, %v2106
        %v2108 = vpop.f32.mrf.mxu0
        %v2109 = vadd.f32 %v2044, %v2108
        %2110 = vmatmul.bf16.gmra.mxu0 %v2073
        %v2111 = vpop.f32.mrf.mxu0
        %v2112 = vadd.f32 %v2045, %v2111
        %v2113 = vpop.f32.mrf.mxu0
        %v2114 = vadd.f32 %v2046, %v2113
        %2115 = vdwg.mxu0
        %v2116 = vsel %vm904, %v2097, -inf
        %2117 = vmax.xlane.f32.xlu0 %v2116
        %v2118 = vpop.xlane.xlu0 %2117
        %v2119 = vsel %vm904, %v2099, -inf
        %2120 = vmax.xlane.f32.xlu0 %v2119
        %v2121 = vpop.xlane.xlu0 %2120
        %v2122 = vsel %vm904, %v2102, -inf
        %2123 = vmax.xlane.f32.xlu0 %v2122
        %v2124 = vpop.xlane.xlu0 %2123
        %v2125 = vsel %vm904, %v2104, -inf
        %2126 = vmax.xlane.f32.xlu0 %v2125
        %v2127 = vpop.xlane.xlu0 %2126
        %v2128 = vsel %vm904, %v2107, -inf
        %2129 = vmax.xlane.f32.xlu0 %v2128
        %v2130 = vpop.xlane.xlu0 %2129
        %v2131 = vsel %vm904, %v2109, -inf
        %2132 = vmax.xlane.f32.xlu0 %v2131
        %v2133 = vpop.xlane.xlu0 %2132
        %v2134 = vsel %vm904, %v2112, -inf
        %2135 = vmax.xlane.f32.xlu0 %v2134
        %v2136 = vpop.xlane.xlu0 %2135
        %v2137 = vsel %vm904, %v2114, -inf
        %2138 = vmax.xlane.f32.xlu0 %v2137
        %v2139 = vpop.xlane.xlu0 %2138
        %v2140 = vsub.f32 %v2097, %v2118
        %v2141 = vsub.f32 %v2099, %v2121
        %v2142 = vsub.f32 %v2102, %v2124
        %v2143 = vsub.f32 %v2104, %v2127
        %v2144 = vsub.f32 %v2107, %v2130
        %v2145 = vsub.f32 %v2109, %v2133
        %v2146 = vsub.f32 %v2112, %v2136
        %v2147 = vsub.f32 %v2114, %v2139
        %v2148 = vmul.f32 %v2140, 1.442695
        %v2149 = vpow.pop %v2148
        %v2150 = vmul.f32 %v2141, 1.442695
        %v2151 = vpow.pop %v2150
        %v2152 = vmul.f32 %v2142, 1.442695
        %v2153 = vpow.pop %v2152
        %v2154 = vmul.f32 %v2143, 1.442695
        %v2155 = vpow.pop %v2154
        %v2156 = vmul.f32 %v2144, 1.442695
        %v2157 = vpow.pop %v2156
        %v2158 = vmul.f32 %v2145, 1.442695
        %v2159 = vpow.pop %v2158
        %v2160 = vmul.f32 %v2146, 1.442695
        %v2161 = vpow.pop %v2160
        %v2162 = vmul.f32 %v2147, 1.442695
        %v2163 = vpow.pop %v2162
        %v2164 = vsel %vm904, %v2149, 0.0
        %2165 = vadd.xlane.f32.xlu0 %v2164
        %v2166 = vpop.xlane.xlu0 %2165
        %v2167 = vsel %vm904, %v2151, 0.0
        %2168 = vadd.xlane.f32.xlu0 %v2167
        %v2169 = vpop.xlane.xlu0 %2168
        %v2170 = vsel %vm904, %v2153, 0.0
        %2171 = vadd.xlane.f32.xlu0 %v2170
        %v2172 = vpop.xlane.xlu0 %2171
        %v2173 = vsel %vm904, %v2155, 0.0
        %2174 = vadd.xlane.f32.xlu0 %v2173
        %v2175 = vpop.xlane.xlu0 %2174
        %v2176 = vsel %vm904, %v2157, 0.0
        %2177 = vadd.xlane.f32.xlu0 %v2176
        %v2178 = vpop.xlane.xlu0 %2177
        %v2179 = vsel %vm904, %v2159, 0.0
        %2180 = vadd.xlane.f32.xlu0 %v2179
        %v2181 = vpop.xlane.xlu0 %2180
        %v2182 = vsel %vm904, %v2161, 0.0
        %2183 = vadd.xlane.f32.xlu0 %v2182
        %v2184 = vpop.xlane.xlu0 %2183
        %v2185 = vsel %vm904, %v2163, 0.0
        %2186 = vadd.xlane.f32.xlu0 %v2185
        %v2187 = vpop.xlane.xlu0 %2186
        %v2188 = vrcp.pop %v2166
        %v2189 = vmul.f32 %v2166, %v2188
        %v2190 = vsub.f32 1.0, %v2189
        %v2191 = vmul.f32 %v2188, %v2190
        %v2192 = vadd.f32 %v2188, %v2191
        %vm2193 = vweird.f32 %v2166
        %vm2194 = vweird.f32 %v2188
        %vm2195 = vmor %vm2193, %vm2194
        %v2196 = vsel %vm2195, %v2188, %v2192
        %v2197 = vand.u32 2147483647, %v2166
        %vm2198 = vcmp.eq.f32.partialorder %v2197, 8.507059e+37
        %v2199 = vand.u32 %v2166, 2147483648
        %v2200 = vor.u32 1.1754944e-38, %v2199
        %v2201 = vsel %vm2198, %v2200, %v2196
        %v2202 = vmul.f32 %v2149, %v2201
        %v2203 = vrcp.pop %v2169
        %v2204 = vmul.f32 %v2169, %v2203
        %v2205 = vsub.f32 1.0, %v2204
        %v2206 = vmul.f32 %v2203, %v2205
        %v2207 = vadd.f32 %v2203, %v2206
        %vm2208 = vweird.f32 %v2169
        %vm2209 = vweird.f32 %v2203
        %vm2210 = vmor %vm2208, %vm2209
        %v2211 = vsel %vm2210, %v2203, %v2207
        %v2212 = vand.u32 2147483647, %v2169
        %vm2213 = vcmp.eq.f32.partialorder %v2212, 8.507059e+37
        %v2214 = vand.u32 %v2169, 2147483648
        %v2215 = vor.u32 1.1754944e-38, %v2214
        %v2216 = vsel %vm2213, %v2215, %v2211
        %v2217 = vmul.f32 %v2151, %v2216
        %v2218 = vrcp.pop %v2172
        %v2219 = vmul.f32 %v2172, %v2218
        %v2220 = vsub.f32 1.0, %v2219
        %v2221 = vmul.f32 %v2218, %v2220
        %v2222 = vadd.f32 %v2218, %v2221
        %vm2223 = vweird.f32 %v2172
        %vm2224 = vweird.f32 %v2218
        %vm2225 = vmor %vm2223, %vm2224
        %v2226 = vsel %vm2225, %v2218, %v2222
        %v2227 = vand.u32 2147483647, %v2172
        %vm2228 = vcmp.eq.f32.partialorder %v2227, 8.507059e+37
        %v2229 = vand.u32 %v2172, 2147483648
        %v2230 = vor.u32 1.1754944e-38, %v2229
        %v2231 = vsel %vm2228, %v2230, %v2226
        %v2232 = vmul.f32 %v2153, %v2231
        %v2233 = vrcp.pop %v2175
        %v2234 = vmul.f32 %v2175, %v2233
        %v2235 = vsub.f32 1.0, %v2234
        %v2236 = vmul.f32 %v2233, %v2235
        %v2237 = vadd.f32 %v2233, %v2236
        %vm2238 = vweird.f32 %v2175
        %vm2239 = vweird.f32 %v2233
        %vm2240 = vmor %vm2238, %vm2239
        %v2241 = vsel %vm2240, %v2233, %v2237
        %v2242 = vand.u32 2147483647, %v2175
        %vm2243 = vcmp.eq.f32.partialorder %v2242, 8.507059e+37
        %v2244 = vand.u32 %v2175, 2147483648
        %v2245 = vor.u32 1.1754944e-38, %v2244
        %v2246 = vsel %vm2243, %v2245, %v2241
        %v2247 = vmul.f32 %v2155, %v2246
        %v2248 = vrcp.pop %v2178
        %v2249 = vmul.f32 %v2178, %v2248
        %v2250 = vsub.f32 1.0, %v2249
        %v2251 = vmul.f32 %v2248, %v2250
        %v2252 = vadd.f32 %v2248, %v2251
        %vm2253 = vweird.f32 %v2178
        %vm2254 = vweird.f32 %v2248
        %vm2255 = vmor %vm2253, %vm2254
        %v2256 = vsel %vm2255, %v2248, %v2252
        %v2257 = vand.u32 2147483647, %v2178
        %vm2258 = vcmp.eq.f32.partialorder %v2257, 8.507059e+37
        %v2259 = vand.u32 %v2178, 2147483648
        %v2260 = vor.u32 1.1754944e-38, %v2259
        %v2261 = vsel %vm2258, %v2260, %v2256
        %v2262 = vmul.f32 %v2157, %v2261
        %v2263 = vrcp.pop %v2181
        %v2264 = vmul.f32 %v2181, %v2263
        %v2265 = vsub.f32 1.0, %v2264
        %v2266 = vmul.f32 %v2263, %v2265
        %v2267 = vadd.f32 %v2263, %v2266
        %vm2268 = vweird.f32 %v2181
        %vm2269 = vweird.f32 %v2263
        %vm2270 = vmor %vm2268, %vm2269
        %v2271 = vsel %vm2270, %v2263, %v2267
        %v2272 = vand.u32 2147483647, %v2181
        %vm2273 = vcmp.eq.f32.partialorder %v2272, 8.507059e+37
        %v2274 = vand.u32 %v2181, 2147483648
        %v2275 = vor.u32 1.1754944e-38, %v2274
        %v2276 = vsel %vm2273, %v2275, %v2271
        %v2277 = vmul.f32 %v2159, %v2276
        %v2278 = vrcp.pop %v2184
        %v2279 = vmul.f32 %v2184, %v2278
        %v2280 = vsub.f32 1.0, %v2279
        %v2281 = vmul.f32 %v2278, %v2280
        %v2282 = vadd.f32 %v2278, %v2281
        %vm2283 = vweird.f32 %v2184
        %vm2284 = vweird.f32 %v2278
        %vm2285 = vmor %vm2283, %vm2284
        %v2286 = vsel %vm2285, %v2278, %v2282
        %v2287 = vand.u32 2147483647, %v2184
        %vm2288 = vcmp.eq.f32.partialorder %v2287, 8.507059e+37
        %v2289 = vand.u32 %v2184, 2147483648
        %v2290 = vor.u32 1.1754944e-38, %v2289
        %v2291 = vsel %vm2288, %v2290, %v2286
        %v2292 = vmul.f32 %v2161, %v2291
        %v2293 = vrcp.pop %v2187
        %v2294 = vmul.f32 %v2187, %v2293
        %v2295 = vsub.f32 1.0, %v2294
        %v2296 = vmul.f32 %v2293, %v2295
        %v2297 = vadd.f32 %v2293, %v2296
        %vm2298 = vweird.f32 %v2187
        %vm2299 = vweird.f32 %v2293
        %vm2300 = vmor %vm2298, %vm2299
        %v2301 = vsel %vm2300, %v2293, %v2297
        %v2302 = vand.u32 2147483647, %v2187
        %vm2303 = vcmp.eq.f32.partialorder %v2302, 8.507059e+37
        %v2304 = vand.u32 %v2187, 2147483648
        %v2305 = vor.u32 1.1754944e-38, %v2304
        %v2306 = vsel %vm2303, %v2305, %v2301
        %v2307 = vmul.f32 %v2163, %v2306
        %v2308 = vpack.c.bf16 %v2202, %v2202
        %v2309 = vpack.c.bf16 %v2217, %v2217
        %v2310 = vpack.c.bf16 %v2232, %v2232
        %v2311 = vpack.c.bf16 %v2247, %v2247
        %v2312 = vpack.c.bf16 %v2262, %v2262
        %v2313 = vpack.c.bf16 %v2277, %v2277
        %v2314 = vpack.c.bf16 %v2292, %v2292
        %v2315 = vpack.c.bf16 %v2307, %v2307
        %v2324 = vunpack.c.l.b16 %v2308
        %v2325 = vunpack.c.l.b16 %v2309
        %v2326 = vunpack.c.l.b16 %v2310
        %v2327 = vunpack.c.l.b16 %v2311
        %v2328 = vunpack.c.l.b16 %v2312
        %v2329 = vunpack.c.l.b16 %v2313
        %v2330 = vunpack.c.l.b16 %v2314
        %v2331 = vunpack.c.l.b16 %v2315
        %v2332 = vpack.c.b16 %v2325, %v2324
        %v2333 = vpack.c.b16 %v2327, %v2326
        %v2334 = vpack.c.b16 %v2329, %v2328
        %v2335 = vpack.c.b16 %v2331, %v2330
        %2336 = vrot.lane.b32.xlu0 %v838, 40
        %v2337 = vpop.permute.xlu0 %2336
        %2338 = vrot.lane.b32.xlu0 %v839, 40
        %v2339 = vpop.permute.xlu0 %2338
        %2340 = vrot.lane.b32.xlu0 %v840, 40
        %v2341 = vpop.permute.xlu0 %2340
        %2342 = vrot.lane.b32.xlu0 %v841, 40
        %v2343 = vpop.permute.xlu0 %2342
        %v2349 = vsel %vm904, %v2332, 0
        %v2352 = vsel %vm904, %v2333, 0
        %v2355 = vsel %vm904, %v2334, 0
        %v2358 = vsel %vm904, %v2335, 0
        %2360 = vmatpush.bf16.msra.mxu0 0
        %2361 = vmatpush.bf16.msra.mxu0 0
        %2362 = vmatpush.bf16.msra.mxu0 0
        %2363 = vmatpush.bf16.msra.mxu0 0
        %2364 = vmatpush.bf16.msra.mxu0 %v2343
        %2365 = vmatpush.bf16.msra.mxu0 %v2341
        %2366 = vmatpush.bf16.msra.mxu0 %v2339
        %2367 = vmatpush.bf16.msra.mxu0 %v2337
        %2368 = vmatmul.bf16.gmra.mxu0 %v2349
        %v2369 = vpop.f32.mrf.mxu0
        %v2370 = vadd.f32 0.0, %v2369
        %v2371 = vpop.f32.mrf.mxu0
        %v2372 = vadd.f32 0.0, %v2371
        %2373 = vmatmul.bf16.gmra.mxu0 %v2352
        %v2374 = vpop.f32.mrf.mxu0
        %v2375 = vadd.f32 0.0, %v2374
        %v2376 = vpop.f32.mrf.mxu0
        %v2377 = vadd.f32 0.0, %v2376
        %2378 = vmatmul.bf16.gmra.mxu0 %v2355
        %v2379 = vpop.f32.mrf.mxu0
        %v2380 = vadd.f32 0.0, %v2379
        %v2381 = vpop.f32.mrf.mxu0
        %v2382 = vadd.f32 0.0, %v2381
        %2383 = vmatmul.bf16.gmra.mxu0 %v2358
        %v2384 = vpop.f32.mrf.mxu0
        %v2385 = vadd.f32 0.0, %v2384
        %v2386 = vpop.f32.mrf.mxu0
        %v2387 = vadd.f32 0.0, %v2386
        %2388 = vdwg.mxu0
        %v2389 = vpack.c.bf16 %v2372, %v2370
        %v2390 = vpack.c.bf16 %v2377, %v2375
        %v2391 = vpack.c.bf16 %v2382, %v2380
        %v2392 = vpack.c.bf16 %v2387, %v2385
        %s2393 = scalar_lea.vmem %s6, 12
        %v2394 = vld [vmem:[%s2393] sm:$0xf]
        %v2396 = vsel %vm850, %v2389, 0
        %v2399 = vsel %vm850, %v2390, 0
        %v2402 = vsel %vm850, %v2391, 0
        %v2405 = vsel %vm850, %v2392, 0
        %v2408 = vsel %vm1552, %v2394, 0
        %2410 = vmatpush.bf16.msra.mxu0 0
        %2411 = vmatpush.bf16.msra.mxu0 0
        %2412 = vmatpush.bf16.msra.mxu0 0
        %2413 = vmatpush.bf16.msra.mxu0 0
        %2414 = vmatpush.bf16.msra.mxu0 0
        %2415 = vmatpush.bf16.msra.mxu0 0
        %2416 = vmatpush.bf16.msra.mxu0 0
        %2417 = vmatpush.bf16.msra.mxu0 %v2408
        %2418 = vmatmul.bf16.gmra.mxu0 %v2396
        %v2419 = vpop.f32.mrf.mxu0
        %v2420 = vadd.f32 0.0, %v2419
        %v2421 = vpop.f32.mrf.mxu0
        %v2422 = vadd.f32 0.0, %v2421
        %2423 = vmatmul.bf16.gmra.mxu0 %v2399
        %v2424 = vpop.f32.mrf.mxu0
        %v2425 = vadd.f32 0.0, %v2424
        %v2426 = vpop.f32.mrf.mxu0
        %v2427 = vadd.f32 0.0, %v2426
        %2428 = vmatmul.bf16.gmra.mxu0 %v2402
        %v2429 = vpop.f32.mrf.mxu0
        %v2430 = vadd.f32 0.0, %v2429
        %v2431 = vpop.f32.mrf.mxu0
        %v2432 = vadd.f32 0.0, %v2431
        %2433 = vmatmul.bf16.gmra.mxu0 %v2405
        %v2434 = vpop.f32.mrf.mxu0
        %v2435 = vadd.f32 0.0, %v2434
        %v2436 = vpop.f32.mrf.mxu0
        %v2437 = vadd.f32 0.0, %v2436
        %2438 = vdwg.mxu0
        %v2439 = vadd.f32 %v2030, %v2420
        %v2440 = vadd.f32 %v2031, %v2422
        %v2441 = vadd.f32 %v2032, %v2425
        %v2442 = vadd.f32 %v2033, %v2427
        %v2443 = vadd.f32 %v2034, %v2430
        %v2444 = vadd.f32 %v2035, %v2432
        %v2445 = vadd.f32 %v2036, %v2435
        %v2446 = vadd.f32 %v2037, %v2437
        %v2447 = vld [vmem:[%s7] sm:$0x1]
        %v2449 = vperm.slane %v2447, 0
        %v2451 = vadd.f32 %v2439, %v2449
        %v2452 = vadd.f32 %v2440, %v2449
        %v2453 = vadd.f32 %v2441, %v2449
        %v2454 = vadd.f32 %v2442, %v2449
        %v2455 = vadd.f32 %v2443, %v2449
        %v2456 = vadd.f32 %v2444, %v2449
        %v2457 = vadd.f32 %v2445, %v2449
        %v2458 = vadd.f32 %v2446, %v2449
        %v2459 = vadd.f32 %v489, %v2451
        %v2460 = vadd.f32 %v490, %v2452
        %v2461 = vadd.f32 %v491, %v2453
        %v2462 = vadd.f32 %v492, %v2454
        %v2463 = vadd.f32 %v493, %v2455
        %v2464 = vadd.f32 %v494, %v2456
        %v2465 = vadd.f32 %v495, %v2457
        %v2466 = vadd.f32 %v496, %v2458
        %v2467 = vsel %vm497, %v2459, 0.0
        %2468 = vadd.xlane.f32.xlu0 %v2467
        %v2469 = vpop.xlane.xlu0 %2468
        %v2470 = vsel %vm497, %v2460, 0.0
        %2471 = vadd.xlane.f32.xlu0 %v2470
        %v2472 = vpop.xlane.xlu0 %2471
        %v2473 = vsel %vm497, %v2461, 0.0
        %2474 = vadd.xlane.f32.xlu0 %v2473
        %v2475 = vpop.xlane.xlu0 %2474
        %v2476 = vsel %vm497, %v2462, 0.0
        %2477 = vadd.xlane.f32.xlu0 %v2476
        %v2478 = vpop.xlane.xlu0 %2477
        %v2479 = vsel %vm497, %v2463, 0.0
        %2480 = vadd.xlane.f32.xlu0 %v2479
        %v2481 = vpop.xlane.xlu0 %2480
        %v2482 = vsel %vm497, %v2464, 0.0
        %2483 = vadd.xlane.f32.xlu0 %v2482
        %v2484 = vpop.xlane.xlu0 %2483
        %v2485 = vsel %vm497, %v2465, 0.0
        %2486 = vadd.xlane.f32.xlu0 %v2485
        %v2487 = vpop.xlane.xlu0 %2486
        %v2488 = vsel %vm497, %v2466, 0.0
        %2489 = vadd.xlane.f32.xlu0 %v2488
        %v2490 = vpop.xlane.xlu0 %2489
        %v2491 = vmul.f32 %v2469, %v528
        %v2492 = vmul.f32 %v2472, %v528
        %v2493 = vmul.f32 %v2475, %v528
        %v2494 = vmul.f32 %v2478, %v528
        %v2495 = vmul.f32 %v2481, %v528
        %v2496 = vmul.f32 %v2484, %v528
        %v2497 = vmul.f32 %v2487, %v528
        %v2498 = vmul.f32 %v2490, %v528
        %v2499 = vsub.f32 %v2459, %v2491
        %v2500 = vsub.f32 %v2460, %v2492
        %v2501 = vsub.f32 %v2461, %v2493
        %v2502 = vsub.f32 %v2462, %v2494
        %v2503 = vsub.f32 %v2463, %v2495
        %v2504 = vsub.f32 %v2464, %v2496
        %v2505 = vsub.f32 %v2465, %v2497
        %v2506 = vsub.f32 %v2466, %v2498
        %v2507 = vmul.f32 %v2499, %v2499
        %v2508 = vmul.f32 %v2500, %v2500
        %v2509 = vmul.f32 %v2501, %v2501
        %v2510 = vmul.f32 %v2502, %v2502
        %v2511 = vmul.f32 %v2503, %v2503
        %v2512 = vmul.f32 %v2504, %v2504
        %v2513 = vmul.f32 %v2505, %v2505
        %v2514 = vmul.f32 %v2506, %v2506
        %v2515 = vsel %vm497, %v2507, 0.0
        %2516 = vadd.xlane.f32.xlu0 %v2515
        %v2517 = vpop.xlane.xlu0 %2516
        %v2518 = vsel %vm497, %v2508, 0.0
        %2519 = vadd.xlane.f32.xlu0 %v2518
        %v2520 = vpop.xlane.xlu0 %2519
        %v2521 = vsel %vm497, %v2509, 0.0
        %2522 = vadd.xlane.f32.xlu0 %v2521
        %v2523 = vpop.xlane.xlu0 %2522
        %v2524 = vsel %vm497, %v2510, 0.0
        %2525 = vadd.xlane.f32.xlu0 %v2524
        %v2526 = vpop.xlane.xlu0 %2525
        %v2527 = vsel %vm497, %v2511, 0.0
        %2528 = vadd.xlane.f32.xlu0 %v2527
        %v2529 = vpop.xlane.xlu0 %2528
        %v2530 = vsel %vm497, %v2512, 0.0
        %2531 = vadd.xlane.f32.xlu0 %v2530
        %v2532 = vpop.xlane.xlu0 %2531
        %v2533 = vsel %vm497, %v2513, 0.0
        %2534 = vadd.xlane.f32.xlu0 %v2533
        %v2535 = vpop.xlane.xlu0 %2534
        %v2536 = vsel %vm497, %v2514, 0.0
        %2537 = vadd.xlane.f32.xlu0 %v2536
        %v2538 = vpop.xlane.xlu0 %2537
        %v2539 = vmul.f32 %v2517, %v528
        %v2540 = vmul.f32 %v2520, %v528
        %v2541 = vmul.f32 %v2523, %v528
        %v2542 = vmul.f32 %v2526, %v528
        %v2543 = vmul.f32 %v2529, %v528
        %v2544 = vmul.f32 %v2532, %v528
        %v2545 = vmul.f32 %v2535, %v528
        %v2546 = vmul.f32 %v2538, %v528
        %v2547 = vadd.f32 %v2539, 1e-05
        %v2548 = vadd.f32 %v2540, 1e-05
        %v2549 = vadd.f32 %v2541, 1e-05
        %v2550 = vadd.f32 %v2542, 1e-05
        %v2551 = vadd.f32 %v2543, 1e-05
        %v2552 = vadd.f32 %v2544, 1e-05
        %v2553 = vadd.f32 %v2545, 1e-05
        %v2554 = vadd.f32 %v2546, 1e-05
        %v2555 = vrsqrt.pop %v2547
        %v2556 = vmul.f32 %v2555, %v2547
        %v2557 = vmul.f32 %v2556, %v2555
        %v2558 = vmul.f32 0.5, %v2557
        %v2559 = vsub.f32 1.5, %v2558
        %v2560 = vmul.f32 %v2555, %v2559
        %vm2561 = vweird.f32 %v2547
        %vm2562 = vweird.f32 %v2555
        %vm2563 = vmor %vm2561, %vm2562
        %v2564 = vsel %vm2563, %v2555, %v2560
        %v2565 = vrsqrt.pop %v2548
        %v2566 = vmul.f32 %v2565, %v2548
        %v2567 = vmul.f32 %v2566, %v2565
        %v2568 = vmul.f32 0.5, %v2567
        %v2569 = vsub.f32 1.5, %v2568
        %v2570 = vmul.f32 %v2565, %v2569
        %vm2571 = vweird.f32 %v2548
        %vm2572 = vweird.f32 %v2565
        %vm2573 = vmor %vm2571, %vm2572
        %v2574 = vsel %vm2573, %v2565, %v2570
        %v2575 = vrsqrt.pop %v2549
        %v2576 = vmul.f32 %v2575, %v2549
        %v2577 = vmul.f32 %v2576, %v2575
        %v2578 = vmul.f32 0.5, %v2577
        %v2579 = vsub.f32 1.5, %v2578
        %v2580 = vmul.f32 %v2575, %v2579
        %vm2581 = vweird.f32 %v2549
        %vm2582 = vweird.f32 %v2575
        %vm2583 = vmor %vm2581, %vm2582
        %v2584 = vsel %vm2583, %v2575, %v2580
        %v2585 = vrsqrt.pop %v2550
        %v2586 = vmul.f32 %v2585, %v2550
        %v2587 = vmul.f32 %v2586, %v2585
        %v2588 = vmul.f32 0.5, %v2587
        %v2589 = vsub.f32 1.5, %v2588
        %v2590 = vmul.f32 %v2585, %v2589
        %vm2591 = vweird.f32 %v2550
        %vm2592 = vweird.f32 %v2585
        %vm2593 = vmor %vm2591, %vm2592
        %v2594 = vsel %vm2593, %v2585, %v2590
        %v2595 = vrsqrt.pop %v2551
        %v2596 = vmul.f32 %v2595, %v2551
        %v2597 = vmul.f32 %v2596, %v2595
        %v2598 = vmul.f32 0.5, %v2597
        %v2599 = vsub.f32 1.5, %v2598
        %v2600 = vmul.f32 %v2595, %v2599
        %vm2601 = vweird.f32 %v2551
        %vm2602 = vweird.f32 %v2595
        %vm2603 = vmor %vm2601, %vm2602
        %v2604 = vsel %vm2603, %v2595, %v2600
        %v2605 = vrsqrt.pop %v2552
        %v2606 = vmul.f32 %v2605, %v2552
        %v2607 = vmul.f32 %v2606, %v2605
        %v2608 = vmul.f32 0.5, %v2607
        %v2609 = vsub.f32 1.5, %v2608
        %v2610 = vmul.f32 %v2605, %v2609
        %vm2611 = vweird.f32 %v2552
        %vm2612 = vweird.f32 %v2605
        %vm2613 = vmor %vm2611, %vm2612
        %v2614 = vsel %vm2613, %v2605, %v2610
        %v2615 = vrsqrt.pop %v2553
        %v2616 = vmul.f32 %v2615, %v2553
        %v2617 = vmul.f32 %v2616, %v2615
        %v2618 = vmul.f32 0.5, %v2617
        %v2619 = vsub.f32 1.5, %v2618
        %v2620 = vmul.f32 %v2615, %v2619
        %vm2621 = vweird.f32 %v2553
        %vm2622 = vweird.f32 %v2615
        %vm2623 = vmor %vm2621, %vm2622
        %v2624 = vsel %vm2623, %v2615, %v2620
        %v2625 = vrsqrt.pop %v2554
        %v2626 = vmul.f32 %v2625, %v2554
        %v2627 = vmul.f32 %v2626, %v2625
        %v2628 = vmul.f32 0.5, %v2627
        %v2629 = vsub.f32 1.5, %v2628
        %v2630 = vmul.f32 %v2625, %v2629
        %vm2631 = vweird.f32 %v2554
        %vm2632 = vweird.f32 %v2625
        %vm2633 = vmor %vm2631, %vm2632
        %v2634 = vsel %vm2633, %v2625, %v2630
        %v2635 = vmul.f32 %v2499, %v2564
        %v2636 = vmul.f32 %v2500, %v2574
        %v2637 = vmul.f32 %v2501, %v2584
        %v2638 = vmul.f32 %v2502, %v2594
        %v2639 = vmul.f32 %v2503, %v2604
        %v2640 = vmul.f32 %v2504, %v2614
        %v2641 = vmul.f32 %v2505, %v2624
        %v2642 = vmul.f32 %v2506, %v2634
        %v2643 = vld [vmem:[%s8] sm:$0x1]
        %v2645 = vperm.slane %v2643, 0
        %v2647 = vmul.f32 %v2635, %v2645
        %v2648 = vmul.f32 %v2636, %v2645
        %v2649 = vmul.f32 %v2637, %v2645
        %v2650 = vmul.f32 %v2638, %v2645
        %v2651 = vmul.f32 %v2639, %v2645
        %v2652 = vmul.f32 %v2640, %v2645
        %v2653 = vmul.f32 %v2641, %v2645
        %v2654 = vmul.f32 %v2642, %v2645
        %v2655 = vld [vmem:[%s9] sm:$0x1]
        %v2657 = vperm.slane %v2655, 0
        %v2659 = vadd.f32 %v2647, %v2657
        %v2660 = vadd.f32 %v2648, %v2657
        %v2661 = vadd.f32 %v2649, %v2657
        %v2662 = vadd.f32 %v2650, %v2657
        %v2663 = vadd.f32 %v2651, %v2657
        %v2664 = vadd.f32 %v2652, %v2657
        %v2665 = vadd.f32 %v2653, %v2657
        %v2666 = vadd.f32 %v2654, %v2657
        %v2667 = vpack.c.bf16 %v2660, %v2659
        %v2668 = vpack.c.bf16 %v2662, %v2661
        %v2669 = vpack.c.bf16 %v2664, %v2663
        %v2670 = vpack.c.bf16 %v2666, %v2665
        %v2671 = vld [vmem:[%s10] sm:$0xf]
        %v2672 = vld [vmem:[%s10 + $0x4] sm:$0xf]
        %v2673 = vld [vmem:[%s10 + $0x8] sm:$0xf]
        %v2674 = vld [vmem:[%s10 + $0xc] sm:$0xf]
        %v2675 = vld [vmem:[%s11] sm:$0x1]
        %v2677 = vperm.slane %v2675, 0
        %v2683 = vunpack.c.l.b16 %v2671
        %v2684 = vunpack.c.l.b16 %v2672
        %v2685 = vunpack.c.l.b16 %v2673
        %v2686 = vunpack.c.l.b16 %v2674
        %v2687 = vpack.c.b16 %v2684, %v2683
        %v2688 = vpack.c.b16 %v2686, %v2685
        %v2692 = vsel %vm497, %v2667, 0
        %v2695 = vsel %vm497, %v2668, 0
        %v2698 = vsel %vm497, %v2669, 0
        %v2701 = vsel %vm497, %v2670, 0
        %2703 = vmatpush.bf16.msra.mxu0 0
        %2704 = vmatpush.bf16.msra.mxu0 0
        %2705 = vmatpush.bf16.msra.mxu0 0
        %2706 = vmatpush.bf16.msra.mxu0 0
        %2707 = vmatpush.bf16.msra.mxu0 0
        %2708 = vmatpush.bf16.msra.mxu0 0
        %2709 = vmatpush.bf16.msra.mxu0 %v2688
        %2710 = vmatpush.bf16.msra.mxu0 %v2687
        %2711 = vmatmul.bf16.gmra.mxu0 %v2692
        %v2712 = vpop.f32.mrf.mxu0
        %v2713 = vadd.f32 %v2677, %v2712
        %v2714 = vpop.f32.mrf.mxu0
        %v2715 = vadd.f32 %v2677, %v2714
        %2716 = vmatmul.bf16.gmra.mxu0 %v2695
        %v2717 = vpop.f32.mrf.mxu0
        %v2718 = vadd.f32 %v2677, %v2717
        %v2719 = vpop.f32.mrf.mxu0
        %v2720 = vadd.f32 %v2677, %v2719
        %2721 = vmatmul.bf16.gmra.mxu0 %v2698
        %v2722 = vpop.f32.mrf.mxu0
        %v2723 = vadd.f32 %v2677, %v2722
        %v2724 = vpop.f32.mrf.mxu0
        %v2725 = vadd.f32 %v2677, %v2724
        %2726 = vmatmul.bf16.gmra.mxu0 %v2701
        %v2727 = vpop.f32.mrf.mxu0
        %v2728 = vadd.f32 %v2677, %v2727
        %v2729 = vpop.f32.mrf.mxu0
        %v2730 = vadd.f32 %v2677, %v2729
        %2731 = vdwg.mxu0
        %v2732 = vmul.f32 %v2713, %v2713
        %v2733 = vmul.f32 %v2715, %v2715
        %v2734 = vmul.f32 %v2718, %v2718
        %v2735 = vmul.f32 %v2720, %v2720
        %v2736 = vmul.f32 %v2723, %v2723
        %v2737 = vmul.f32 %v2725, %v2725
        %v2738 = vmul.f32 %v2728, %v2728
        %v2739 = vmul.f32 %v2730, %v2730
        %v2740 = vmul.f32 %v2713, %v2732
        %v2741 = vmul.f32 %v2715, %v2733
        %v2742 = vmul.f32 %v2718, %v2734
        %v2743 = vmul.f32 %v2720, %v2735
        %v2744 = vmul.f32 %v2723, %v2736
        %v2745 = vmul.f32 %v2725, %v2737
        %v2746 = vmul.f32 %v2728, %v2738
        %v2747 = vmul.f32 %v2730, %v2739
        %v2748 = vmul.f32 %v2740, 0.044715
        %v2749 = vmul.f32 %v2741, 0.044715
        %v2750 = vmul.f32 %v2742, 0.044715
        %v2751 = vmul.f32 %v2743, 0.044715
        %v2752 = vmul.f32 %v2744, 0.044715
        %v2753 = vmul.f32 %v2745, 0.044715
        %v2754 = vmul.f32 %v2746, 0.044715
        %v2755 = vmul.f32 %v2747, 0.044715
        %v2756 = vadd.f32 %v2713, %v2748
        %v2757 = vadd.f32 %v2715, %v2749
        %v2758 = vadd.f32 %v2718, %v2750
        %v2759 = vadd.f32 %v2720, %v2751
        %v2760 = vadd.f32 %v2723, %v2752
        %v2761 = vadd.f32 %v2725, %v2753
        %v2762 = vadd.f32 %v2728, %v2754
        %v2763 = vadd.f32 %v2730, %v2755
        %v2764 = vmul.f32 %v2756, 0.7978846
        %v2765 = vmul.f32 %v2757, 0.7978846
        %v2766 = vmul.f32 %v2758, 0.7978846
        %v2767 = vmul.f32 %v2759, 0.7978846
        %v2768 = vmul.f32 %v2760, 0.7978846
        %v2769 = vmul.f32 %v2761, 0.7978846
        %v2770 = vmul.f32 %v2762, 0.7978846
        %v2771 = vmul.f32 %v2763, 0.7978846
        %v2772 = vtanh.pop %v2764
        %v2773 = vtanh.pop %v2765
        %v2774 = vtanh.pop %v2766
        %v2775 = vtanh.pop %v2767
        %v2776 = vtanh.pop %v2768
        %v2777 = vtanh.pop %v2769
        %v2778 = vtanh.pop %v2770
        %v2779 = vtanh.pop %v2771
        %v2780 = vadd.f32 %v2772, 1.0
        %v2781 = vadd.f32 %v2773, 1.0
        %v2782 = vadd.f32 %v2774, 1.0
        %v2783 = vadd.f32 %v2775, 1.0
        %v2784 = vadd.f32 %v2776, 1.0
        %v2785 = vadd.f32 %v2777, 1.0
        %v2786 = vadd.f32 %v2778, 1.0
        %v2787 = vadd.f32 %v2779, 1.0
        %v2788 = vmul.f32 %v2780, 0.5
        %v2789 = vmul.f32 %v2781, 0.5
        %v2790 = vmul.f32 %v2782, 0.5
        %v2791 = vmul.f32 %v2783, 0.5
        %v2792 = vmul.f32 %v2784, 0.5
        %v2793 = vmul.f32 %v2785, 0.5
        %v2794 = vmul.f32 %v2786, 0.5
        %v2795 = vmul.f32 %v2787, 0.5
        %v2796 = vmul.f32 %v2713, %v2788
        %v2797 = vmul.f32 %v2715, %v2789
        %v2798 = vmul.f32 %v2718, %v2790
        %v2799 = vmul.f32 %v2720, %v2791
        %v2800 = vmul.f32 %v2723, %v2792
        %v2801 = vmul.f32 %v2725, %v2793
        %v2802 = vmul.f32 %v2728, %v2794
        %v2803 = vmul.f32 %v2730, %v2795
        %v2804 = vpack.c.bf16 %v2797, %v2796
        %v2805 = vpack.c.bf16 %v2799, %v2798
        %v2806 = vpack.c.bf16 %v2801, %v2800
        %v2807 = vpack.c.bf16 %v2803, %v2802
        %v2808 = vld [vmem:[%s12] sm:$0xf]
        %v2809 = vld [vmem:[%s12 + $0x4] sm:$0xf]
        %v2810 = vld [vmem:[%s12 + $0x8] sm:$0xf]
        %v2811 = vld [vmem:[%s12 + $0xc] sm:$0xf]
        %v2812 = vld [vmem:[%s12 + $0x10] sm:$0xf]
        %v2813 = vld [vmem:[%s12 + $0x14] sm:$0xf]
        %v2814 = vld [vmem:[%s12 + $0x18] sm:$0xf]
        %v2815 = vld [vmem:[%s12 + $0x1c] sm:$0xf]
        %v2816 = vld [vmem:[%s12 + $0x20] sm:$0xf]
        %v2817 = vld [vmem:[%s12 + $0x24] sm:$0xf]
        %v2818 = vld [vmem:[%s12 + $0x28] sm:$0xf]
        %v2819 = vld [vmem:[%s12 + $0x2c] sm:$0xf]
        %v2820 = vld [vmem:[%s12 + $0x30] sm:$0xf]
        %v2821 = vld [vmem:[%s12 + $0x34] sm:$0xf]
        %v2822 = vld [vmem:[%s12 + $0x38] sm:$0xf]
        %v2823 = vld [vmem:[%s12 + $0x3c] sm:$0xf]
        %v2824 = vld [vmem:[%s13] sm:$0x1]
        %v2826 = vperm.slane %v2824, 0
        %v2844 = vunpack.c.l.b16 %v2808
        %v2845 = vunpack.c.l.b16 %v2809
        %v2846 = vunpack.c.l.b16 %v2810
        %v2847 = vunpack.c.l.b16 %v2811
        %v2848 = vunpack.c.l.b16 %v2812
        %v2849 = vunpack.c.l.b16 %v2813
        %v2850 = vunpack.c.l.b16 %v2814
        %v2851 = vunpack.c.l.b16 %v2815
        %v2852 = vunpack.c.l.b16 %v2816
        %v2853 = vunpack.c.l.b16 %v2817
        %v2854 = vunpack.c.l.b16 %v2818
        %v2855 = vunpack.c.l.b16 %v2819
        %v2856 = vunpack.c.l.b16 %v2820
        %v2857 = vunpack.c.l.b16 %v2821
        %v2858 = vunpack.c.l.b16 %v2822
        %v2859 = vunpack.c.l.b16 %v2823
        %v2860 = vpack.c.b16 %v2845, %v2844
        %v2861 = vpack.c.b16 %v2847, %v2846
        %v2862 = vpack.c.b16 %v2849, %v2848
        %v2863 = vpack.c.b16 %v2851, %v2850
        %v2864 = vpack.c.b16 %v2853, %v2852
        %v2865 = vpack.c.b16 %v2855, %v2854
        %v2866 = vpack.c.b16 %v2857, %v2856
        %v2867 = vpack.c.b16 %v2859, %v2858
        %2876 = vmatpush.bf16.msra.mxu0 %v2867
        %2877 = vmatpush.bf16.msra.mxu0 %v2866
        %2878 = vmatpush.bf16.msra.mxu0 %v2865
        %2879 = vmatpush.bf16.msra.mxu0 %v2864
        %2880 = vmatpush.bf16.msra.mxu0 %v2863
        %2881 = vmatpush.bf16.msra.mxu0 %v2862
        %2882 = vmatpush.bf16.msra.mxu0 %v2861
        %2883 = vmatpush.bf16.msra.mxu0 %v2860
        %2884 = vmatmul.bf16.gmra.mxu0 %v2804
        %v2885 = vpop.f32.mrf.mxu0
        %v2886 = vadd.f32 %v2826, %v2885
        %v2887 = vpop.f32.mrf.mxu0
        %v2888 = vadd.f32 %v2826, %v2887
        %2889 = vmatmul.bf16.gmra.mxu0 %v2805
        %v2890 = vpop.f32.mrf.mxu0
        %v2891 = vadd.f32 %v2826, %v2890
        %v2892 = vpop.f32.mrf.mxu0
        %v2893 = vadd.f32 %v2826, %v2892
        %2894 = vmatmul.bf16.gmra.mxu0 %v2806
        %v2895 = vpop.f32.mrf.mxu0
        %v2896 = vadd.f32 %v2826, %v2895
        %v2897 = vpop.f32.mrf.mxu0
        %v2898 = vadd.f32 %v2826, %v2897
        %2899 = vmatmul.bf16.gmra.mxu0 %v2807
        %v2900 = vpop.f32.mrf.mxu0
        %v2901 = vadd.f32 %v2826, %v2900
        %v2902 = vpop.f32.mrf.mxu0
        %v2903 = vadd.f32 %v2826, %v2902
        %2904 = vdwg.mxu0
        %v2905 = vadd.f32 %v2459, %v2886
        %v2906 = vadd.f32 %v2460, %v2888
        %v2907 = vadd.f32 %v2461, %v2891
        %v2908 = vadd.f32 %v2462, %v2893
        %v2909 = vadd.f32 %v2463, %v2896
        %v2910 = vadd.f32 %v2464, %v2898
        %v2911 = vadd.f32 %v2465, %v2901
        %v2912 = vadd.f32 %v2466, %v2903
        %2913 = vst.msk [vmem:[%s486] sm:$0xff] %vm497, %v2905
        %2914 = vst.msk [vmem:[%s486 + $0x8] sm:$0xff] %vm497, %v2906
        %2915 = vst.msk [vmem:[%s486 + $0x10] sm:$0xff] %vm497, %v2907
        %2916 = vst.msk [vmem:[%s486 + $0x18] sm:$0xff] %vm497, %v2908
        %2917 = vst.msk [vmem:[%s486 + $0x20] sm:$0xff] %vm497, %v2909
        %2918 = vst.msk [vmem:[%s486 + $0x28] sm:$0xff] %vm497, %v2910
        %2919 = vst.msk [vmem:[%s486 + $0x30] sm:$0xff] %vm497, %v2911
        %2920 = vst.msk [vmem:[%s486 + $0x38] sm:$0xff] %vm497, %v2912
        %s2921 = smul.u32 8, %s26
        %p2922 = scmp.lt.s32.totalorder %s2921, 15
        %s2923 = scalar_select %p2922, %s2921, 15
        %s2924 = smul.addr %s2923, 8
        %s2925 = scalar_lea.vmem %s14, %s2924
        // Predicated region
        $region81: #{swin_transformer_block_forward.1} parent=75 // pred_check
          %p2926 = pneg %p343
        $region82: #{swin_transformer_block_forward.1} parent=75 // pred_check_branch
          %2928 = sbr.rel (%p2926) target = $region84
        $region83: #{swin_transformer_block_forward.1} parent=75 // pred_region
          %s2929 = smul.u32 8, %s26
        $region84: #{swin_transformer_block_forward.1} parent=75 // pred_fallthru
          _
      $region76: #{swin_transformer_block_forward.1} parent=5 // pred_fallthru
        _
      %p2930 = scmp.le.s32.totalorder 2, %s21
      // Predicated region
      $region85: #{swin_transformer_block_forward.1} parent=5 // pred_check
        %p2931 = pneg %p2930
      $region86: #{swin_transformer_block_forward.1} parent=5 // pred_check_branch
        %2933 = sbr.rel (%p2931) target = $region88
      $region87: #{swin_transformer_block_forward.1} parent=5 // pred_region
        %s2934 = ssub.s32 %s21, 2
        // Predicated region
        $region89: #{swin_transformer_block_forward.1} parent=87 // pred_check
          %p2935 = pneg %p349
        $region90: #{swin_transformer_block_forward.1} parent=87 // pred_check_branch
          %2937 = sbr.rel (%p2935) target = $region92
        $region91: #{swin_transformer_block_forward.1} parent=87 // pred_region
          %s2938 = smul.u32 8, %s27
          %p2939 = scmp.lt.s32.totalorder %s2938, 15
          %s2940 = scalar_select %p2939, %s2938, 15
          %s2941 = smul.addr %s2940, 8
          %s2942 = scalar_lea.vmem %s14, %s2941
        $region92: #{swin_transformer_block_forward.1} parent=87 // pred_fallthru
          _
      $region88: #{swin_transformer_block_forward.1} parent=5 // pred_fallthru
        _
    $region6: #{swin_transformer_block_forward.1} parent=1 // loop_footer
      %s25 = sadd.s32 1, %s21
    $region7: #{swin_transformer_block_forward.1} parent=1 // loop_footer_branch
      %20 = sbr.rel target = $region3
    $region8: #{swin_transformer_block_forward.1} parent=1 // loop_exit
      _
    %2943 = vsyncpa [#allocation3], 1
    %s2944 = scalar_lea.sflag [#allocation3], 1
    %2945 = vsyncpa %s2944, 1

</llo_original>
